<compile_context>
chip_gen: v7x
topology: tpu7x:2x2x1
jax: 0.10.0
libtpu: 0.0.40
codegen_flags: <defaults>
</compile_context>

<pallas_src>
import numpy as np
import jax
import jax.numpy as jnp
from jax import lax
from jax.experimental import pallas as pl
from jax.experimental.pallas import tpu as pltpu

# ---- module hyper-parameters (EquivariantBlock defaults) --------------------
HIDDEN_NF = 32
N_LAYERS = 2            # number of GCL layers
EDGE_FEAT_NF = 2        # dist_sq + 1 external edge feature
NORM_CONSTANT = 1.0
NORM_FACTOR = 100.0     # normalization_factor, aggregation_method='sum'
TANH = False            # default
COORDS_RANGE = 15.0     # unused because TANH=False

PARAM_ORDER = [
    "we1h", "we1c", "we1a", "be1", "we2", "be2",          # GCL edge_mlp (stacked over layers)
    "wn1h", "wn1a", "bn1", "wn2", "bn2",                  # GCL node_mlp (stacked over layers)
    "wc1h", "wc1c", "wc1a", "bc1", "wc2", "bc2", "wc3",   # EquivariantUpdate coord_mlp
]

# contract the edge axis (axis 0) of both operands: grow^T @ data
_SEG_DIMS = (((0,), (0,)), ((), ()))


def _silu(z):
    return z * (1.0 / (1.0 + jnp.exp(-z)))


def _eqblock_kernel(h_ref, x_ref, ea_ref, grow_ref, gcol_ref,
                    we1h_ref, we1c_ref, we1a_ref, be1_ref, we2_ref, be2_ref,
                    wn1h_ref, wn1a_ref, bn1_ref, wn2_ref, bn2_ref,
                    wc1h_ref, wc1c_ref, wc1a_ref, bc1_ref, wc2_ref, bc2_ref, wc3_ref,
                    h_out_ref, x_out_ref):
    f32 = jnp.float32
    H = h_ref.shape[1]
    h = h_ref[...]
    x = x_ref[...]
    ea = ea_ref[...]                        # [E, 1]
    # bf16 0/1 gather matrices are exact; cast once and reuse everywhere.
    grow = grow_ref[...].astype(f32)        # [E, N]
    gcol = gcol_ref[...].astype(f32)        # [E, N]

    def seg_sum(mat):
        # unsorted_segment_sum over `row`, then / normalization_factor ('sum')
        return lax.dot_general(grow, mat, dimension_numbers=_SEG_DIMS,
                               preferred_element_type=f32) / NORM_FACTOR

    # ---- layer-0 node-side projections fused with the coordinate gather ----
    p0r = jnp.dot(h, we1h_ref[0], preferred_element_type=f32)    # [N, H]
    p0c = jnp.dot(h, we1c_ref[0], preferred_element_type=f32)    # [N, H]
    slab_r = jnp.concatenate([p0r, x], axis=1)                   # [N, H+3]
    slab_c = jnp.concatenate([p0c, x], axis=1)                   # [N, H+3]
    gr0 = jnp.dot(grow, slab_r, preferred_element_type=f32)      # [E, H+3]
    gc0 = jnp.dot(gcol, slab_c, preferred_element_type=f32)      # [E, H+3]

    # ---- coord2diff -------------------------------------------------------
    coord_diff = gr0[:, H:] - gc0[:, H:]                         # x[row] - x[col], [E, 3]
    radial = jnp.sum(coord_diff * coord_diff, axis=1, keepdims=True)   # [E, 1]
    norm = jnp.sqrt(radial + 1e-8)
    coord_diff = coord_diff / (norm + NORM_CONSTANT)

    # edge_attr = cat([radial, ea]) is folded into the first linear of each
    # MLP by splitting its weight matrix (avoids odd-width concatenation).

    # ---- n_layers x GCL -----------------------------------------------------
    for i in range(N_LAYERS):
        if i == 0:
            pr_g = gr0[:, :H]                                    # gathered h@we1h[0]
            pc_g = gc0[:, :H]                                    # gathered h@we1c[0]
        else:
            # project on the node side ([N,H]x[H,H]) first, then gather ([E,N]x[N,H])
            pr_g = jnp.dot(grow, jnp.dot(h, we1h_ref[i], preferred_element_type=f32),
                           preferred_element_type=f32)
            pc_g = jnp.dot(gcol, jnp.dot(h, we1c_ref[i], preferred_element_type=f32),
                           preferred_element_type=f32)

        wa = we1a_ref[i]                                         # [2, H]
        z = pr_g + pc_g + radial * wa[0:1, :] + ea * wa[1:2, :] + be1_ref[i]
        m = _silu(z)
        m = _silu(jnp.dot(m, we2_ref[i], preferred_element_type=f32) + be2_ref[i])

        agg = seg_sum(m)                                         # [N, H]

        z = (jnp.dot(h, wn1h_ref[i], preferred_element_type=f32)
             + jnp.dot(agg, wn1a_ref[i], preferred_element_type=f32)
             + bn1_ref[i])
        nh = _silu(z)
        nh = jnp.dot(nh, wn2_ref[i], preferred_element_type=f32) + bn2_ref[i]
        h = h + nh

    h_out_ref[...] = h

    # ---- EquivariantUpdate (coord model) ------------------------------------
    pr_g = jnp.dot(grow, jnp.dot(h, wc1h_ref[...], preferred_element_type=f32),
                   preferred_element_type=f32)
    pc_g = jnp.dot(gcol, jnp.dot(h, wc1c_ref[...], preferred_element_type=f32),
                   preferred_element_type=f32)
    wa = wc1a_ref[...]                                           # [2, H]
    z = pr_g + pc_g + radial * wa[0:1, :] + ea * wa[1:2, :] + bc1_ref[...]
    t = _silu(z)
    t = _silu(jnp.dot(t, wc2_ref[...], preferred_element_type=f32) + bc2_ref[...])
    phi = jnp.dot(t, wc3_ref[...], preferred_element_type=f32)   # [E, 1], no bias
    trans = coord_diff * phi                                     # [E, 3]
    aggx = seg_sum(trans)                                        # [N, 3]
    x_out_ref[...] = x + aggx


def build_gather_mats(rows, cols, num_nodes):
    """One-hot gather matrices built once (topology is static). bf16 is exact for 0/1."""
    grow = jax.nn.one_hot(rows, num_nodes, dtype=jnp.bfloat16)   # [E, N]
    gcol = jax.nn.one_hot(cols, num_nodes, dtype=jnp.bfloat16)   # [E, N]
    return grow, gcol


def equivariant_block(h, x, edge_attr, grow, gcol, params):
    """Pallas-backed EquivariantBlock.forward. Returns (h_new, x_new)."""
    N, H = h.shape
    inputs = [h, x, edge_attr, grow, gcol] + [params[k] for k in PARAM_ORDER]
    vmem = pl.BlockSpec(memory_space=pltpu.MemorySpace.VMEM)

    # Size scoped VMEM from the actual resident footprint (v5e default is only
    # 16 MiB) with headroom for in-kernel f32 casts / temporaries; cap at 64 MiB.
    in_bytes = sum(int(a.size) * a.dtype.itemsize for a in inputs)
    out_bytes = (N * H + N * 3) * 4
    vmem_limit = int(min(max(4 * (in_bytes + out_bytes) + (4 << 20), 16 << 20), 64 << 20))

    out_shape = (jax.ShapeDtypeStruct((N, H), jnp.float32),
                 jax.ShapeDtypeStruct((N, 3), jnp.float32))
    return pl.pallas_call(
        _eqblock_kernel,
        out_shape=out_shape,
        in_specs=[vmem] * len(inputs),
        out_specs=(vmem, vmem),
        compiler_params=pltpu.CompilerParams(vmem_limit_bytes=vmem_limit),
    )(*inputs)


# ---- pure-JAX reference (mirrors the PyTorch module) -------------------------
def reference(h, x, ea, rows, cols, p):
    N = h.shape[0]
    coord_diff = x[rows] - x[cols]
    radial = jnp.sum(coord_diff ** 2, axis=1, keepdims=True)
    norm = jnp.sqrt(radial + 1e-8)
    coord_diff = coord_diff / (norm + NORM_CONSTANT)
    edge_attr = jnp.concatenate([radial, ea], axis=1)
    for i in range(N_LAYERS):
        e_in = jnp.concatenate([h[rows], h[cols], edge_attr], axis=1)
        W1 = jnp.concatenate([p["we1h"][i], p["we1c"][i], p["we1a"][i]], axis=0)
        m = jax.nn.silu(e_in @ W1 + p["be1"][i][0])
        m = jax.nn.silu(m @ p["we2"][i] + p["be2"][i][0])
        agg = jax.ops.segment_sum(m, rows, num_segments=N) / NORM_FACTOR
        n_in = jnp.concatenate([h, agg], axis=1)
        Wn1 = jnp.concatenate([p["wn1h"][i], p["wn1a"][i]], axis=0)
        nh = jax.nn.silu(n_in @ Wn1 + p["bn1"][i][0])
        nh = nh @ p["wn2"][i] + p["bn2"][i][0]
        h = h + nh
    c_in = jnp.concatenate([h[rows], h[cols], edge_attr], axis=1)
    Wc1 = jnp.concatenate([p["wc1h"], p["wc1c"], p["wc1a"]], axis=0)
    t = jax.nn.silu(c_in @ Wc1 + p["bc1"][0])
    t = jax.nn.silu(t @ p["wc2"] + p["bc2"][0])
    phi = t @ p["wc3"]
    trans = coord_diff * phi
    aggx = jax.ops.segment_sum(trans, rows, num_segments=N) / NORM_FACTOR
    return h, x + aggx


def init_params(key, H, L):
    ks = jax.random.split(key, 18)
    def w(k, shape, scale=0.1):
        return (scale * jax.random.normal(k, shape)).astype(jnp.float32)
    p = {}
    p["we1h"] = w(ks[0], (L, H, H))
    p["we1c"] = w(ks[1], (L, H, H))
    p["we1a"] = w(ks[2], (L, 2, H))
    p["be1"]  = w(ks[3], (L, 1, H), 0.01)
    p["we2"]  = w(ks[4], (L, H, H))
    p["be2"]  = w(ks[5], (L, 1, H), 0.01)
    p["wn1h"] = w(ks[6], (L, H, H))
    p["wn1a"] = w(ks[7], (L, H, H))
    p["bn1"]  = w(ks[8], (L, 1, H), 0.01)
    p["wn2"]  = w(ks[9], (L, H, H))
    p["bn2"]  = w(ks[10], (L, 1, H), 0.01)
    p["wc1h"] = w(ks[11], (H, H))
    p["wc1c"] = w(ks[12], (H, H))
    p["wc1a"] = w(ks[13], (2, H))
    p["bc1"]  = w(ks[14], (1, H), 0.01)
    p["wc2"]  = w(ks[15], (H, H))
    p["bc2"]  = w(ks[16], (1, H), 0.01)
    p["wc3"]  = w(ks[17], (H, 1), 0.001)   # last layer: xavier_uniform(gain=0.001) analog
    return p


if __name__ == "__main__":
    N = 8                       # nodes
    H = HIDDEN_NF
    key = jax.random.PRNGKey(0)
    k_h, k_x, k_e, k_p = jax.random.split(key, 4)

    # fully connected directed graph without self-loops
    rows_np, cols_np = [], []
    for i in range(N):
        for j in range(N):
            if i != j:
                rows_np.append(i)
                cols_np.append(j)
    rows = jnp.asarray(np.array(rows_np, dtype=np.int32))
    cols = jnp.asarray(np.array(cols_np, dtype=np.int32))
    E = rows.shape[0]           # 56

    h = jax.random.normal(k_h, (N, H), dtype=jnp.float32)
    x = jax.random.normal(k_x, (N, 3), dtype=jnp.float32)
    edge_attr = jax.random.normal(k_e, (E, EDGE_FEAT_NF - 1), dtype=jnp.float32)
    params = init_params(k_p, H, N_LAYERS)

    # one-hot gather matrices built once (static topology), bf16 (exact 0/1)
    grow, gcol = build_gather_mats(rows, cols, N)

    h_out, x_out = equivariant_block(h, x, edge_attr, grow, gcol, params)
    jax.block_until_ready((h_out, x_out))

    h_ref, x_ref = reference(h, x, edge_attr, rows, cols, params)
    np.testing.assert_allclose(np.asarray(h_out), np.asarray(h_ref), rtol=1e-4, atol=1e-4)
    np.testing.assert_allclose(np.asarray(x_out), np.asarray(x_ref), rtol=1e-4, atol=1e-4)

    print("KERNEL_OK")
</pallas_src>

<mosaic_0001>
module attributes {stable_mosaic.version = 11 : i64} {
  func.func @_eqblock_kernel(%arg0: memref<8x32xf32, #tpu.memory_space<vmem>>, %arg1: memref<8x3xf32, #tpu.memory_space<vmem>>, %arg2: memref<56x1xf32, #tpu.memory_space<vmem>>, %arg3: memref<56x8xbf16, #tpu.memory_space<vmem>>, %arg4: memref<56x8xbf16, #tpu.memory_space<vmem>>, %arg5: memref<2x32x32xf32, #tpu.memory_space<vmem>>, %arg6: memref<2x32x32xf32, #tpu.memory_space<vmem>>, %arg7: memref<2x2x32xf32, #tpu.memory_space<vmem>>, %arg8: memref<2x1x32xf32, #tpu.memory_space<vmem>>, %arg9: memref<2x32x32xf32, #tpu.memory_space<vmem>>, %arg10: memref<2x1x32xf32, #tpu.memory_space<vmem>>, %arg11: memref<2x32x32xf32, #tpu.memory_space<vmem>>, %arg12: memref<2x32x32xf32, #tpu.memory_space<vmem>>, %arg13: memref<2x1x32xf32, #tpu.memory_space<vmem>>, %arg14: memref<2x32x32xf32, #tpu.memory_space<vmem>>, %arg15: memref<2x1x32xf32, #tpu.memory_space<vmem>>, %arg16: memref<32x32xf32, #tpu.memory_space<vmem>>, %arg17: memref<32x32xf32, #tpu.memory_space<vmem>>, %arg18: memref<2x32xf32, #tpu.memory_space<vmem>>, %arg19: memref<1x32xf32, #tpu.memory_space<vmem>>, %arg20: memref<32x32xf32, #tpu.memory_space<vmem>>, %arg21: memref<1x32xf32, #tpu.memory_space<vmem>>, %arg22: memref<32x1xf32, #tpu.memory_space<vmem>>, %arg23: memref<8x32xf32, #tpu.memory_space<vmem>>, %arg24: memref<8x3xf32, #tpu.memory_space<vmem>>) attributes {dimension_semantics = [], scalar_prefetch = 0 : i64, scratch_operands = 0 : i64, tpu.core_type = #tpu.core_type<tc>} {
    %c0 = arith.constant 0 : index
    %c0_0 = arith.constant 0 : index
    %0 = vector.load %arg0[%c0, %c0_0] : memref<8x32xf32, #tpu.memory_space<vmem>>, vector<8x32xf32>
    %c0_1 = arith.constant 0 : index
    %c0_2 = arith.constant 0 : index
    %1 = vector.load %arg1[%c0_1, %c0_2] : memref<8x3xf32, #tpu.memory_space<vmem>>, vector<8x3xf32>
    %c0_3 = arith.constant 0 : index
    %c0_4 = arith.constant 0 : index
    %2 = vector.load %arg2[%c0_3, %c0_4] : memref<56x1xf32, #tpu.memory_space<vmem>>, vector<56x1xf32>
    %c0_5 = arith.constant 0 : index
    %c0_6 = arith.constant 0 : index
    %3 = vector.load %arg3[%c0_5, %c0_6] : memref<56x8xbf16, #tpu.memory_space<vmem>>, vector<56x8xbf16>
    %4 = arith.extf %3 : vector<56x8xbf16> to vector<56x8xf32>
    %c0_7 = arith.constant 0 : index
    %c0_8 = arith.constant 0 : index
    %5 = vector.load %arg4[%c0_7, %c0_8] : memref<56x8xbf16, #tpu.memory_space<vmem>>, vector<56x8xbf16>
    %6 = arith.extf %5 : vector<56x8xbf16> to vector<56x8xf32>
    %c0_9 = arith.constant 0 : index
    %c0_10 = arith.constant 0 : index
    %c0_11 = arith.constant 0 : index
    %7 = vector.load %arg5[%c0_9, %c0_10, %c0_11] : memref<2x32x32xf32, #tpu.memory_space<vmem>>, vector<1x32x32xf32>
    %8 = vector.shape_cast %7 : vector<1x32x32xf32> to vector<32x32xf32>
    %cst = arith.constant dense<0.000000e+00> : vector<8x32xf32>
    %9 = tpu.matmul %0, %8, %cst {dimension_numbers = #tpu.dot_dimension_numbers<[1], [0], [0], [1], [0, 0, 1, 1], [], []>} : vector<8x32xf32>, vector<32x32xf32>, vector<8x32xf32> -> vector<8x32xf32>
    %c0_12 = arith.constant 0 : index
    %c0_13 = arith.constant 0 : index
    %c0_14 = arith.constant 0 : index
    %10 = vector.load %arg6[%c0_12, %c0_13, %c0_14] : memref<2x32x32xf32, #tpu.memory_space<vmem>>, vector<1x32x32xf32>
    %11 = vector.shape_cast %10 : vector<1x32x32xf32> to vector<32x32xf32>
    %cst_15 = arith.constant dense<0.000000e+00> : vector<8x32xf32>
    %12 = tpu.matmul %0, %11, %cst_15 {dimension_numbers = #tpu.dot_dimension_numbers<[1], [0], [0], [1], [0, 0, 1, 1], [], []>} : vector<8x32xf32>, vector<32x32xf32>, vector<8x32xf32> -> vector<8x32xf32>
    %13 = tpu.concatenate %9, %1 in 1 : vector<8x32xf32>, vector<8x3xf32> -> vector<8x35xf32>
    %14 = tpu.concatenate %12, %1 in 1 : vector<8x32xf32>, vector<8x3xf32> -> vector<8x35xf32>
    %cst_16 = arith.constant dense<0.000000e+00> : vector<56x35xf32>
    %15 = tpu.matmul %4, %13, %cst_16 {dimension_numbers = #tpu.dot_dimension_numbers<[1], [0], [0], [1], [0, 0, 1, 1], [], []>} : vector<56x8xf32>, vector<8x35xf32>, vector<56x35xf32> -> vector<56x35xf32>
    %cst_17 = arith.constant dense<0.000000e+00> : vector<56x35xf32>
    %16 = tpu.matmul %6, %14, %cst_17 {dimension_numbers = #tpu.dot_dimension_numbers<[1], [0], [0], [1], [0, 0, 1, 1], [], []>} : vector<56x8xf32>, vector<8x35xf32>, vector<56x35xf32> -> vector<56x35xf32>
    %17 = vector.extract_strided_slice %15 {offsets = [0, 32], sizes = [56, 3], strides = [1, 1]} : vector<56x35xf32> to vector<56x3xf32>
    %18 = vector.extract_strided_slice %16 {offsets = [0, 32], sizes = [56, 3], strides = [1, 1]} : vector<56x35xf32> to vector<56x3xf32>
    %19 = arith.subf %17, %18 : vector<56x3xf32>
    %20 = arith.mulf %19, %19 : vector<56x3xf32>
    %cst_18 = arith.constant dense<0.000000e+00> : vector<56xf32>
    %21 = vector.multi_reduction <add>, %20, %cst_18 [1] : vector<56x3xf32> to vector<56xf32>
    %22 = vector.shape_cast %21 : vector<56xf32> to vector<56x1xf32>
    %cst_19 = arith.constant 9.99999993E-9 : f32
    %23 = vector.broadcast %cst_19 : f32 to vector<56x1xf32>
    %24 = arith.addf %22, %23 : vector<56x1xf32>
    %25 = math.sqrt %24 : vector<56x1xf32>
    %cst_20 = arith.constant 1.000000e+00 : f32
    %26 = vector.broadcast %cst_20 : f32 to vector<56x1xf32>
    %27 = arith.addf %25, %26 : vector<56x1xf32>
    %28 = vector.broadcast %27 : vector<56x1xf32> to vector<56x3xf32>
    %29 = arith.divf %19, %28 : vector<56x3xf32>
    %30 = vector.extract_strided_slice %15 {offsets = [0, 0], sizes = [56, 32], strides = [1, 1]} : vector<56x35xf32> to vector<56x32xf32>
    %31 = vector.extract_strided_slice %16 {offsets = [0, 0], sizes = [56, 32], strides = [1, 1]} : vector<56x35xf32> to vector<56x32xf32>
    %c0_21 = arith.constant 0 : index
    %c0_22 = arith.constant 0 : index
    %c0_23 = arith.constant 0 : index
    %32 = vector.load %arg7[%c0_21, %c0_22, %c0_23] : memref<2x2x32xf32, #tpu.memory_space<vmem>>, vector<1x2x32xf32>
    %33 = vector.shape_cast %32 : vector<1x2x32xf32> to vector<2x32xf32>
    %34 = arith.addf %30, %31 : vector<56x32xf32>
    %35 = vector.extract_strided_slice %33 {offsets = [0, 0], sizes = [1, 32], strides = [1, 1]} : vector<2x32xf32> to vector<1x32xf32>
    %36 = vector.broadcast %22 : vector<56x1xf32> to vector<56x32xf32>
    %37 = vector.broadcast %35 : vector<1x32xf32> to vector<56x32xf32>
    %38 = arith.mulf %36, %37 : vector<56x32xf32>
    %39 = arith.addf %34, %38 : vector<56x32xf32>
    %40 = vector.extract_strided_slice %33 {offsets = [1, 0], sizes = [1, 32], strides = [1, 1]} : vector<2x32xf32> to vector<1x32xf32>
    %41 = vector.broadcast %2 : vector<56x1xf32> to vector<56x32xf32>
    %42 = vector.broadcast %40 : vector<1x32xf32> to vector<56x32xf32>
    %43 = arith.mulf %41, %42 : vector<56x32xf32>
    %44 = arith.addf %39, %43 : vector<56x32xf32>
    %c0_24 = arith.constant 0 : index
    %c0_25 = arith.constant 0 : index
    %c0_26 = arith.constant 0 : index
    %45 = vector.load %arg8[%c0_24, %c0_25, %c0_26] : memref<2x1x32xf32, #tpu.memory_space<vmem>>, vector<1x1x32xf32>
    %46 = vector.shape_cast %45 : vector<1x1x32xf32> to vector<1x32xf32>
    %47 = vector.broadcast %46 : vector<1x32xf32> to vector<56x32xf32>
    %48 = arith.addf %44, %47 : vector<56x32xf32>
    %cst_27 = arith.constant 0.000000e+00 : f32
    %49 = vector.broadcast %cst_27 : f32 to vector<56x32xf32>
    %50 = arith.subf %49, %48 : vector<56x32xf32>
    %51 = math.exp %50 : vector<56x32xf32>
    %cst_28 = arith.constant 1.000000e+00 : f32
    %52 = vector.broadcast %cst_28 : f32 to vector<56x32xf32>
    %53 = arith.addf %52, %51 : vector<56x32xf32>
    %cst_29 = arith.constant 1.000000e+00 : f32
    %54 = vector.broadcast %cst_29 : f32 to vector<56x32xf32>
    %55 = arith.divf %54, %53 : vector<56x32xf32>
    %56 = arith.mulf %48, %55 : vector<56x32xf32>
    %c0_30 = arith.constant 0 : index
    %c0_31 = arith.constant 0 : index
    %c0_32 = arith.constant 0 : index
    %57 = vector.load %arg9[%c0_30, %c0_31, %c0_32] : memref<2x32x32xf32, #tpu.memory_space<vmem>>, vector<1x32x32xf32>
    %58 = vector.shape_cast %57 : vector<1x32x32xf32> to vector<32x32xf32>
    %cst_33 = arith.constant dense<0.000000e+00> : vector<56x32xf32>
    %59 = tpu.matmul %56, %58, %cst_33 {dimension_numbers = #tpu.dot_dimension_numbers<[1], [0], [0], [1], [0, 0, 1, 1], [], []>} : vector<56x32xf32>, vector<32x32xf32>, vector<56x32xf32> -> vector<56x32xf32>
    %c0_34 = arith.constant 0 : index
    %c0_35 = arith.constant 0 : index
    %c0_36 = arith.constant 0 : index
    %60 = vector.load %arg10[%c0_34, %c0_35, %c0_36] : memref<2x1x32xf32, #tpu.memory_space<vmem>>, vector<1x1x32xf32>
    %61 = vector.shape_cast %60 : vector<1x1x32xf32> to vector<1x32xf32>
    %62 = vector.broadcast %61 : vector<1x32xf32> to vector<56x32xf32>
    %63 = arith.addf %59, %62 : vector<56x32xf32>
    %cst_37 = arith.constant 0.000000e+00 : f32
    %64 = vector.broadcast %cst_37 : f32 to vector<56x32xf32>
    %65 = arith.subf %64, %63 : vector<56x32xf32>
    %66 = math.exp %65 : vector<56x32xf32>
    %cst_38 = arith.constant 1.000000e+00 : f32
    %67 = vector.broadcast %cst_38 : f32 to vector<56x32xf32>
    %68 = arith.addf %67, %66 : vector<56x32xf32>
    %cst_39 = arith.constant 1.000000e+00 : f32
    %69 = vector.broadcast %cst_39 : f32 to vector<56x32xf32>
    %70 = arith.divf %69, %68 : vector<56x32xf32>
    %71 = arith.mulf %63, %70 : vector<56x32xf32>
    %cst_40 = arith.constant dense<0.000000e+00> : vector<8x32xf32>
    %72 = tpu.matmul %4, %71, %cst_40 {dimension_numbers = #tpu.dot_dimension_numbers<[0], [0], [1], [1], [0, 1, 1, 1], [], []>} : vector<56x8xf32>, vector<56x32xf32>, vector<8x32xf32> -> vector<8x32xf32>
    %cst_41 = arith.constant 1.000000e+02 : f32
    %73 = vector.broadcast %cst_41 : f32 to vector<8x32xf32>
    %74 = arith.divf %72, %73 : vector<8x32xf32>
    %c0_42 = arith.constant 0 : index
    %c0_43 = arith.constant 0 : index
    %c0_44 = arith.constant 0 : index
    %75 = vector.load %arg11[%c0_42, %c0_43, %c0_44] : memref<2x32x32xf32, #tpu.memory_space<vmem>>, vector<1x32x32xf32>
    %76 = vector.shape_cast %75 : vector<1x32x32xf32> to vector<32x32xf32>
    %cst_45 = arith.constant dense<0.000000e+00> : vector<8x32xf32>
    %77 = tpu.matmul %0, %76, %cst_45 {dimension_numbers = #tpu.dot_dimension_numbers<[1], [0], [0], [1], [0, 0, 1, 1], [], []>} : vector<8x32xf32>, vector<32x32xf32>, vector<8x32xf32> -> vector<8x32xf32>
    %c0_46 = arith.constant 0 : index
    %c0_47 = arith.constant 0 : index
    %c0_48 = arith.constant 0 : index
    %78 = vector.load %arg12[%c0_46, %c0_47, %c0_48] : memref<2x32x32xf32, #tpu.memory_space<vmem>>, vector<1x32x32xf32>
    %79 = vector.shape_cast %78 : vector<1x32x32xf32> to vector<32x32xf32>
    %cst_49 = arith.constant dense<0.000000e+00> : vector<8x32xf32>
    %80 = tpu.matmul %74, %79, %cst_49 {dimension_numbers = #tpu.dot_dimension_numbers<[1], [0], [0], [1], [0, 0, 1, 1], [], []>} : vector<8x32xf32>, vector<32x32xf32>, vector<8x32xf32> -> vector<8x32xf32>
    %81 = arith.addf %77, %80 : vector<8x32xf32>
    %c0_50 = arith.constant 0 : index
    %c0_51 = arith.constant 0 : index
    %c0_52 = arith.constant 0 : index
    %82 = vector.load %arg13[%c0_50, %c0_51, %c0_52] : memref<2x1x32xf32, #tpu.memory_space<vmem>>, vector<1x1x32xf32>
    %83 = vector.shape_cast %82 : vector<1x1x32xf32> to vector<1x32xf32>
    %84 = vector.broadcast %83 : vector<1x32xf32> to vector<8x32xf32>
    %85 = arith.addf %81, %84 : vector<8x32xf32>
    %cst_53 = arith.constant 0.000000e+00 : f32
    %86 = vector.broadcast %cst_53 : f32 to vector<8x32xf32>
    %87 = arith.subf %86, %85 : vector<8x32xf32>
    %88 = math.exp %87 : vector<8x32xf32>
    %cst_54 = arith.constant 1.000000e+00 : f32
    %89 = vector.broadcast %cst_54 : f32 to vector<8x32xf32>
    %90 = arith.addf %89, %88 : vector<8x32xf32>
    %cst_55 = arith.constant 1.000000e+00 : f32
    %91 = vector.broadcast %cst_55 : f32 to vector<8x32xf32>
    %92 = arith.divf %91, %90 : vector<8x32xf32>
    %93 = arith.mulf %85, %92 : vector<8x32xf32>
    %c0_56 = arith.constant 0 : index
    %c0_57 = arith.constant 0 : index
    %c0_58 = arith.constant 0 : index
    %94 = vector.load %arg14[%c0_56, %c0_57, %c0_58] : memref<2x32x32xf32, #tpu.memory_space<vmem>>, vector<1x32x32xf32>
    %95 = vector.shape_cast %94 : vector<1x32x32xf32> to vector<32x32xf32>
    %cst_59 = arith.constant dense<0.000000e+00> : vector<8x32xf32>
    %96 = tpu.matmul %93, %95, %cst_59 {dimension_numbers = #tpu.dot_dimension_numbers<[1], [0], [0], [1], [0, 0, 1, 1], [], []>} : vector<8x32xf32>, vector<32x32xf32>, vector<8x32xf32> -> vector<8x32xf32>
    %c0_60 = arith.constant 0 : index
    %c0_61 = arith.constant 0 : index
    %c0_62 = arith.constant 0 : index
    %97 = vector.load %arg15[%c0_60, %c0_61, %c0_62] : memref<2x1x32xf32, #tpu.memory_space<vmem>>, vector<1x1x32xf32>
    %98 = vector.shape_cast %97 : vector<1x1x32xf32> to vector<1x32xf32>
    %99 = vector.broadcast %98 : vector<1x32xf32> to vector<8x32xf32>
    %100 = arith.addf %96, %99 : vector<8x32xf32>
    %101 = arith.addf %0, %100 : vector<8x32xf32>
    %c1 = arith.constant 1 : index
    %c0_63 = arith.constant 0 : index
    %c0_64 = arith.constant 0 : index
    %102 = vector.load %arg5[%c1, %c0_63, %c0_64] : memref<2x32x32xf32, #tpu.memory_space<vmem>>, vector<1x32x32xf32>
    %103 = vector.shape_cast %102 : vector<1x32x32xf32> to vector<32x32xf32>
    %cst_65 = arith.constant dense<0.000000e+00> : vector<8x32xf32>
    %104 = tpu.matmul %101, %103, %cst_65 {dimension_numbers = #tpu.dot_dimension_numbers<[1], [0], [0], [1], [0, 0, 1, 1], [], []>} : vector<8x32xf32>, vector<32x32xf32>, vector<8x32xf32> -> vector<8x32xf32>
    %cst_66 = arith.constant dense<0.000000e+00> : vector<56x32xf32>
    %105 = tpu.matmul %4, %104, %cst_66 {dimension_numbers = #tpu.dot_dimension_numbers<[1], [0], [0], [1], [0, 0, 1, 1], [], []>} : vector<56x8xf32>, vector<8x32xf32>, vector<56x32xf32> -> vector<56x32xf32>
    %c1_67 = arith.constant 1 : index
    %c0_68 = arith.constant 0 : index
    %c0_69 = arith.constant 0 : index
    %106 = vector.load %arg6[%c1_67, %c0_68, %c0_69] : memref<2x32x32xf32, #tpu.memory_space<vmem>>, vector<1x32x32xf32>
    %107 = vector.shape_cast %106 : vector<1x32x32xf32> to vector<32x32xf32>
    %cst_70 = arith.constant dense<0.000000e+00> : vector<8x32xf32>
    %108 = tpu.matmul %101, %107, %cst_70 {dimension_numbers = #tpu.dot_dimension_numbers<[1], [0], [0], [1], [0, 0, 1, 1], [], []>} : vector<8x32xf32>, vector<32x32xf32>, vector<8x32xf32> -> vector<8x32xf32>
    %cst_71 = arith.constant dense<0.000000e+00> : vector<56x32xf32>
    %109 = tpu.matmul %6, %108, %cst_71 {dimension_numbers = #tpu.dot_dimension_numbers<[1], [0], [0], [1], [0, 0, 1, 1], [], []>} : vector<56x8xf32>, vector<8x32xf32>, vector<56x32xf32> -> vector<56x32xf32>
    %c1_72 = arith.constant 1 : index
    %c0_73 = arith.constant 0 : index
    %c0_74 = arith.constant 0 : index
    %110 = vector.load %arg7[%c1_72, %c0_73, %c0_74] : memref<2x2x32xf32, #tpu.memory_space<vmem>>, vector<1x2x32xf32>
    %111 = vector.shape_cast %110 : vector<1x2x32xf32> to vector<2x32xf32>
    %112 = arith.addf %105, %109 : vector<56x32xf32>
    %113 = vector.extract_strided_slice %111 {offsets = [0, 0], sizes = [1, 32], strides = [1, 1]} : vector<2x32xf32> to vector<1x32xf32>
    %114 = vector.broadcast %22 : vector<56x1xf32> to vector<56x32xf32>
    %115 = vector.broadcast %113 : vector<1x32xf32> to vector<56x32xf32>
    %116 = arith.mulf %114, %115 : vector<56x32xf32>
    %117 = arith.addf %112, %116 : vector<56x32xf32>
    %118 = vector.extract_strided_slice %111 {offsets = [1, 0], sizes = [1, 32], strides = [1, 1]} : vector<2x32xf32> to vector<1x32xf32>
    %119 = vector.broadcast %2 : vector<56x1xf32> to vector<56x32xf32>
    %120 = vector.broadcast %118 : vector<1x32xf32> to vector<56x32xf32>
    %121 = arith.mulf %119, %120 : vector<56x32xf32>
    %122 = arith.addf %117, %121 : vector<56x32xf32>
    %c1_75 = arith.constant 1 : index
    %c0_76 = arith.constant 0 : index
    %c0_77 = arith.constant 0 : index
    %123 = vector.load %arg8[%c1_75, %c0_76, %c0_77] : memref<2x1x32xf32, #tpu.memory_space<vmem>>, vector<1x1x32xf32>
    %124 = vector.shape_cast %123 : vector<1x1x32xf32> to vector<1x32xf32>
    %125 = vector.broadcast %124 : vector<1x32xf32> to vector<56x32xf32>
    %126 = arith.addf %122, %125 : vector<56x32xf32>
    %cst_78 = arith.constant 0.000000e+00 : f32
    %127 = vector.broadcast %cst_78 : f32 to vector<56x32xf32>
    %128 = arith.subf %127, %126 : vector<56x32xf32>
    %129 = math.exp %128 : vector<56x32xf32>
    %cst_79 = arith.constant 1.000000e+00 : f32
    %130 = vector.broadcast %cst_79 : f32 to vector<56x32xf32>
    %131 = arith.addf %130, %129 : vector<56x32xf32>
    %cst_80 = arith.constant 1.000000e+00 : f32
    %132 = vector.broadcast %cst_80 : f32 to vector<56x32xf32>
    %133 = arith.divf %132, %131 : vector<56x32xf32>
    %134 = arith.mulf %126, %133 : vector<56x32xf32>
    %c1_81 = arith.constant 1 : index
    %c0_82 = arith.constant 0 : index
    %c0_83 = arith.constant 0 : index
    %135 = vector.load %arg9[%c1_81, %c0_82, %c0_83] : memref<2x32x32xf32, #tpu.memory_space<vmem>>, vector<1x32x32xf32>
    %136 = vector.shape_cast %135 : vector<1x32x32xf32> to vector<32x32xf32>
    %cst_84 = arith.constant dense<0.000000e+00> : vector<56x32xf32>
    %137 = tpu.matmul %134, %136, %cst_84 {dimension_numbers = #tpu.dot_dimension_numbers<[1], [0], [0], [1], [0, 0, 1, 1], [], []>} : vector<56x32xf32>, vector<32x32xf32>, vector<56x32xf32> -> vector<56x32xf32>
    %c1_85 = arith.constant 1 : index
    %c0_86 = arith.constant 0 : index
    %c0_87 = arith.constant 0 : index
    %138 = vector.load %arg10[%c1_85, %c0_86, %c0_87] : memref<2x1x32xf32, #tpu.memory_space<vmem>>, vector<1x1x32xf32>
    %139 = vector.shape_cast %138 : vector<1x1x32xf32> to vector<1x32xf32>
    %140 = vector.broadcast %139 : vector<1x32xf32> to vector<56x32xf32>
    %141 = arith.addf %137, %140 : vector<56x32xf32>
    %cst_88 = arith.constant 0.000000e+00 : f32
    %142 = vector.broadcast %cst_88 : f32 to vector<56x32xf32>
    %143 = arith.subf %142, %141 : vector<56x32xf32>
    %144 = math.exp %143 : vector<56x32xf32>
    %cst_89 = arith.constant 1.000000e+00 : f32
    %145 = vector.broadcast %cst_89 : f32 to vector<56x32xf32>
    %146 = arith.addf %145, %144 : vector<56x32xf32>
    %cst_90 = arith.constant 1.000000e+00 : f32
    %147 = vector.broadcast %cst_90 : f32 to vector<56x32xf32>
    %148 = arith.divf %147, %146 : vector<56x32xf32>
    %149 = arith.mulf %141, %148 : vector<56x32xf32>
    %cst_91 = arith.constant dense<0.000000e+00> : vector<8x32xf32>
    %150 = tpu.matmul %4, %149, %cst_91 {dimension_numbers = #tpu.dot_dimension_numbers<[0], [0], [1], [1], [0, 1, 1, 1], [], []>} : vector<56x8xf32>, vector<56x32xf32>, vector<8x32xf32> -> vector<8x32xf32>
    %cst_92 = arith.constant 1.000000e+02 : f32
    %151 = vector.broadcast %cst_92 : f32 to vector<8x32xf32>
    %152 = arith.divf %150, %151 : vector<8x32xf32>
    %c1_93 = arith.constant 1 : index
    %c0_94 = arith.constant 0 : index
    %c0_95 = arith.constant 0 : index
    %153 = vector.load %arg11[%c1_93, %c0_94, %c0_95] : memref<2x32x32xf32, #tpu.memory_space<vmem>>, vector<1x32x32xf32>
    %154 = vector.shape_cast %153 : vector<1x32x32xf32> to vector<32x32xf32>
    %cst_96 = arith.constant dense<0.000000e+00> : vector<8x32xf32>
    %155 = tpu.matmul %101, %154, %cst_96 {dimension_numbers = #tpu.dot_dimension_numbers<[1], [0], [0], [1], [0, 0, 1, 1], [], []>} : vector<8x32xf32>, vector<32x32xf32>, vector<8x32xf32> -> vector<8x32xf32>
    %c1_97 = arith.constant 1 : index
    %c0_98 = arith.constant 0 : index
    %c0_99 = arith.constant 0 : index
    %156 = vector.load %arg12[%c1_97, %c0_98, %c0_99] : memref<2x32x32xf32, #tpu.memory_space<vmem>>, vector<1x32x32xf32>
    %157 = vector.shape_cast %156 : vector<1x32x32xf32> to vector<32x32xf32>
    %cst_100 = arith.constant dense<0.000000e+00> : vector<8x32xf32>
    %158 = tpu.matmul %152, %157, %cst_100 {dimension_numbers = #tpu.dot_dimension_numbers<[1], [0], [0], [1], [0, 0, 1, 1], [], []>} : vector<8x32xf32>, vector<32x32xf32>, vector<8x32xf32> -> vector<8x32xf32>
    %159 = arith.addf %155, %158 : vector<8x32xf32>
    %c1_101 = arith.constant 1 : index
    %c0_102 = arith.constant 0 : index
    %c0_103 = arith.constant 0 : index
    %160 = vector.load %arg13[%c1_101, %c0_102, %c0_103] : memref<2x1x32xf32, #tpu.memory_space<vmem>>, vector<1x1x32xf32>
    %161 = vector.shape_cast %160 : vector<1x1x32xf32> to vector<1x32xf32>
    %162 = vector.broadcast %161 : vector<1x32xf32> to vector<8x32xf32>
    %163 = arith.addf %159, %162 : vector<8x32xf32>
    %cst_104 = arith.constant 0.000000e+00 : f32
    %164 = vector.broadcast %cst_104 : f32 to vector<8x32xf32>
    %165 = arith.subf %164, %163 : vector<8x32xf32>
    %166 = math.exp %165 : vector<8x32xf32>
    %cst_105 = arith.constant 1.000000e+00 : f32
    %167 = vector.broadcast %cst_105 : f32 to vector<8x32xf32>
    %168 = arith.addf %167, %166 : vector<8x32xf32>
    %cst_106 = arith.constant 1.000000e+00 : f32
    %169 = vector.broadcast %cst_106 : f32 to vector<8x32xf32>
    %170 = arith.divf %169, %168 : vector<8x32xf32>
    %171 = arith.mulf %163, %170 : vector<8x32xf32>
    %c1_107 = arith.constant 1 : index
    %c0_108 = arith.constant 0 : index
    %c0_109 = arith.constant 0 : index
    %172 = vector.load %arg14[%c1_107, %c0_108, %c0_109] : memref<2x32x32xf32, #tpu.memory_space<vmem>>, vector<1x32x32xf32>
    %173 = vector.shape_cast %172 : vector<1x32x32xf32> to vector<32x32xf32>
    %cst_110 = arith.constant dense<0.000000e+00> : vector<8x32xf32>
    %174 = tpu.matmul %171, %173, %cst_110 {dimension_numbers = #tpu.dot_dimension_numbers<[1], [0], [0], [1], [0, 0, 1, 1], [], []>} : vector<8x32xf32>, vector<32x32xf32>, vector<8x32xf32> -> vector<8x32xf32>
    %c1_111 = arith.constant 1 : index
    %c0_112 = arith.constant 0 : index
    %c0_113 = arith.constant 0 : index
    %175 = vector.load %arg15[%c1_111, %c0_112, %c0_113] : memref<2x1x32xf32, #tpu.memory_space<vmem>>, vector<1x1x32xf32>
    %176 = vector.shape_cast %175 : vector<1x1x32xf32> to vector<1x32xf32>
    %177 = vector.broadcast %176 : vector<1x32xf32> to vector<8x32xf32>
    %178 = arith.addf %174, %177 : vector<8x32xf32>
    %179 = arith.addf %101, %178 : vector<8x32xf32>
    %c0_114 = arith.constant 0 : index
    %c0_115 = arith.constant 0 : index
    %180 = vector.load %arg23[%c0_114, %c0_115] : memref<8x32xf32, #tpu.memory_space<vmem>>, vector<8x32xf32>
    tpu.vector_store %arg23[%c0_114, %c0_115], %179 {strides = array<i32>} : memref<8x32xf32, #tpu.memory_space<vmem>>, vector<8x32xf32>,
    %c0_116 = arith.constant 0 : index
    %c0_117 = arith.constant 0 : index
    %181 = vector.load %arg16[%c0_116, %c0_117] : memref<32x32xf32, #tpu.memory_space<vmem>>, vector<32x32xf32>
    %cst_118 = arith.constant dense<0.000000e+00> : vector<8x32xf32>
    %182 = tpu.matmul %179, %181, %cst_118 {dimension_numbers = #tpu.dot_dimension_numbers<[1], [0], [0], [1], [0, 0, 1, 1], [], []>} : vector<8x32xf32>, vector<32x32xf32>, vector<8x32xf32> -> vector<8x32xf32>
    %cst_119 = arith.constant dense<0.000000e+00> : vector<56x32xf32>
    %183 = tpu.matmul %4, %182, %cst_119 {dimension_numbers = #tpu.dot_dimension_numbers<[1], [0], [0], [1], [0, 0, 1, 1], [], []>} : vector<56x8xf32>, vector<8x32xf32>, vector<56x32xf32> -> vector<56x32xf32>
    %c0_120 = arith.constant 0 : index
    %c0_121 = arith.constant 0 : index
    %184 = vector.load %arg17[%c0_120, %c0_121] : memref<32x32xf32, #tpu.memory_space<vmem>>, vector<32x32xf32>
    %cst_122 = arith.constant dense<0.000000e+00> : vector<8x32xf32>
    %185 = tpu.matmul %179, %184, %cst_122 {dimension_numbers = #tpu.dot_dimension_numbers<[1], [0], [0], [1], [0, 0, 1, 1], [], []>} : vector<8x32xf32>, vector<32x32xf32>, vector<8x32xf32> -> vector<8x32xf32>
    %cst_123 = arith.constant dense<0.000000e+00> : vector<56x32xf32>
    %186 = tpu.matmul %6, %185, %cst_123 {dimension_numbers = #tpu.dot_dimension_numbers<[1], [0], [0], [1], [0, 0, 1, 1], [], []>} : vector<56x8xf32>, vector<8x32xf32>, vector<56x32xf32> -> vector<56x32xf32>
    %c0_124 = arith.constant 0 : index
    %c0_125 = arith.constant 0 : index
    %187 = vector.load %arg18[%c0_124, %c0_125] : memref<2x32xf32, #tpu.memory_space<vmem>>, vector<2x32xf32>
    %188 = arith.addf %183, %186 : vector<56x32xf32>
    %189 = vector.extract_strided_slice %187 {offsets = [0, 0], sizes = [1, 32], strides = [1, 1]} : vector<2x32xf32> to vector<1x32xf32>
    %190 = vector.broadcast %22 : vector<56x1xf32> to vector<56x32xf32>
    %191 = vector.broadcast %189 : vector<1x32xf32> to vector<56x32xf32>
    %192 = arith.mulf %190, %191 : vector<56x32xf32>
    %193 = arith.addf %188, %192 : vector<56x32xf32>
    %194 = vector.extract_strided_slice %187 {offsets = [1, 0], sizes = [1, 32], strides = [1, 1]} : vector<2x32xf32> to vector<1x32xf32>
    %195 = vector.broadcast %2 : vector<56x1xf32> to vector<56x32xf32>
    %196 = vector.broadcast %194 : vector<1x32xf32> to vector<56x32xf32>
    %197 = arith.mulf %195, %196 : vector<56x32xf32>
    %198 = arith.addf %193, %197 : vector<56x32xf32>
    %c0_126 = arith.constant 0 : index
    %c0_127 = arith.constant 0 : index
    %199 = vector.load %arg19[%c0_126, %c0_127] : memref<1x32xf32, #tpu.memory_space<vmem>>, vector<1x32xf32>
    %200 = vector.broadcast %199 : vector<1x32xf32> to vector<56x32xf32>
    %201 = arith.addf %198, %200 : vector<56x32xf32>
    %cst_128 = arith.constant 0.000000e+00 : f32
    %202 = vector.broadcast %cst_128 : f32 to vector<56x32xf32>
    %203 = arith.subf %202, %201 : vector<56x32xf32>
    %204 = math.exp %203 : vector<56x32xf32>
    %cst_129 = arith.constant 1.000000e+00 : f32
    %205 = vector.broadcast %cst_129 : f32 to vector<56x32xf32>
    %206 = arith.addf %205, %204 : vector<56x32xf32>
    %cst_130 = arith.constant 1.000000e+00 : f32
    %207 = vector.broadcast %cst_130 : f32 to vector<56x32xf32>
    %208 = arith.divf %207, %206 : vector<56x32xf32>
    %209 = arith.mulf %201, %208 : vector<56x32xf32>
    %c0_131 = arith.constant 0 : index
    %c0_132 = arith.constant 0 : index
    %210 = vector.load %arg20[%c0_131, %c0_132] : memref<32x32xf32, #tpu.memory_space<vmem>>, vector<32x32xf32>
    %cst_133 = arith.constant dense<0.000000e+00> : vector<56x32xf32>
    %211 = tpu.matmul %209, %210, %cst_133 {dimension_numbers = #tpu.dot_dimension_numbers<[1], [0], [0], [1], [0, 0, 1, 1], [], []>} : vector<56x32xf32>, vector<32x32xf32>, vector<56x32xf32> -> vector<56x32xf32>
    %c0_134 = arith.constant 0 : index
    %c0_135 = arith.constant 0 : index
    %212 = vector.load %arg21[%c0_134, %c0_135] : memref<1x32xf32, #tpu.memory_space<vmem>>, vector<1x32xf32>
    %213 = vector.broadcast %212 : vector<1x32xf32> to vector<56x32xf32>
    %214 = arith.addf %211, %213 : vector<56x32xf32>
    %cst_136 = arith.constant 0.000000e+00 : f32
    %215 = vector.broadcast %cst_136 : f32 to vector<56x32xf32>
    %216 = arith.subf %215, %214 : vector<56x32xf32>
    %217 = math.exp %216 : vector<56x32xf32>
    %cst_137 = arith.constant 1.000000e+00 : f32
    %218 = vector.broadcast %cst_137 : f32 to vector<56x32xf32>
    %219 = arith.addf %218, %217 : vector<56x32xf32>
    %cst_138 = arith.constant 1.000000e+00 : f32
    %220 = vector.broadcast %cst_138 : f32 to vector<56x32xf32>
    %221 = arith.divf %220, %219 : vector<56x32xf32>
    %222 = arith.mulf %214, %221 : vector<56x32xf32>
    %c0_139 = arith.constant 0 : index
    %c0_140 = arith.constant 0 : index
    %223 = vector.load %arg22[%c0_139, %c0_140] : memref<32x1xf32, #tpu.memory_space<vmem>>, vector<32x1xf32>
    %cst_141 = arith.constant dense<0.000000e+00> : vector<56x1xf32>
    %224 = tpu.matmul %222, %223, %cst_141 {dimension_numbers = #tpu.dot_dimension_numbers<[1], [0], [0], [1], [0, 0, 1, 1], [], []>} : vector<56x32xf32>, vector<32x1xf32>, vector<56x1xf32> -> vector<56x1xf32>
    %225 = vector.broadcast %224 : vector<56x1xf32> to vector<56x3xf32>
    %226 = arith.mulf %29, %225 : vector<56x3xf32>
    %cst_142 = arith.constant dense<0.000000e+00> : vector<8x3xf32>
    %227 = tpu.matmul %4, %226, %cst_142 {dimension_numbers = #tpu.dot_dimension_numbers<[0], [0], [1], [1], [0, 1, 1, 1], [], []>} : vector<56x8xf32>, vector<56x3xf32>, vector<8x3xf32> -> vector<8x3xf32>
    %cst_143 = arith.constant 1.000000e+02 : f32
    %228 = vector.broadcast %cst_143 : f32 to vector<8x3xf32>
    %229 = arith.divf %227, %228 : vector<8x3xf32>
    %230 = arith.addf %1, %229 : vector<8x3xf32>
    %c0_144 = arith.constant 0 : index
    %c0_145 = arith.constant 0 : index
    %231 = vector.load %arg24[%c0_144, %c0_145] : memref<8x3xf32, #tpu.memory_space<vmem>>, vector<8x3xf32>
    tpu.vector_store %arg24[%c0_144, %c0_145], %230 {strides = array<i32>} : memref<8x3xf32, #tpu.memory_space<vmem>>, vector<8x3xf32>,
    return
  }
}

</mosaic_0001>

<llo_original>
// kernel: tpu_custom_call.1
$region0: #{tpu_custom_call.1}
  #allocation0 [shape = 'u32[]', space=smem, size = 0x4, offset = 0x4, fixed_abs, tag = 'smem constant byte address 0x4 - core index']
  #allocation1 [shape = 'u32[144,128]{1,0:T(1,128)}', space=vmem, size = 0x12000, scoped, tag = 'internal scratch']
  %s0 = inlined_call_operand.hbm [shape: f32[8,32], index: 0, kind: input, shape index: {}]
  %s1 = inlined_call_operand.vmem [shape: f32[8,3], index: 1, kind: input, shape index: {}]
  %s2 = inlined_call_operand.vmem [shape: f32[56,1], index: 2, kind: input, shape index: {}]
  %s3 = inlined_call_operand.vmem [shape: bf16[56,8], index: 3, kind: input, shape index: {}]
  %s4 = inlined_call_operand.vmem [shape: bf16[56,8], index: 4, kind: input, shape index: {}]
  %s5 = inlined_call_operand.vmem [shape: f32[2,32,32], index: 5, kind: input, shape index: {}]
  %s6 = inlined_call_operand.vmem [shape: f32[2,32,32], index: 6, kind: input, shape index: {}]
  %s7 = inlined_call_operand.hbm [shape: f32[2,2,32], index: 7, kind: input, shape index: {}]
  %s8 = inlined_call_operand.vmem [shape: f32[2,1,32], index: 8, kind: input, shape index: {}]
  %s9 = inlined_call_operand.vmem [shape: f32[2,32,32], index: 9, kind: input, shape index: {}]
  %s10 = inlined_call_operand.hbm [shape: f32[2,1,32], index: 10, kind: input, shape index: {}]
  %s11 = inlined_call_operand.hbm [shape: f32[2,32,32], index: 11, kind: input, shape index: {}]
  %s12 = inlined_call_operand.hbm [shape: f32[2,32,32], index: 12, kind: input, shape index: {}]
  %s13 = inlined_call_operand.hbm [shape: f32[2,1,32], index: 13, kind: input, shape index: {}]
  %s14 = inlined_call_operand.hbm [shape: f32[2,32,32], index: 14, kind: input, shape index: {}]
  %s15 = inlined_call_operand.hbm [shape: f32[2,1,32], index: 15, kind: input, shape index: {}]
  %s16 = inlined_call_operand.vmem [shape: f32[32,32], index: 16, kind: input, shape index: {}]
  %s17 = inlined_call_operand.hbm [shape: f32[32,32], index: 17, kind: input, shape index: {}]
  %s18 = inlined_call_operand.vmem [shape: f32[2,32], index: 18, kind: input, shape index: {}]
  %s19 = inlined_call_operand.vmem [shape: f32[1,32], index: 19, kind: input, shape index: {}]
  %s20 = inlined_call_operand.hbm [shape: f32[32,32], index: 20, kind: input, shape index: {}]
  %s21 = inlined_call_operand.vmem [shape: f32[1,32], index: 21, kind: input, shape index: {}]
  %s22 = inlined_call_operand.vmem [shape: f32[32,1], index: 22, kind: input, shape index: {}]
  %s23 = inlined_call_operand.hbm [shape: f32[8,32], index: 23, kind: output, shape index: {0}]
  %s24 = inlined_call_operand.vmem [shape: f32[8,3], index: 24, kind: output, shape index: {1}]
  %25 = xla_tuple %s23, %s24
  %s26 = sld [smem:[#allocation0]]
  $region150: #{tpu_custom_call.1} parent=0
    _
  %s28 = ssub.s32 1, %s26
  %s29 = scalar_select 0, %s28, %s26
  $region1: #{tpu_custom_call.1} parent=0
    #allocation2 [shape = 'u8[4096]{0}', space=vmem, size = 0x1000, scoped, tag = 'input window, operand 0, single buffered']
    #allocation3 [shape = 's32[1]{0}', space=sflag, size = 0x4, scoped, tag = 'scoped memory for tpu_custom_call.1']
    #allocation4 [shape = 's32[1]{0}', space=sflag, size = 0x4, scoped, tag = 'scoped memory for tpu_custom_call.1']
    #allocation5 [shape = 'u8[2048]{0}', space=vmem, size = 0x800, scoped, tag = 'input window, operand 7, single buffered']
    #allocation6 [shape = 's32[1]{0}', space=sflag, size = 0x4, scoped, tag = 'scoped memory for tpu_custom_call.1']
    #allocation7 [shape = 'u8[1024]{0}', space=vmem, size = 0x400, scoped, tag = 'input window, operand 10, single buffered']
    #allocation8 [shape = 'u8[32768]{0}', space=vmem, size = 0x8000, scoped, tag = 'input window, operand 11, single buffered']
    #allocation9 [shape = 's32[1]{0}', space=sflag, size = 0x4, scoped, tag = 'scoped memory for tpu_custom_call.1']
    #allocation10 [shape = 'u8[32768]{0}', space=vmem, size = 0x8000, scoped, tag = 'input window, operand 12, single buffered']
    #allocation11 [shape = 'u8[1024]{0}', space=vmem, size = 0x400, scoped, tag = 'input window, operand 13, single buffered']
    #allocation12 [shape = 's32[1]{0}', space=sflag, size = 0x4, scoped, tag = 'scoped memory for tpu_custom_call.1']
    #allocation13 [shape = 'u8[32768]{0}', space=vmem, size = 0x8000, scoped, tag = 'input window, operand 14, single buffered']
    #allocation14 [shape = 'u8[1024]{0}', space=vmem, size = 0x400, scoped, tag = 'input window, operand 15, single buffered']
    #allocation15 [shape = 's32[1]{0}', space=sflag, size = 0x4, scoped, tag = 'scoped memory for tpu_custom_call.1']
    #allocation16 [shape = 'u8[16384]{0}', space=vmem, size = 0x4000, scoped, tag = 'input window, operand 17, single buffered']
    #allocation17 [shape = 'u8[16384]{0}', space=vmem, size = 0x4000, scoped, tag = 'input window, operand 20, single buffered']
    #allocation18 [shape = 's32[1]{0}', space=sflag, size = 0x4, scoped, tag = 'scoped memory for tpu_custom_call.1']
    #allocation19 [shape = 'u8[4096]{0}', space=vmem, size = 0x1000, scoped, tag = 'output window, operand 0, single buffered']
    %30 = vsyncpa [#allocation3], 0
    %31 = vsyncpa [#allocation6], 0
    %32 = vsyncpa [#allocation9], 0
    %33 = vsyncpa [#allocation12], 0
    %34 = vsyncpa [#allocation15], 0
    %35 = vsyncpa [#allocation18], 0
    %36 = vsyncpa [#allocation4], 0
    // Predicated region
    $region2: #{tpu_custom_call.1} parent=1 // pred_check
      _
    $region3: #{tpu_custom_call.1} parent=1 // pred_check_branch
      %38 = sbr.rel (0) target = $region5
    $region4: #{tpu_custom_call.1} parent=1 // pred_region
      %s40 = ssub.s32 128, 128
      %41 = vsyncadd [#allocation3], %s40
      %s43 = sshll.u32 [#allocation2], 4
      %s44 = int_to_ptr.vmem [resolvable:$true] %s43
      %46 = dma.hbm_to_vmem [thread:$0]  %s0, 128, %s44, [#allocation3]
    $region5: #{tpu_custom_call.1} parent=1 // pred_fallthru
      _
    // Predicated region
    $region6: #{tpu_custom_call.1} parent=1 // pred_check
      _
    $region7: #{tpu_custom_call.1} parent=1 // pred_check_branch
      %48 = sbr.rel (0) target = $region9
    $region8: #{tpu_custom_call.1} parent=1 // pred_region
      _
    $region9: #{tpu_custom_call.1} parent=1 // pred_fallthru
      _
    // Predicated region
    $region10: #{tpu_custom_call.1} parent=1 // pred_check
      _
    $region11: #{tpu_custom_call.1} parent=1 // pred_check_branch
      %50 = sbr.rel (0) target = $region13
    $region12: #{tpu_custom_call.1} parent=1 // pred_region
      _
    $region13: #{tpu_custom_call.1} parent=1 // pred_fallthru
      _
    // Predicated region
    $region14: #{tpu_custom_call.1} parent=1 // pred_check
      _
    $region15: #{tpu_custom_call.1} parent=1 // pred_check_branch
      %52 = sbr.rel (0) target = $region17
    $region16: #{tpu_custom_call.1} parent=1 // pred_region
      _
    $region17: #{tpu_custom_call.1} parent=1 // pred_fallthru
      _
    // Predicated region
    $region18: #{tpu_custom_call.1} parent=1 // pred_check
      _
    $region19: #{tpu_custom_call.1} parent=1 // pred_check_branch
      %54 = sbr.rel (0) target = $region21
    $region20: #{tpu_custom_call.1} parent=1 // pred_region
      _
    $region21: #{tpu_custom_call.1} parent=1 // pred_fallthru
      _
    // Predicated region
    $region22: #{tpu_custom_call.1} parent=1 // pred_check
      _
    $region23: #{tpu_custom_call.1} parent=1 // pred_check_branch
      %56 = sbr.rel (0) target = $region25
    $region24: #{tpu_custom_call.1} parent=1 // pred_region
      _
    $region25: #{tpu_custom_call.1} parent=1 // pred_fallthru
      _
    // Predicated region
    $region26: #{tpu_custom_call.1} parent=1 // pred_check
      _
    $region27: #{tpu_custom_call.1} parent=1 // pred_check_branch
      %58 = sbr.rel (0) target = $region29
    $region28: #{tpu_custom_call.1} parent=1 // pred_region
      _
    $region29: #{tpu_custom_call.1} parent=1 // pred_fallthru
      _
    // Predicated region
    $region30: #{tpu_custom_call.1} parent=1 // pred_check
      _
    $region31: #{tpu_custom_call.1} parent=1 // pred_check_branch
      %60 = sbr.rel (0) target = $region33
    $region32: #{tpu_custom_call.1} parent=1 // pred_region
      %s62 = ssub.s32 64, 64
      %63 = vsyncadd [#allocation6], %s62
      %s64 = sshll.u32 [#allocation5], 4
      %s65 = int_to_ptr.vmem [resolvable:$true] %s64
      %70 = dma.hbm_to_vmem [thread:$0]  %s7, 64, %s65, [#allocation6], 32, 32, 2
    $region33: #{tpu_custom_call.1} parent=1 // pred_fallthru
      _
    // Predicated region
    $region34: #{tpu_custom_call.1} parent=1 // pred_check
      _
    $region35: #{tpu_custom_call.1} parent=1 // pred_check_branch
      %72 = sbr.rel (0) target = $region37
    $region36: #{tpu_custom_call.1} parent=1 // pred_region
      _
    $region37: #{tpu_custom_call.1} parent=1 // pred_fallthru
      _
    // Predicated region
    $region38: #{tpu_custom_call.1} parent=1 // pred_check
      _
    $region39: #{tpu_custom_call.1} parent=1 // pred_check_branch
      %74 = sbr.rel (0) target = $region41
    $region40: #{tpu_custom_call.1} parent=1 // pred_region
      _
    $region41: #{tpu_custom_call.1} parent=1 // pred_fallthru
      _
    // Predicated region
    $region42: #{tpu_custom_call.1} parent=1 // pred_check
      _
    $region43: #{tpu_custom_call.1} parent=1 // pred_check_branch
      %76 = sbr.rel (0) target = $region45
    $region44: #{tpu_custom_call.1} parent=1 // pred_region
      %s78 = ssub.s32 32, 32
      %79 = vsyncadd [#allocation6], %s78
      %s80 = sshll.u32 [#allocation7], 4
      %s81 = int_to_ptr.vmem [resolvable:$true] %s80
      %86 = dma.hbm_to_vmem [thread:$0]  %s10, 32, %s81, [#allocation6], 16, 16, 1
    $region45: #{tpu_custom_call.1} parent=1 // pred_fallthru
      _
    // Predicated region
    $region46: #{tpu_custom_call.1} parent=1 // pred_check
      _
    $region47: #{tpu_custom_call.1} parent=1 // pred_check_branch
      %88 = sbr.rel (0) target = $region49
    $region48: #{tpu_custom_call.1} parent=1 // pred_region
      %s90 = ssub.s32 1024, 1024
      %91 = vsyncadd [#allocation9], %s90
      %s92 = sshll.u32 [#allocation8], 4
      %s93 = int_to_ptr.vmem [resolvable:$true] %s92
      %98 = dma.hbm_to_vmem [thread:$0]  %s11, 1024, %s93, [#allocation9], 128, 128, 8
    $region49: #{tpu_custom_call.1} parent=1 // pred_fallthru
      _
    // Predicated region
    $region50: #{tpu_custom_call.1} parent=1 // pred_check
      _
    $region51: #{tpu_custom_call.1} parent=1 // pred_check_branch
      %100 = sbr.rel (0) target = $region53
    $region52: #{tpu_custom_call.1} parent=1 // pred_region
      %s102 = ssub.s32 1024, 1024
      %103 = vsyncadd [#allocation9], %s102
      %s104 = sshll.u32 [#allocation10], 4
      %s105 = int_to_ptr.vmem [resolvable:$true] %s104
      %110 = dma.hbm_to_vmem [thread:$0]  %s12, 1024, %s105, [#allocation9], 128, 128, 8
    $region53: #{tpu_custom_call.1} parent=1 // pred_fallthru
      _
    // Predicated region
    $region54: #{tpu_custom_call.1} parent=1 // pred_check
      _
    $region55: #{tpu_custom_call.1} parent=1 // pred_check_branch
      %112 = sbr.rel (0) target = $region57
    $region56: #{tpu_custom_call.1} parent=1 // pred_region
      %s114 = ssub.s32 32, 32
      %115 = vsyncadd [#allocation12], %s114
      %s116 = sshll.u32 [#allocation11], 4
      %s117 = int_to_ptr.vmem [resolvable:$true] %s116
      %122 = dma.hbm_to_vmem [thread:$0]  %s13, 32, %s117, [#allocation12], 16, 16, 1
    $region57: #{tpu_custom_call.1} parent=1 // pred_fallthru
      _
    // Predicated region
    $region58: #{tpu_custom_call.1} parent=1 // pred_check
      _
    $region59: #{tpu_custom_call.1} parent=1 // pred_check_branch
      %124 = sbr.rel (0) target = $region61
    $region60: #{tpu_custom_call.1} parent=1 // pred_region
      %s126 = ssub.s32 1024, 1024
      %127 = vsyncadd [#allocation12], %s126
      %s128 = sshll.u32 [#allocation13], 4
      %s129 = int_to_ptr.vmem [resolvable:$true] %s128
      %134 = dma.hbm_to_vmem [thread:$0]  %s14, 1024, %s129, [#allocation12], 128, 128, 8
    $region61: #{tpu_custom_call.1} parent=1 // pred_fallthru
      _
    // Predicated region
    $region62: #{tpu_custom_call.1} parent=1 // pred_check
      _
    $region63: #{tpu_custom_call.1} parent=1 // pred_check_branch
      %136 = sbr.rel (0) target = $region65
    $region64: #{tpu_custom_call.1} parent=1 // pred_region
      %s138 = ssub.s32 32, 32
      %139 = vsyncadd [#allocation15], %s138
      %s140 = sshll.u32 [#allocation14], 4
      %s141 = int_to_ptr.vmem [resolvable:$true] %s140
      %146 = dma.hbm_to_vmem [thread:$0]  %s15, 32, %s141, [#allocation15], 16, 16, 1
    $region65: #{tpu_custom_call.1} parent=1 // pred_fallthru
      _
    // Predicated region
    $region66: #{tpu_custom_call.1} parent=1 // pred_check
      _
    $region67: #{tpu_custom_call.1} parent=1 // pred_check_branch
      %148 = sbr.rel (0) target = $region69
    $region68: #{tpu_custom_call.1} parent=1 // pred_region
      _
    $region69: #{tpu_custom_call.1} parent=1 // pred_fallthru
      _
    // Predicated region
    $region70: #{tpu_custom_call.1} parent=1 // pred_check
      _
    $region71: #{tpu_custom_call.1} parent=1 // pred_check_branch
      %150 = sbr.rel (0) target = $region73
    $region72: #{tpu_custom_call.1} parent=1 // pred_region
      %s152 = ssub.s32 512, 512
      %153 = vsyncadd [#allocation15], %s152
      %s154 = sshll.u32 [#allocation16], 4
      %s155 = int_to_ptr.vmem [resolvable:$true] %s154
      %160 = dma.hbm_to_vmem [thread:$0]  %s17, 512, %s155, [#allocation15], 128, 128, 8
    $region73: #{tpu_custom_call.1} parent=1 // pred_fallthru
      _
    // Predicated region
    $region74: #{tpu_custom_call.1} parent=1 // pred_check
      _
    $region75: #{tpu_custom_call.1} parent=1 // pred_check_branch
      %162 = sbr.rel (0) target = $region77
    $region76: #{tpu_custom_call.1} parent=1 // pred_region
      _
    $region77: #{tpu_custom_call.1} parent=1 // pred_fallthru
      _
    // Predicated region
    $region78: #{tpu_custom_call.1} parent=1 // pred_check
      _
    $region79: #{tpu_custom_call.1} parent=1 // pred_check_branch
      %164 = sbr.rel (0) target = $region81
    $region80: #{tpu_custom_call.1} parent=1 // pred_region
      _
    $region81: #{tpu_custom_call.1} parent=1 // pred_fallthru
      _
    // Predicated region
    $region82: #{tpu_custom_call.1} parent=1 // pred_check
      _
    $region83: #{tpu_custom_call.1} parent=1 // pred_check_branch
      %166 = sbr.rel (0) target = $region85
    $region84: #{tpu_custom_call.1} parent=1 // pred_region
      %s168 = ssub.s32 512, 512
      %169 = vsyncadd [#allocation18], %s168
      %s170 = sshll.u32 [#allocation17], 4
      %s171 = int_to_ptr.vmem [resolvable:$true] %s170
      %176 = dma.hbm_to_vmem [thread:$0]  %s20, 512, %s171, [#allocation18], 128, 128, 8
    $region85: #{tpu_custom_call.1} parent=1 // pred_fallthru
      _
    // Predicated region
    $region86: #{tpu_custom_call.1} parent=1 // pred_check
      _
    $region87: #{tpu_custom_call.1} parent=1 // pred_check_branch
      %178 = sbr.rel (0) target = $region89
    $region88: #{tpu_custom_call.1} parent=1 // pred_region
      _
    $region89: #{tpu_custom_call.1} parent=1 // pred_fallthru
      _
    // Predicated region
    $region90: #{tpu_custom_call.1} parent=1 // pred_check
      _
    $region91: #{tpu_custom_call.1} parent=1 // pred_check_branch
      %180 = sbr.rel (0) target = $region93
    $region92: #{tpu_custom_call.1} parent=1 // pred_region
      _
    $region93: #{tpu_custom_call.1} parent=1 // pred_fallthru
      _
    // Predicated region
    $region94: #{tpu_custom_call.1} parent=1 // pred_check
      _
    $region95: #{tpu_custom_call.1} parent=1 // pred_check_branch
      %182 = sbr.rel (0) target = $region97
    $region96: #{tpu_custom_call.1} parent=1 // pred_region
      %183 = dma.done [#allocation3], 128
    $region97: #{tpu_custom_call.1} parent=1 // pred_fallthru
      _
    // Predicated region
    $region98: #{tpu_custom_call.1} parent=1 // pred_check
      _
    $region99: #{tpu_custom_call.1} parent=1 // pred_check_branch
      %185 = sbr.rel (0) target = $region101
    $region100: #{tpu_custom_call.1} parent=1 // pred_region
      %186 = dma.done [#allocation6], 64
    $region101: #{tpu_custom_call.1} parent=1 // pred_fallthru
      _
    // Predicated region
    $region102: #{tpu_custom_call.1} parent=1 // pred_check
      _
    $region103: #{tpu_custom_call.1} parent=1 // pred_check_branch
      %188 = sbr.rel (0) target = $region105
    $region104: #{tpu_custom_call.1} parent=1 // pred_region
      %189 = dma.done [#allocation6], 32
    $region105: #{tpu_custom_call.1} parent=1 // pred_fallthru
      _
    // Predicated region
    $region106: #{tpu_custom_call.1} parent=1 // pred_check
      _
    $region107: #{tpu_custom_call.1} parent=1 // pred_check_branch
      %191 = sbr.rel (0) target = $region109
    $region108: #{tpu_custom_call.1} parent=1 // pred_region
      %192 = dma.done [#allocation9], 1024
    $region109: #{tpu_custom_call.1} parent=1 // pred_fallthru
      _
    // Predicated region
    $region110: #{tpu_custom_call.1} parent=1 // pred_check
      _
    $region111: #{tpu_custom_call.1} parent=1 // pred_check_branch
      %194 = sbr.rel (0) target = $region113
    $region112: #{tpu_custom_call.1} parent=1 // pred_region
      %195 = dma.done [#allocation9], 1024
    $region113: #{tpu_custom_call.1} parent=1 // pred_fallthru
      _
    // Predicated region
    $region114: #{tpu_custom_call.1} parent=1 // pred_check
      _
    $region115: #{tpu_custom_call.1} parent=1 // pred_check_branch
      %197 = sbr.rel (0) target = $region117
    $region116: #{tpu_custom_call.1} parent=1 // pred_region
      %198 = dma.done [#allocation12], 32
    $region117: #{tpu_custom_call.1} parent=1 // pred_fallthru
      _
    // Predicated region
    $region118: #{tpu_custom_call.1} parent=1 // pred_check
      _
    $region119: #{tpu_custom_call.1} parent=1 // pred_check_branch
      %200 = sbr.rel (0) target = $region121
    $region120: #{tpu_custom_call.1} parent=1 // pred_region
      %201 = dma.done [#allocation12], 1024
    $region121: #{tpu_custom_call.1} parent=1 // pred_fallthru
      _
    // Predicated region
    $region122: #{tpu_custom_call.1} parent=1 // pred_check
      _
    $region123: #{tpu_custom_call.1} parent=1 // pred_check_branch
      %203 = sbr.rel (0) target = $region125
    $region124: #{tpu_custom_call.1} parent=1 // pred_region
      %204 = dma.done [#allocation15], 32
    $region125: #{tpu_custom_call.1} parent=1 // pred_fallthru
      _
    // Predicated region
    $region126: #{tpu_custom_call.1} parent=1 // pred_check
      _
    $region127: #{tpu_custom_call.1} parent=1 // pred_check_branch
      %206 = sbr.rel (0) target = $region129
    $region128: #{tpu_custom_call.1} parent=1 // pred_region
      %207 = dma.done [#allocation15], 512
    $region129: #{tpu_custom_call.1} parent=1 // pred_fallthru
      _
    // Predicated region
    $region130: #{tpu_custom_call.1} parent=1 // pred_check
      _
    $region131: #{tpu_custom_call.1} parent=1 // pred_check_branch
      %209 = sbr.rel (0) target = $region133
    $region132: #{tpu_custom_call.1} parent=1 // pred_region
      %210 = dma.done [#allocation18], 512
    $region133: #{tpu_custom_call.1} parent=1 // pred_fallthru
      _
    %v211 = vld [vmem:[#allocation2] sm:$0xff]
    %v212 = vld [vmem:[%s1] sm:$0xff]
    %v213 = vld [vmem:[%s2] sm:$0xff]
    %v214 = vld [vmem:[%s2 + $0x8] sm:$0xff]
    %v215 = vld [vmem:[%s2 + $0x10] sm:$0xff]
    %v216 = vld [vmem:[%s2 + $0x18] sm:$0xff]
    %v217 = vld [vmem:[%s2 + $0x20] sm:$0xff]
    %v218 = vld [vmem:[%s2 + $0x28] sm:$0xff]
    %v219 = vld [vmem:[%s2 + $0x30] sm:$0xff]
    %v220 = vld [vmem:[%s3] sm:$0xf]
    %v221 = vld [vmem:[%s3 + $0x4] sm:$0xf]
    %v222 = vld [vmem:[%s3 + $0x8] sm:$0xf]
    %v223 = vld [vmem:[%s3 + $0xc] sm:$0xf]
    %v224 = vld [vmem:[%s3 + $0x10] sm:$0xf]
    %v225 = vld [vmem:[%s3 + $0x14] sm:$0xf]
    %v226 = vld [vmem:[%s3 + $0x18] sm:$0xf]
    %v227 = vunpack.c.l.bf16 %v220
    %v228 = vunpack.c.l.bf16 %v221
    %v229 = vunpack.c.l.bf16 %v222
    %v230 = vunpack.c.l.bf16 %v223
    %v231 = vunpack.c.l.bf16 %v224
    %v232 = vunpack.c.l.bf16 %v225
    %v233 = vunpack.c.l.bf16 %v226
    %v234 = vld [vmem:[%s4] sm:$0xf]
    %v235 = vld [vmem:[%s4 + $0x4] sm:$0xf]
    %v236 = vld [vmem:[%s4 + $0x8] sm:$0xf]
    %v237 = vld [vmem:[%s4 + $0xc] sm:$0xf]
    %v238 = vld [vmem:[%s4 + $0x10] sm:$0xf]
    %v239 = vld [vmem:[%s4 + $0x14] sm:$0xf]
    %v240 = vld [vmem:[%s4 + $0x18] sm:$0xf]
    %v241 = vunpack.c.l.bf16 %v234
    %v242 = vunpack.c.l.bf16 %v235
    %v243 = vunpack.c.l.bf16 %v236
    %v244 = vunpack.c.l.bf16 %v237
    %v245 = vunpack.c.l.bf16 %v238
    %v246 = vunpack.c.l.bf16 %v239
    %v247 = vunpack.c.l.bf16 %v240
    %v248 = vld [vmem:[%s5] sm:$0xff]
    %v249 = vld [vmem:[%s5 + $0x8] sm:$0xff]
    %v250 = vld [vmem:[%s5 + $0x10] sm:$0xff]
    %v251 = vld [vmem:[%s5 + $0x18] sm:$0xff]
    %vm252 = vcmask 261120
    %v254 = vsel %vm252, %v211, 0
    %256 = vmatprep.subr.mxu0 0.0
    %257 = vmatpush1.msra.mxu0 %v248
    %258 = vmatprep.subr.mxu0 0.0
    %259 = vmatpush1.msra.mxu0 %v249
    %260 = vmatprep.subr.mxu0 0.0
    %261 = vmatpush1.msra.mxu0 %v250
    %262 = vmatprep.subr.mxu0 0.0
    %263 = vmatpush1.msra.mxu0 %v251
    %264 = vmatprep.subr.mxu0 0.0
    %265 = vmatpush1.msra.mxu0 0.0
    %266 = vmatprep.subr.mxu0 0.0
    %267 = vmatpush1.msra.mxu0 0.0
    %268 = vmatprep.subr.mxu0 0.0
    %269 = vmatpush1.msra.mxu0 0.0
    %270 = vmatprep.subr.mxu0 0.0
    %271 = vmatpush1.msra.mxu0 0.0
    %272 = vmatprep.subr.mxu0 0.0
    %273 = vmatpush1.msra.mxu0 0.0
    %274 = vmatprep.subr.mxu0 0.0
    %275 = vmatpush1.msra.mxu0 0.0
    %276 = vmatprep.subr.mxu0 0.0
    %277 = vmatpush1.msra.mxu0 0.0
    %278 = vmatprep.subr.mxu0 0.0
    %279 = vmatpush1.msra.mxu0 0.0
    %280 = vmatprep.subr.mxu0 0.0
    %281 = vmatpush1.msra.mxu0 0.0
    %282 = vmatprep.subr.mxu0 0.0
    %283 = vmatpush1.msra.mxu0 0.0
    %284 = vmatprep.subr.mxu0 0.0
    %285 = vmatpush1.msra.mxu0 0.0
    %286 = vmatprep.subr.mxu0 0.0
    %287 = vmatpush1.msra.mxu0 0.0
    %288 = vmatprep.subr.mxu0 0.0
    %289 = vmatpush1.msra.mxu0 0.0
    %290 = vmatprep.subr.mxu0 0.0
    %291 = vmatpush1.msra.mxu0 0.0
    %292 = vmatprep.subr.mxu0 0.0
    %293 = vmatpush1.msra.mxu0 0.0
    %294 = vmatprep.subr.mxu0 0.0
    %295 = vmatpush1.msra.mxu0 0.0
    %296 = vmatprep.subr.mxu0 0.0
    %297 = vmatpush1.msra.mxu0 0.0
    %298 = vmatprep.subr.mxu0 0.0
    %299 = vmatpush1.msra.mxu0 0.0
    %300 = vmatprep.subr.mxu0 0.0
    %301 = vmatpush1.msra.mxu0 0.0
    %302 = vmatprep.subr.mxu0 0.0
    %303 = vmatpush1.msra.mxu0 0.0
    %304 = vmatprep.subr.mxu0 0.0
    %305 = vmatpush1.msra.mxu0 0.0
    %306 = vmatprep.subr.mxu0 0.0
    %307 = vmatpush1.msra.mxu0 0.0
    %308 = vmatprep.subr.mxu0 0.0
    %309 = vmatpush1.msra.mxu0 0.0
    %310 = vmatprep.subr.mxu0 0.0
    %311 = vmatpush1.msra.mxu0 0.0
    %312 = vmatprep.subr.mxu0 0.0
    %313 = vmatpush1.msra.mxu0 0.0
    %314 = vmatprep.subr.mxu0 0.0
    %315 = vmatpush1.msra.mxu0 0.0
    %316 = vmatprep.subr.mxu0 0.0
    %317 = vmatpush1.msra.mxu0 0.0
    %318 = vmatprep.subr.mxu0 0.0
    %319 = vmatpush1.msra.mxu0 0.0
    %320 = vmatprep.mubr.f32.mxu0 0.0
    %321 = vmatmul.mubr.f32.gmra.mrb[0].mxu0 %v254
    %v322 = vpop.f32.mrb[0].mxu0
    %v323 = vadd.f32 0.0, %v322
    %v324 = vpop.f32.mrb[0].mxu0
    %325 = vdwg.mxu0
    %v326 = vld [vmem:[%s6] sm:$0xff]
    %v327 = vld [vmem:[%s6 + $0x8] sm:$0xff]
    %v328 = vld [vmem:[%s6 + $0x10] sm:$0xff]
    %v329 = vld [vmem:[%s6 + $0x18] sm:$0xff]
    %330 = vmatprep.subr.mxu0 0.0
    %331 = vmatpush1.msra.mxu0 %v326
    %332 = vmatprep.subr.mxu0 0.0
    %333 = vmatpush1.msra.mxu0 %v327
    %334 = vmatprep.subr.mxu0 0.0
    %335 = vmatpush1.msra.mxu0 %v328
    %336 = vmatprep.subr.mxu0 0.0
    %337 = vmatpush1.msra.mxu0 %v329
    %338 = vmatprep.subr.mxu0 0.0
    %339 = vmatpush1.msra.mxu0 0.0
    %340 = vmatprep.subr.mxu0 0.0
    %341 = vmatpush1.msra.mxu0 0.0
    %342 = vmatprep.subr.mxu0 0.0
    %343 = vmatpush1.msra.mxu0 0.0
    %344 = vmatprep.subr.mxu0 0.0
    %345 = vmatpush1.msra.mxu0 0.0
    %346 = vmatprep.subr.mxu0 0.0
    %347 = vmatpush1.msra.mxu0 0.0
    %348 = vmatprep.subr.mxu0 0.0
    %349 = vmatpush1.msra.mxu0 0.0
    %350 = vmatprep.subr.mxu0 0.0
    %351 = vmatpush1.msra.mxu0 0.0
    %352 = vmatprep.subr.mxu0 0.0
    %353 = vmatpush1.msra.mxu0 0.0
    %354 = vmatprep.subr.mxu0 0.0
    %355 = vmatpush1.msra.mxu0 0.0
    %356 = vmatprep.subr.mxu0 0.0
    %357 = vmatpush1.msra.mxu0 0.0
    %358 = vmatprep.subr.mxu0 0.0
    %359 = vmatpush1.msra.mxu0 0.0
    %360 = vmatprep.subr.mxu0 0.0
    %361 = vmatpush1.msra.mxu0 0.0
    %362 = vmatprep.subr.mxu0 0.0
    %363 = vmatpush1.msra.mxu0 0.0
    %364 = vmatprep.subr.mxu0 0.0
    %365 = vmatpush1.msra.mxu0 0.0
    %366 = vmatprep.subr.mxu0 0.0
    %367 = vmatpush1.msra.mxu0 0.0
    %368 = vmatprep.subr.mxu0 0.0
    %369 = vmatpush1.msra.mxu0 0.0
    %370 = vmatprep.subr.mxu0 0.0
    %371 = vmatpush1.msra.mxu0 0.0
    %372 = vmatprep.subr.mxu0 0.0
    %373 = vmatpush1.msra.mxu0 0.0
    %374 = vmatprep.subr.mxu0 0.0
    %375 = vmatpush1.msra.mxu0 0.0
    %376 = vmatprep.subr.mxu0 0.0
    %377 = vmatpush1.msra.mxu0 0.0
    %378 = vmatprep.subr.mxu0 0.0
    %379 = vmatpush1.msra.mxu0 0.0
    %380 = vmatprep.subr.mxu0 0.0
    %381 = vmatpush1.msra.mxu0 0.0
    %382 = vmatprep.subr.mxu0 0.0
    %383 = vmatpush1.msra.mxu0 0.0
    %384 = vmatprep.subr.mxu0 0.0
    %385 = vmatpush1.msra.mxu0 0.0
    %386 = vmatprep.subr.mxu0 0.0
    %387 = vmatpush1.msra.mxu0 0.0
    %388 = vmatprep.subr.mxu0 0.0
    %389 = vmatpush1.msra.mxu0 0.0
    %390 = vmatprep.subr.mxu0 0.0
    %391 = vmatpush1.msra.mxu0 0.0
    %392 = vmatprep.subr.mxu0 0.0
    %393 = vmatpush1.msra.mxu0 0.0
    %394 = vmatprep.mubr.f32.mxu0 0.0
    %395 = vmatmul.mubr.f32.gmra.mrb[0].mxu0 %v254
    %v396 = vpop.f32.mrb[0].mxu0
    %v397 = vadd.f32 0.0, %v396
    %v398 = vpop.f32.mrb[0].mxu0
    %399 = vdwg.mxu0
    %401 = vrot.lane.b32.xlu0 %v212, 32
    %v402 = vpop.permute.xlu0 %401
    %v404 = vsel %vm252, %v323, %v402
    %v405 = vsel %vm252, %v397, %v402
    %vm406 = vcmask 64512
    %v408 = vsel %vm406, %v227, 0
    %v411 = vsel %vm406, %v228, 0
    %v414 = vsel %vm406, %v229, 0
    %v417 = vsel %vm406, %v230, 0
    %v420 = vsel %vm406, %v231, 0
    %v423 = vsel %vm406, %v232, 0
    %v426 = vsel %vm406, %v233, 0
    %428 = vmatprep.subr.mxu0 0.0
    %429 = vmatpush1.msra.mxu0 %v404
    %430 = vmatprep.subr.mxu0 0.0
    %431 = vmatpush1.msra.mxu0 0.0
    %432 = vmatprep.subr.mxu0 0.0
    %433 = vmatpush1.msra.mxu0 0.0
    %434 = vmatprep.subr.mxu0 0.0
    %435 = vmatpush1.msra.mxu0 0.0
    %436 = vmatprep.subr.mxu0 0.0
    %437 = vmatpush1.msra.mxu0 0.0
    %438 = vmatprep.subr.mxu0 0.0
    %439 = vmatpush1.msra.mxu0 0.0
    %440 = vmatprep.subr.mxu0 0.0
    %441 = vmatpush1.msra.mxu0 0.0
    %442 = vmatprep.subr.mxu0 0.0
    %443 = vmatpush1.msra.mxu0 0.0
    %444 = vmatprep.subr.mxu0 0.0
    %445 = vmatpush1.msra.mxu0 0.0
    %446 = vmatprep.subr.mxu0 0.0
    %447 = vmatpush1.msra.mxu0 0.0
    %448 = vmatprep.subr.mxu0 0.0
    %449 = vmatpush1.msra.mxu0 0.0
    %450 = vmatprep.subr.mxu0 0.0
    %451 = vmatpush1.msra.mxu0 0.0
    %452 = vmatprep.subr.mxu0 0.0
    %453 = vmatpush1.msra.mxu0 0.0
    %454 = vmatprep.subr.mxu0 0.0
    %455 = vmatpush1.msra.mxu0 0.0
    %456 = vmatprep.subr.mxu0 0.0
    %457 = vmatpush1.msra.mxu0 0.0
    %458 = vmatprep.subr.mxu0 0.0
    %459 = vmatpush1.msra.mxu0 0.0
    %460 = vmatprep.subr.mxu0 0.0
    %461 = vmatpush1.msra.mxu0 0.0
    %462 = vmatprep.subr.mxu0 0.0
    %463 = vmatpush1.msra.mxu0 0.0
    %464 = vmatprep.subr.mxu0 0.0
    %465 = vmatpush1.msra.mxu0 0.0
    %466 = vmatprep.subr.mxu0 0.0
    %467 = vmatpush1.msra.mxu0 0.0
    %468 = vmatprep.subr.mxu0 0.0
    %469 = vmatpush1.msra.mxu0 0.0
    %470 = vmatprep.subr.mxu0 0.0
    %471 = vmatpush1.msra.mxu0 0.0
    %472 = vmatprep.subr.mxu0 0.0
    %473 = vmatpush1.msra.mxu0 0.0
    %474 = vmatprep.subr.mxu0 0.0
    %475 = vmatpush1.msra.mxu0 0.0
    %476 = vmatprep.subr.mxu0 0.0
    %477 = vmatpush1.msra.mxu0 0.0
    %478 = vmatprep.subr.mxu0 0.0
    %479 = vmatpush1.msra.mxu0 0.0
    %480 = vmatprep.subr.mxu0 0.0
    %481 = vmatpush1.msra.mxu0 0.0
    %482 = vmatprep.subr.mxu0 0.0
    %483 = vmatpush1.msra.mxu0 0.0
    %484 = vmatprep.subr.mxu0 0.0
    %485 = vmatpush1.msra.mxu0 0.0
    %486 = vmatprep.subr.mxu0 0.0
    %487 = vmatpush1.msra.mxu0 0.0
    %488 = vmatprep.subr.mxu0 0.0
    %489 = vmatpush1.msra.mxu0 0.0
    %490 = vmatprep.subr.mxu0 0.0
    %491 = vmatpush1.msra.mxu0 0.0
    %492 = vmatprep.mubr.f32.mxu0 0.0
    %493 = vmatmul.mubr.f32.gmra.mrb[0].mxu0 %v408
    %v494 = vpop.f32.mrb[0].mxu0
    %v495 = vadd.f32 0.0, %v494
    %v496 = vpop.f32.mrb[0].mxu0
    %497 = vmatprep.mubr.f32.mxu0 0.0
    %498 = vmatmul.mubr.f32.gmra.mrb[0].mxu0 %v411
    %v499 = vpop.f32.mrb[0].mxu0
    %v500 = vadd.f32 0.0, %v499
    %v501 = vpop.f32.mrb[0].mxu0
    %502 = vmatprep.mubr.f32.mxu0 0.0
    %503 = vmatmul.mubr.f32.gmra.mrb[0].mxu0 %v414
    %v504 = vpop.f32.mrb[0].mxu0
    %v505 = vadd.f32 0.0, %v504
    %v506 = vpop.f32.mrb[0].mxu0
    %507 = vmatprep.mubr.f32.mxu0 0.0
    %508 = vmatmul.mubr.f32.gmra.mrb[0].mxu0 %v417
    %v509 = vpop.f32.mrb[0].mxu0
    %v510 = vadd.f32 0.0, %v509
    %v511 = vpop.f32.mrb[0].mxu0
    %512 = vmatprep.mubr.f32.mxu0 0.0
    %513 = vmatmul.mubr.f32.gmra.mrb[0].mxu0 %v420
    %v514 = vpop.f32.mrb[0].mxu0
    %v515 = vadd.f32 0.0, %v514
    %v516 = vpop.f32.mrb[0].mxu0
    %517 = vmatprep.mubr.f32.mxu0 0.0
    %518 = vmatmul.mubr.f32.gmra.mrb[0].mxu0 %v423
    %v519 = vpop.f32.mrb[0].mxu0
    %v520 = vadd.f32 0.0, %v519
    %v521 = vpop.f32.mrb[0].mxu0
    %522 = vmatprep.mubr.f32.mxu0 0.0
    %523 = vmatmul.mubr.f32.gmra.mrb[0].mxu0 %v426
    %v524 = vpop.f32.mrb[0].mxu0
    %v525 = vadd.f32 0.0, %v524
    %v526 = vpop.f32.mrb[0].mxu0
    %527 = vdwg.mxu0
    %v529 = vsel %vm406, %v241, 0
    %v532 = vsel %vm406, %v242, 0
    %v535 = vsel %vm406, %v243, 0
    %v538 = vsel %vm406, %v244, 0
    %v541 = vsel %vm406, %v245, 0
    %v544 = vsel %vm406, %v246, 0
    %v547 = vsel %vm406, %v247, 0
    %549 = vmatprep.subr.mxu0 0.0
    %550 = vmatpush1.msra.mxu0 %v405
    %551 = vmatprep.subr.mxu0 0.0
    %552 = vmatpush1.msra.mxu0 0.0
    %553 = vmatprep.subr.mxu0 0.0
    %554 = vmatpush1.msra.mxu0 0.0
    %555 = vmatprep.subr.mxu0 0.0
    %556 = vmatpush1.msra.mxu0 0.0
    %557 = vmatprep.subr.mxu0 0.0
    %558 = vmatpush1.msra.mxu0 0.0
    %559 = vmatprep.subr.mxu0 0.0
    %560 = vmatpush1.msra.mxu0 0.0
    %561 = vmatprep.subr.mxu0 0.0
    %562 = vmatpush1.msra.mxu0 0.0
    %563 = vmatprep.subr.mxu0 0.0
    %564 = vmatpush1.msra.mxu0 0.0
    %565 = vmatprep.subr.mxu0 0.0
    %566 = vmatpush1.msra.mxu0 0.0
    %567 = vmatprep.subr.mxu0 0.0
    %568 = vmatpush1.msra.mxu0 0.0
    %569 = vmatprep.subr.mxu0 0.0
    %570 = vmatpush1.msra.mxu0 0.0
    %571 = vmatprep.subr.mxu0 0.0
    %572 = vmatpush1.msra.mxu0 0.0
    %573 = vmatprep.subr.mxu0 0.0
    %574 = vmatpush1.msra.mxu0 0.0
    %575 = vmatprep.subr.mxu0 0.0
    %576 = vmatpush1.msra.mxu0 0.0
    %577 = vmatprep.subr.mxu0 0.0
    %578 = vmatpush1.msra.mxu0 0.0
    %579 = vmatprep.subr.mxu0 0.0
    %580 = vmatpush1.msra.mxu0 0.0
    %581 = vmatprep.subr.mxu0 0.0
    %582 = vmatpush1.msra.mxu0 0.0
    %583 = vmatprep.subr.mxu0 0.0
    %584 = vmatpush1.msra.mxu0 0.0
    %585 = vmatprep.subr.mxu0 0.0
    %586 = vmatpush1.msra.mxu0 0.0
    %587 = vmatprep.subr.mxu0 0.0
    %588 = vmatpush1.msra.mxu0 0.0
    %589 = vmatprep.subr.mxu0 0.0
    %590 = vmatpush1.msra.mxu0 0.0
    %591 = vmatprep.subr.mxu0 0.0
    %592 = vmatpush1.msra.mxu0 0.0
    %593 = vmatprep.subr.mxu0 0.0
    %594 = vmatpush1.msra.mxu0 0.0
    %595 = vmatprep.subr.mxu0 0.0
    %596 = vmatpush1.msra.mxu0 0.0
    %597 = vmatprep.subr.mxu0 0.0
    %598 = vmatpush1.msra.mxu0 0.0
    %599 = vmatprep.subr.mxu0 0.0
    %600 = vmatpush1.msra.mxu0 0.0
    %601 = vmatprep.subr.mxu0 0.0
    %602 = vmatpush1.msra.mxu0 0.0
    %603 = vmatprep.subr.mxu0 0.0
    %604 = vmatpush1.msra.mxu0 0.0
    %605 = vmatprep.subr.mxu0 0.0
    %606 = vmatpush1.msra.mxu0 0.0
    %607 = vmatprep.subr.mxu0 0.0
    %608 = vmatpush1.msra.mxu0 0.0
    %609 = vmatprep.subr.mxu0 0.0
    %610 = vmatpush1.msra.mxu0 0.0
    %611 = vmatprep.subr.mxu0 0.0
    %612 = vmatpush1.msra.mxu0 0.0
    %613 = vmatprep.mubr.f32.mxu0 0.0
    %614 = vmatmul.mubr.f32.gmra.mrb[0].mxu0 %v529
    %v615 = vpop.f32.mrb[0].mxu0
    %v616 = vadd.f32 0.0, %v615
    %v617 = vpop.f32.mrb[0].mxu0
    %618 = vmatprep.mubr.f32.mxu0 0.0
    %619 = vmatmul.mubr.f32.gmra.mrb[0].mxu0 %v532
    %v620 = vpop.f32.mrb[0].mxu0
    %v621 = vadd.f32 0.0, %v620
    %v622 = vpop.f32.mrb[0].mxu0
    %623 = vmatprep.mubr.f32.mxu0 0.0
    %624 = vmatmul.mubr.f32.gmra.mrb[0].mxu0 %v535
    %v625 = vpop.f32.mrb[0].mxu0
    %v626 = vadd.f32 0.0, %v625
    %v627 = vpop.f32.mrb[0].mxu0
    %628 = vmatprep.mubr.f32.mxu0 0.0
    %629 = vmatmul.mubr.f32.gmra.mrb[0].mxu0 %v538
    %v630 = vpop.f32.mrb[0].mxu0
    %v631 = vadd.f32 0.0, %v630
    %v632 = vpop.f32.mrb[0].mxu0
    %633 = vmatprep.mubr.f32.mxu0 0.0
    %634 = vmatmul.mubr.f32.gmra.mrb[0].mxu0 %v541
    %v635 = vpop.f32.mrb[0].mxu0
    %v636 = vadd.f32 0.0, %v635
    %v637 = vpop.f32.mrb[0].mxu0
    %638 = vmatprep.mubr.f32.mxu0 0.0
    %639 = vmatmul.mubr.f32.gmra.mrb[0].mxu0 %v544
    %v640 = vpop.f32.mrb[0].mxu0
    %v641 = vadd.f32 0.0, %v640
    %v642 = vpop.f32.mrb[0].mxu0
    %643 = vmatprep.mubr.f32.mxu0 0.0
    %644 = vmatmul.mubr.f32.gmra.mrb[0].mxu0 %v547
    %v645 = vpop.f32.mrb[0].mxu0
    %v646 = vadd.f32 0.0, %v645
    %v647 = vpop.f32.mrb[0].mxu0
    %648 = vdwg.mxu0
    %v649 = vsub.f32 %v495, %v616
    %v650 = vsub.f32 %v500, %v621
    %v651 = vsub.f32 %v505, %v626
    %v652 = vsub.f32 %v510, %v631
    %v653 = vsub.f32 %v515, %v636
    %v654 = vsub.f32 %v520, %v641
    %v655 = vsub.f32 %v525, %v646
    %v656 = vmul.f32 %v649, %v649
    %v657 = vmul.f32 %v650, %v650
    %v658 = vmul.f32 %v651, %v651
    %v659 = vmul.f32 %v652, %v652
    %v660 = vmul.f32 %v653, %v653
    %v661 = vmul.f32 %v654, %v654
    %v662 = vmul.f32 %v655, %v655
    %670 = vrot.lane.b32.xlu0 %v656, 96
    %v671 = vpop.permute.xlu0 %670
    %672 = vrot.lane.b32.xlu0 %v657, 96
    %v673 = vpop.permute.xlu0 %672
    %674 = vrot.lane.b32.xlu0 %v658, 96
    %v675 = vpop.permute.xlu0 %674
    %676 = vrot.lane.b32.xlu0 %v659, 96
    %v677 = vpop.permute.xlu0 %676
    %678 = vrot.lane.b32.xlu0 %v660, 96
    %v679 = vpop.permute.xlu0 %678
    %680 = vrot.lane.b32.xlu0 %v661, 96
    %v681 = vpop.permute.xlu0 %680
    %682 = vrot.lane.b32.xlu0 %v662, 96
    %v683 = vpop.permute.xlu0 %682
    %vm691 = vcmask 23552
    %v692 = vsel %vm691, %v671, 0.0
    %693 = vadd.xlane.f32.xlu0 %v692
    %v694 = vpop.xlane.xlu0 %693
    %v695 = vsel %vm691, %v673, 0.0
    %696 = vadd.xlane.f32.xlu0 %v695
    %v697 = vpop.xlane.xlu0 %696
    %v698 = vsel %vm691, %v675, 0.0
    %699 = vadd.xlane.f32.xlu0 %v698
    %v700 = vpop.xlane.xlu0 %699
    %v701 = vsel %vm691, %v677, 0.0
    %702 = vadd.xlane.f32.xlu0 %v701
    %v703 = vpop.xlane.xlu0 %702
    %v704 = vsel %vm691, %v679, 0.0
    %705 = vadd.xlane.f32.xlu0 %v704
    %v706 = vpop.xlane.xlu0 %705
    %v707 = vsel %vm691, %v681, 0.0
    %708 = vadd.xlane.f32.xlu0 %v707
    %v709 = vpop.xlane.xlu0 %708
    %v710 = vsel %vm691, %v683, 0.0
    %711 = vadd.xlane.f32.xlu0 %v710
    %v712 = vpop.xlane.xlu0 %711
    %v713 = vadd.f32 %v694, 1e-08
    %v714 = vadd.f32 %v697, 1e-08
    %v715 = vadd.f32 %v700, 1e-08
    %v716 = vadd.f32 %v703, 1e-08
    %v717 = vadd.f32 %v706, 1e-08
    %v718 = vadd.f32 %v709, 1e-08
    %v719 = vadd.f32 %v712, 1e-08
    %v720 = vrsqrt.pop %v713
    %v721 = vmul.f32 %v713, %v720
    %vm722 = vcmp.eq.f32.partialorder %v713, inf
    %v723 = vsel %vm722, %v713, %v721
    %vm724 = vcmp.eq.f32.partialorder %v713, 0.0
    %v725 = vand.u32 %v713, 2147483648
    %v726 = vsel %vm724, %v725, %v723
    %v727 = vrsqrt.pop %v714
    %v728 = vmul.f32 %v714, %v727
    %vm729 = vcmp.eq.f32.partialorder %v714, inf
    %v730 = vsel %vm729, %v714, %v728
    %vm731 = vcmp.eq.f32.partialorder %v714, 0.0
    %v732 = vand.u32 %v714, 2147483648
    %v733 = vsel %vm731, %v732, %v730
    %v734 = vrsqrt.pop %v715
    %v735 = vmul.f32 %v715, %v734
    %vm736 = vcmp.eq.f32.partialorder %v715, inf
    %v737 = vsel %vm736, %v715, %v735
    %vm738 = vcmp.eq.f32.partialorder %v715, 0.0
    %v739 = vand.u32 %v715, 2147483648
    %v740 = vsel %vm738, %v739, %v737
    %v741 = vrsqrt.pop %v716
    %v742 = vmul.f32 %v716, %v741
    %vm743 = vcmp.eq.f32.partialorder %v716, inf
    %v744 = vsel %vm743, %v716, %v742
    %vm745 = vcmp.eq.f32.partialorder %v716, 0.0
    %v746 = vand.u32 %v716, 2147483648
    %v747 = vsel %vm745, %v746, %v744
    %v748 = vrsqrt.pop %v717
    %v749 = vmul.f32 %v717, %v748
    %vm750 = vcmp.eq.f32.partialorder %v717, inf
    %v751 = vsel %vm750, %v717, %v749
    %vm752 = vcmp.eq.f32.partialorder %v717, 0.0
    %v753 = vand.u32 %v717, 2147483648
    %v754 = vsel %vm752, %v753, %v751
    %v755 = vrsqrt.pop %v718
    %v756 = vmul.f32 %v718, %v755
    %vm757 = vcmp.eq.f32.partialorder %v718, inf
    %v758 = vsel %vm757, %v718, %v756
    %vm759 = vcmp.eq.f32.partialorder %v718, 0.0
    %v760 = vand.u32 %v718, 2147483648
    %v761 = vsel %vm759, %v760, %v758
    %v762 = vrsqrt.pop %v719
    %v763 = vmul.f32 %v719, %v762
    %vm764 = vcmp.eq.f32.partialorder %v719, inf
    %v765 = vsel %vm764, %v719, %v763
    %vm766 = vcmp.eq.f32.partialorder %v719, 0.0
    %v767 = vand.u32 %v719, 2147483648
    %v768 = vsel %vm766, %v767, %v765
    %v769 = vadd.f32 %v726, 1.0
    %v770 = vadd.f32 %v733, 1.0
    %v771 = vadd.f32 %v740, 1.0
    %v772 = vadd.f32 %v747, 1.0
    %v773 = vadd.f32 %v754, 1.0
    %v774 = vadd.f32 %v761, 1.0
    %v775 = vadd.f32 %v768, 1.0
    %v776 = vrcp.pop %v769
    %v777 = vmul.f32 %v649, %v776
    %v778 = vrcp.pop %v770
    %v779 = vmul.f32 %v650, %v778
    %v780 = vrcp.pop %v771
    %v781 = vmul.f32 %v651, %v780
    %v782 = vrcp.pop %v772
    %v783 = vmul.f32 %v652, %v782
    %v784 = vrcp.pop %v773
    %v785 = vmul.f32 %v653, %v784
    %v786 = vrcp.pop %v774
    %v787 = vmul.f32 %v654, %v786
    %v788 = vrcp.pop %v775
    %v789 = vmul.f32 %v655, %v788
    %v790 = vld [vmem:[#allocation5] sm:$0x3]
    %v791 = vadd.f32 %v495, %v616
    %v792 = vadd.f32 %v500, %v621
    %v793 = vadd.f32 %v505, %v626
    %v794 = vadd.f32 %v510, %v631
    %v795 = vadd.f32 %v515, %v636
    %v796 = vadd.f32 %v520, %v641
    %v797 = vadd.f32 %v525, %v646
    %v798 = vlaneseq
    %v799 = vshrl.u32 %v798, 7
    %v800 = vsub.s32 0, %v799
    %v801 = vrot.slane %v790, %v800
    %v802 = vmul.f32 %v694, %v801
    %v803 = vmul.f32 %v697, %v801
    %v804 = vmul.f32 %v700, %v801
    %v805 = vmul.f32 %v703, %v801
    %v806 = vmul.f32 %v706, %v801
    %v807 = vmul.f32 %v709, %v801
    %v808 = vmul.f32 %v712, %v801
    %v809 = vadd.f32 %v791, %v802
    %v810 = vadd.f32 %v792, %v803
    %v811 = vadd.f32 %v793, %v804
    %v812 = vadd.f32 %v794, %v805
    %v813 = vadd.f32 %v795, %v806
    %v814 = vadd.f32 %v796, %v807
    %v815 = vadd.f32 %v797, %v808
    %817 = vset.pattern.permute.xlu0 0
    %818 = vperm.xlu0 %817, %v213
    %v819 = vpop.permute.xlu0 %818
    %822 = vset.pattern.permute.xlu0 0
    %823 = vperm.xlu0 %822, %v214
    %v824 = vpop.permute.xlu0 %823
    %827 = vset.pattern.permute.xlu0 0
    %828 = vperm.xlu0 %827, %v215
    %v829 = vpop.permute.xlu0 %828
    %832 = vset.pattern.permute.xlu0 0
    %833 = vperm.xlu0 %832, %v216
    %v834 = vpop.permute.xlu0 %833
    %837 = vset.pattern.permute.xlu0 0
    %838 = vperm.xlu0 %837, %v217
    %v839 = vpop.permute.xlu0 %838
    %842 = vset.pattern.permute.xlu0 0
    %843 = vperm.xlu0 %842, %v218
    %v844 = vpop.permute.xlu0 %843
    %847 = vset.pattern.permute.xlu0 0
    %848 = vperm.xlu0 %847, %v219
    %v849 = vpop.permute.xlu0 %848
    %v851 = vlaneseq
    %v852 = vshrl.u32 %v851, 7
    %v853 = vsub.s32 1, %v852
    %v854 = vrot.slane %v790, %v853
    %v855 = vmul.f32 %v819, %v854
    %v856 = vmul.f32 %v824, %v854
    %v857 = vmul.f32 %v829, %v854
    %v858 = vmul.f32 %v834, %v854
    %v859 = vmul.f32 %v839, %v854
    %v860 = vmul.f32 %v844, %v854
    %v861 = vmul.f32 %v849, %v854
    %v862 = vadd.f32 %v809, %v855
    %v863 = vadd.f32 %v810, %v856
    %v864 = vadd.f32 %v811, %v857
    %v865 = vadd.f32 %v812, %v858
    %v866 = vadd.f32 %v813, %v859
    %v867 = vadd.f32 %v814, %v860
    %v868 = vadd.f32 %v815, %v861
    %v869 = vld [vmem:[%s8] sm:$0x1]
    %v871 = vlaneseq
    %v872 = vshrl.u32 %v871, 7
    %v873 = vsub.s32 0, %v872
    %v874 = vrot.slane %v869, %v873
    %v876 = vadd.f32 %v862, %v874
    %v877 = vadd.f32 %v863, %v874
    %v878 = vadd.f32 %v864, %v874
    %v879 = vadd.f32 %v865, %v874
    %v880 = vadd.f32 %v866, %v874
    %v881 = vadd.f32 %v867, %v874
    %v882 = vadd.f32 %v868, %v874
    %v883 = vsub.f32 0.0, %v876
    %v884 = vsub.f32 0.0, %v877
    %v885 = vsub.f32 0.0, %v878
    %v886 = vsub.f32 0.0, %v879
    %v887 = vsub.f32 0.0, %v880
    %v888 = vsub.f32 0.0, %v881
    %v889 = vsub.f32 0.0, %v882
    %v890 = vmul.f32 %v883, 1.442695
    %v891 = vpow.pop %v890
    %v892 = vmul.f32 %v884, 1.442695
    %v893 = vpow.pop %v892
    %v894 = vmul.f32 %v885, 1.442695
    %v895 = vpow.pop %v894
    %v896 = vmul.f32 %v886, 1.442695
    %v897 = vpow.pop %v896
    %v898 = vmul.f32 %v887, 1.442695
    %v899 = vpow.pop %v898
    %v900 = vmul.f32 %v888, 1.442695
    %v901 = vpow.pop %v900
    %v902 = vmul.f32 %v889, 1.442695
    %v903 = vpow.pop %v902
    %v904 = vadd.f32 %v891, 1.0
    %v905 = vadd.f32 %v893, 1.0
    %v906 = vadd.f32 %v895, 1.0
    %v907 = vadd.f32 %v897, 1.0
    %v908 = vadd.f32 %v899, 1.0
    %v909 = vadd.f32 %v901, 1.0
    %v910 = vadd.f32 %v903, 1.0
    %v911 = vrcp.pop %v904
    %v912 = vmul.f32 1.0, %v911
    %v913 = vrcp.pop %v905
    %v914 = vmul.f32 1.0, %v913
    %v915 = vrcp.pop %v906
    %v916 = vmul.f32 1.0, %v915
    %v917 = vrcp.pop %v907
    %v918 = vmul.f32 1.0, %v917
    %v919 = vrcp.pop %v908
    %v920 = vmul.f32 1.0, %v919
    %v921 = vrcp.pop %v909
    %v922 = vmul.f32 1.0, %v921
    %v923 = vrcp.pop %v910
    %v924 = vmul.f32 1.0, %v923
    %v925 = vmul.f32 %v876, %v912
    %v926 = vmul.f32 %v877, %v914
    %v927 = vmul.f32 %v878, %v916
    %v928 = vmul.f32 %v879, %v918
    %v929 = vmul.f32 %v880, %v920
    %v930 = vmul.f32 %v881, %v922
    %v931 = vmul.f32 %v882, %v924
    %v932 = vld [vmem:[%s9] sm:$0xff]
    %v933 = vld [vmem:[%s9 + $0x8] sm:$0xff]
    %v934 = vld [vmem:[%s9 + $0x10] sm:$0xff]
    %v935 = vld [vmem:[%s9 + $0x18] sm:$0xff]
    %v936 = vld [vmem:[#allocation7] sm:$0x1]
    %v938 = vlaneseq
    %v939 = vshrl.u32 %v938, 7
    %v940 = vsub.s32 0, %v939
    %v941 = vrot.slane %v936, %v940
    %v944 = vsel %vm252, %v925, 0
    %v947 = vsel %vm252, %v926, 0
    %v950 = vsel %vm252, %v927, 0
    %v953 = vsel %vm252, %v928, 0
    %v956 = vsel %vm252, %v929, 0
    %v959 = vsel %vm252, %v930, 0
    %v962 = vsel %vm252, %v931, 0
    %964 = vmatprep.subr.mxu0 0.0
    %965 = vmatpush1.msra.mxu0 %v932
    %966 = vmatprep.subr.mxu0 0.0
    %967 = vmatpush1.msra.mxu0 %v933
    %968 = vmatprep.subr.mxu0 0.0
    %969 = vmatpush1.msra.mxu0 %v934
    %970 = vmatprep.subr.mxu0 0.0
    %971 = vmatpush1.msra.mxu0 %v935
    %972 = vmatprep.subr.mxu0 0.0
    %973 = vmatpush1.msra.mxu0 0.0
    %974 = vmatprep.subr.mxu0 0.0
    %975 = vmatpush1.msra.mxu0 0.0
    %976 = vmatprep.subr.mxu0 0.0
    %977 = vmatpush1.msra.mxu0 0.0
    %978 = vmatprep.subr.mxu0 0.0
    %979 = vmatpush1.msra.mxu0 0.0
    %980 = vmatprep.subr.mxu0 0.0
    %981 = vmatpush1.msra.mxu0 0.0
    %982 = vmatprep.subr.mxu0 0.0
    %983 = vmatpush1.msra.mxu0 0.0
    %984 = vmatprep.subr.mxu0 0.0
    %985 = vmatpush1.msra.mxu0 0.0
    %986 = vmatprep.subr.mxu0 0.0
    %987 = vmatpush1.msra.mxu0 0.0
    %988 = vmatprep.subr.mxu0 0.0
    %989 = vmatpush1.msra.mxu0 0.0
    %990 = vmatprep.subr.mxu0 0.0
    %991 = vmatpush1.msra.mxu0 0.0
    %992 = vmatprep.subr.mxu0 0.0
    %993 = vmatpush1.msra.mxu0 0.0
    %994 = vmatprep.subr.mxu0 0.0
    %995 = vmatpush1.msra.mxu0 0.0
    %996 = vmatprep.subr.mxu0 0.0
    %997 = vmatpush1.msra.mxu0 0.0
    %998 = vmatprep.subr.mxu0 0.0
    %999 = vmatpush1.msra.mxu0 0.0
    %1000 = vmatprep.subr.mxu0 0.0
    %1001 = vmatpush1.msra.mxu0 0.0
    %1002 = vmatprep.subr.mxu0 0.0
    %1003 = vmatpush1.msra.mxu0 0.0
    %1004 = vmatprep.subr.mxu0 0.0
    %1005 = vmatpush1.msra.mxu0 0.0
    %1006 = vmatprep.subr.mxu0 0.0
    %1007 = vmatpush1.msra.mxu0 0.0
    %1008 = vmatprep.subr.mxu0 0.0
    %1009 = vmatpush1.msra.mxu0 0.0
    %1010 = vmatprep.subr.mxu0 0.0
    %1011 = vmatpush1.msra.mxu0 0.0
    %1012 = vmatprep.subr.mxu0 0.0
    %1013 = vmatpush1.msra.mxu0 0.0
    %1014 = vmatprep.subr.mxu0 0.0
    %1015 = vmatpush1.msra.mxu0 0.0
    %1016 = vmatprep.subr.mxu0 0.0
    %1017 = vmatpush1.msra.mxu0 0.0
    %1018 = vmatprep.subr.mxu0 0.0
    %1019 = vmatpush1.msra.mxu0 0.0
    %1020 = vmatprep.subr.mxu0 0.0
    %1021 = vmatpush1.msra.mxu0 0.0
    %1022 = vmatprep.subr.mxu0 0.0
    %1023 = vmatpush1.msra.mxu0 0.0
    %1024 = vmatprep.subr.mxu0 0.0
    %1025 = vmatpush1.msra.mxu0 0.0
    %1026 = vmatprep.subr.mxu0 0.0
    %1027 = vmatpush1.msra.mxu0 0.0
    %1028 = vmatprep.mubr.f32.mxu0 0.0
    %1029 = vmatmul.mubr.f32.gmra.mrb[0].mxu0 %v944
    %v1030 = vpop.f32.mrb[0].mxu0
    %v1031 = vadd.f32 %v941, %v1030
    %v1032 = vpop.f32.mrb[0].mxu0
    %1033 = vmatprep.mubr.f32.mxu0 0.0
    %1034 = vmatmul.mubr.f32.gmra.mrb[0].mxu0 %v947
    %v1035 = vpop.f32.mrb[0].mxu0
    %v1036 = vadd.f32 %v941, %v1035
    %v1037 = vpop.f32.mrb[0].mxu0
    %1038 = vmatprep.mubr.f32.mxu0 0.0
    %1039 = vmatmul.mubr.f32.gmra.mrb[0].mxu0 %v950
    %v1040 = vpop.f32.mrb[0].mxu0
    %v1041 = vadd.f32 %v941, %v1040
    %v1042 = vpop.f32.mrb[0].mxu0
    %1043 = vmatprep.mubr.f32.mxu0 0.0
    %1044 = vmatmul.mubr.f32.gmra.mrb[0].mxu0 %v953
    %v1045 = vpop.f32.mrb[0].mxu0
    %v1046 = vadd.f32 %v941, %v1045
    %v1047 = vpop.f32.mrb[0].mxu0
    %1048 = vmatprep.mubr.f32.mxu0 0.0
    %1049 = vmatmul.mubr.f32.gmra.mrb[0].mxu0 %v956
    %v1050 = vpop.f32.mrb[0].mxu0
    %v1051 = vadd.f32 %v941, %v1050
    %v1052 = vpop.f32.mrb[0].mxu0
    %1053 = vmatprep.mubr.f32.mxu0 0.0
    %1054 = vmatmul.mubr.f32.gmra.mrb[0].mxu0 %v959
    %v1055 = vpop.f32.mrb[0].mxu0
    %v1056 = vadd.f32 %v941, %v1055
    %v1057 = vpop.f32.mrb[0].mxu0
    %1058 = vmatprep.mubr.f32.mxu0 0.0
    %1059 = vmatmul.mubr.f32.gmra.mrb[0].mxu0 %v962
    %v1060 = vpop.f32.mrb[0].mxu0
    %v1061 = vadd.f32 %v941, %v1060
    %v1062 = vpop.f32.mrb[0].mxu0
    %1063 = vdwg.mxu0
    %v1064 = vsub.f32 0.0, %v1031
    %v1065 = vsub.f32 0.0, %v1036
    %v1066 = vsub.f32 0.0, %v1041
    %v1067 = vsub.f32 0.0, %v1046
    %v1068 = vsub.f32 0.0, %v1051
    %v1069 = vsub.f32 0.0, %v1056
    %v1070 = vsub.f32 0.0, %v1061
    %v1071 = vmul.f32 %v1064, 1.442695
    %v1072 = vpow.pop %v1071
    %v1073 = vmul.f32 %v1065, 1.442695
    %v1074 = vpow.pop %v1073
    %v1075 = vmul.f32 %v1066, 1.442695
    %v1076 = vpow.pop %v1075
    %v1077 = vmul.f32 %v1067, 1.442695
    %v1078 = vpow.pop %v1077
    %v1079 = vmul.f32 %v1068, 1.442695
    %v1080 = vpow.pop %v1079
    %v1081 = vmul.f32 %v1069, 1.442695
    %v1082 = vpow.pop %v1081
    %v1083 = vmul.f32 %v1070, 1.442695
    %v1084 = vpow.pop %v1083
    %v1085 = vadd.f32 %v1072, 1.0
    %v1086 = vadd.f32 %v1074, 1.0
    %v1087 = vadd.f32 %v1076, 1.0
    %v1088 = vadd.f32 %v1078, 1.0
    %v1089 = vadd.f32 %v1080, 1.0
    %v1090 = vadd.f32 %v1082, 1.0
    %v1091 = vadd.f32 %v1084, 1.0
    %v1092 = vrcp.pop %v1085
    %v1093 = vmul.f32 1.0, %v1092
    %v1094 = vrcp.pop %v1086
    %v1095 = vmul.f32 1.0, %v1094
    %v1096 = vrcp.pop %v1087
    %v1097 = vmul.f32 1.0, %v1096
    %v1098 = vrcp.pop %v1088
    %v1099 = vmul.f32 1.0, %v1098
    %v1100 = vrcp.pop %v1089
    %v1101 = vmul.f32 1.0, %v1100
    %v1102 = vrcp.pop %v1090
    %v1103 = vmul.f32 1.0, %v1102
    %v1104 = vrcp.pop %v1091
    %v1105 = vmul.f32 1.0, %v1104
    %v1106 = vmul.f32 %v1031, %v1093
    %v1107 = vmul.f32 %v1036, %v1095
    %v1108 = vmul.f32 %v1041, %v1097
    %v1109 = vmul.f32 %v1046, %v1099
    %v1110 = vmul.f32 %v1051, %v1101
    %v1111 = vmul.f32 %v1056, %v1103
    %v1112 = vmul.f32 %v1061, %v1105
    %1113 = vxpose.xlu0.b32.start [1/16] %v227, 128
    %1114 = vxpose.xlu0.b32.cont [2/16] %v228, 128
    %1115 = vxpose.xlu0.b32.cont [3/16] %v229, 128
    %1116 = vxpose.xlu0.b32.cont [4/16] %v230, 128
    %1117 = vxpose.xlu0.b32.cont [5/16] %v231, 128
    %1118 = vxpose.xlu0.b32.cont [6/16] %v232, 128
    %1119 = vxpose.xlu0.b32.cont [7/16] %v233, 128
    %1120 = vxpose.xlu0.b32.cont [8/16] 0.0, 128
    %1121 = vxpose.xlu0.b32.cont [9/16] 0.0, 128
    %1122 = vxpose.xlu0.b32.cont [10/16] 0.0, 128
    %1123 = vxpose.xlu0.b32.cont [11/16] 0.0, 128
    %1124 = vxpose.xlu0.b32.cont [12/16] 0.0, 128
    %1125 = vxpose.xlu0.b32.cont [13/16] 0.0, 128
    %1126 = vxpose.xlu0.b32.cont [14/16] 0.0, 128
    %1127 = vxpose.xlu0.b32.cont [15/16] 0.0, 128
    %1128 = vxpose.xlu0.b32.end [16/16] 0.0, 128
    %v1129 = vpop.trf.xlu0
    %v1130 = vpop.trf.xlu0
    %v1131 = vpop.trf.xlu0
    %v1132 = vpop.trf.xlu0
    %v1133 = vpop.trf.xlu0
    %v1134 = vpop.trf.xlu0
    %v1135 = vpop.trf.xlu0
    %v1136 = vpop.trf.xlu0
    %v1137 = vpop.trf.xlu0
    %v1138 = vpop.trf.xlu0
    %v1139 = vpop.trf.xlu0
    %v1140 = vpop.trf.xlu0
    %v1141 = vpop.trf.xlu0
    %v1142 = vpop.trf.xlu0
    %v1143 = vpop.trf.xlu0
    %v1144 = vpop.trf.xlu0
    %vm1145 = vcmask 457728
    %v1147 = vsel %vm1145, %v1129, 0
    %1149 = vmatprep.subr.mxu0 0.0
    %1150 = vmatpush1.msra.mxu0 %v1106
    %1151 = vmatprep.subr.mxu0 0.0
    %1152 = vmatpush1.msra.mxu0 %v1107
    %1153 = vmatprep.subr.mxu0 0.0
    %1154 = vmatpush1.msra.mxu0 %v1108
    %1155 = vmatprep.subr.mxu0 0.0
    %1156 = vmatpush1.msra.mxu0 %v1109
    %1157 = vmatprep.subr.mxu0 0.0
    %1158 = vmatpush1.msra.mxu0 %v1110
    %1159 = vmatprep.subr.mxu0 0.0
    %1160 = vmatpush1.msra.mxu0 %v1111
    %1161 = vmatprep.subr.mxu0 0.0
    %1162 = vmatpush1.msra.mxu0 %v1112
    %1163 = vmatprep.subr.mxu0 0.0
    %1164 = vmatpush1.msra.mxu0 0.0
    %1165 = vmatprep.subr.mxu0 0.0
    %1166 = vmatpush1.msra.mxu0 0.0
    %1167 = vmatprep.subr.mxu0 0.0
    %1168 = vmatpush1.msra.mxu0 0.0
    %1169 = vmatprep.subr.mxu0 0.0
    %1170 = vmatpush1.msra.mxu0 0.0
    %1171 = vmatprep.subr.mxu0 0.0
    %1172 = vmatpush1.msra.mxu0 0.0
    %1173 = vmatprep.subr.mxu0 0.0
    %1174 = vmatpush1.msra.mxu0 0.0
    %1175 = vmatprep.subr.mxu0 0.0
    %1176 = vmatpush1.msra.mxu0 0.0
    %1177 = vmatprep.subr.mxu0 0.0
    %1178 = vmatpush1.msra.mxu0 0.0
    %1179 = vmatprep.subr.mxu0 0.0
    %1180 = vmatpush1.msra.mxu0 0.0
    %1181 = vmatprep.subr.mxu0 0.0
    %1182 = vmatpush1.msra.mxu0 0.0
    %1183 = vmatprep.subr.mxu0 0.0
    %1184 = vmatpush1.msra.mxu0 0.0
    %1185 = vmatprep.subr.mxu0 0.0
    %1186 = vmatpush1.msra.mxu0 0.0
    %1187 = vmatprep.subr.mxu0 0.0
    %1188 = vmatpush1.msra.mxu0 0.0
    %1189 = vmatprep.subr.mxu0 0.0
    %1190 = vmatpush1.msra.mxu0 0.0
    %1191 = vmatprep.subr.mxu0 0.0
    %1192 = vmatpush1.msra.mxu0 0.0
    %1193 = vmatprep.subr.mxu0 0.0
    %1194 = vmatpush1.msra.mxu0 0.0
    %1195 = vmatprep.subr.mxu0 0.0
    %1196 = vmatpush1.msra.mxu0 0.0
    %1197 = vmatprep.subr.mxu0 0.0
    %1198 = vmatpush1.msra.mxu0 0.0
    %1199 = vmatprep.subr.mxu0 0.0
    %1200 = vmatpush1.msra.mxu0 0.0
    %1201 = vmatprep.subr.mxu0 0.0
    %1202 = vmatpush1.msra.mxu0 0.0
    %1203 = vmatprep.subr.mxu0 0.0
    %1204 = vmatpush1.msra.mxu0 0.0
    %1205 = vmatprep.subr.mxu0 0.0
    %1206 = vmatpush1.msra.mxu0 0.0
    %1207 = vmatprep.subr.mxu0 0.0
    %1208 = vmatpush1.msra.mxu0 0.0
    %1209 = vmatprep.subr.mxu0 0.0
    %1210 = vmatpush1.msra.mxu0 0.0
    %1211 = vmatprep.subr.mxu0 0.0
    %1212 = vmatpush1.msra.mxu0 0.0
    %1213 = vmatprep.mubr.f32.mxu0 0.0
    %1214 = vmatmul.mubr.f32.gmra.mrb[0].mxu0 %v1147
    %v1215 = vpop.f32.mrb[0].mxu0
    %v1216 = vadd.f32 0.0, %v1215
    %v1217 = vpop.f32.mrb[0].mxu0
    %1218 = vdwg.mxu0
    %v1219 = vrcp.pop 100.0
    %v1220 = vmul.f32 %v1216, %v1219
    %v1221 = vld [vmem:[#allocation8] sm:$0xff]
    %v1222 = vld [vmem:[#allocation8 + $0x8] sm:$0xff]
    %v1223 = vld [vmem:[#allocation8 + $0x10] sm:$0xff]
    %v1224 = vld [vmem:[#allocation8 + $0x18] sm:$0xff]
    %v1225 = vld [vmem:[#allocation10] sm:$0xff]
    %v1226 = vld [vmem:[#allocation10 + $0x8] sm:$0xff]
    %v1227 = vld [vmem:[#allocation10 + $0x10] sm:$0xff]
    %v1228 = vld [vmem:[#allocation10 + $0x18] sm:$0xff]
    %v1230 = vsel %vm252, %v1220, 0
    %1232 = vmatprep.subr.mxu0 0.0
    %1233 = vmatpush1.msra.mxu0 %v1225
    %1234 = vmatprep.subr.mxu0 0.0
    %1235 = vmatpush1.msra.mxu0 %v1226
    %1236 = vmatprep.subr.mxu0 0.0
    %1237 = vmatpush1.msra.mxu0 %v1227
    %1238 = vmatprep.subr.mxu0 0.0
    %1239 = vmatpush1.msra.mxu0 %v1228
    %1240 = vmatprep.subr.mxu0 0.0
    %1241 = vmatpush1.msra.mxu0 0.0
    %1242 = vmatprep.subr.mxu0 0.0
    %1243 = vmatpush1.msra.mxu0 0.0
    %1244 = vmatprep.subr.mxu0 0.0
    %1245 = vmatpush1.msra.mxu0 0.0
    %1246 = vmatprep.subr.mxu0 0.0
    %1247 = vmatpush1.msra.mxu0 0.0
    %1248 = vmatprep.subr.mxu0 0.0
    %1249 = vmatpush1.msra.mxu0 0.0
    %1250 = vmatprep.subr.mxu0 0.0
    %1251 = vmatpush1.msra.mxu0 0.0
    %1252 = vmatprep.subr.mxu0 0.0
    %1253 = vmatpush1.msra.mxu0 0.0
    %1254 = vmatprep.subr.mxu0 0.0
    %1255 = vmatpush1.msra.mxu0 0.0
    %1256 = vmatprep.subr.mxu0 0.0
    %1257 = vmatpush1.msra.mxu0 0.0
    %1258 = vmatprep.subr.mxu0 0.0
    %1259 = vmatpush1.msra.mxu0 0.0
    %1260 = vmatprep.subr.mxu0 0.0
    %1261 = vmatpush1.msra.mxu0 0.0
    %1262 = vmatprep.subr.mxu0 0.0
    %1263 = vmatpush1.msra.mxu0 0.0
    %1264 = vmatprep.subr.mxu0 0.0
    %1265 = vmatpush1.msra.mxu0 0.0
    %1266 = vmatprep.subr.mxu0 0.0
    %1267 = vmatpush1.msra.mxu0 0.0
    %1268 = vmatprep.subr.mxu0 0.0
    %1269 = vmatpush1.msra.mxu0 0.0
    %1270 = vmatprep.subr.mxu0 0.0
    %1271 = vmatpush1.msra.mxu0 0.0
    %1272 = vmatprep.subr.mxu0 0.0
    %1273 = vmatpush1.msra.mxu0 0.0
    %1274 = vmatprep.subr.mxu0 0.0
    %1275 = vmatpush1.msra.mxu0 0.0
    %1276 = vmatprep.subr.mxu0 0.0
    %1277 = vmatpush1.msra.mxu0 0.0
    %1278 = vmatprep.subr.mxu0 0.0
    %1279 = vmatpush1.msra.mxu0 0.0
    %1280 = vmatprep.subr.mxu0 0.0
    %1281 = vmatpush1.msra.mxu0 0.0
    %1282 = vmatprep.subr.mxu0 0.0
    %1283 = vmatpush1.msra.mxu0 0.0
    %1284 = vmatprep.subr.mxu0 0.0
    %1285 = vmatpush1.msra.mxu0 0.0
    %1286 = vmatprep.subr.mxu0 0.0
    %1287 = vmatpush1.msra.mxu0 0.0
    %1288 = vmatprep.subr.mxu0 0.0
    %1289 = vmatpush1.msra.mxu0 0.0
    %1290 = vmatprep.subr.mxu0 0.0
    %1291 = vmatpush1.msra.mxu0 0.0
    %1292 = vmatprep.subr.mxu0 0.0
    %1293 = vmatpush1.msra.mxu0 0.0
    %1294 = vmatprep.subr.mxu0 0.0
    %1295 = vmatpush1.msra.mxu0 0.0
    %1296 = vmatprep.mubr.f32.mxu0 0.0
    %1297 = vmatmul.mubr.f32.gmra.mrb[0].mxu0 %v1230
    %v1298 = vpop.f32.mrb[0].mxu0
    %v1299 = vadd.f32 0.0, %v1298
    %v1300 = vpop.f32.mrb[0].mxu0
    %1301 = vdwg.mxu0
    %1302 = vmatprep.subr.mxu0 0.0
    %1303 = vmatpush1.msra.mxu0 %v1221
    %1304 = vmatprep.subr.mxu0 0.0
    %1305 = vmatpush1.msra.mxu0 %v1222
    %1306 = vmatprep.subr.mxu0 0.0
    %1307 = vmatpush1.msra.mxu0 %v1223
    %1308 = vmatprep.subr.mxu0 0.0
    %1309 = vmatpush1.msra.mxu0 %v1224
    %1310 = vmatprep.subr.mxu0 0.0
    %1311 = vmatpush1.msra.mxu0 0.0
    %1312 = vmatprep.subr.mxu0 0.0
    %1313 = vmatpush1.msra.mxu0 0.0
    %1314 = vmatprep.subr.mxu0 0.0
    %1315 = vmatpush1.msra.mxu0 0.0
    %1316 = vmatprep.subr.mxu0 0.0
    %1317 = vmatpush1.msra.mxu0 0.0
    %1318 = vmatprep.subr.mxu0 0.0
    %1319 = vmatpush1.msra.mxu0 0.0
    %1320 = vmatprep.subr.mxu0 0.0
    %1321 = vmatpush1.msra.mxu0 0.0
    %1322 = vmatprep.subr.mxu0 0.0
    %1323 = vmatpush1.msra.mxu0 0.0
    %1324 = vmatprep.subr.mxu0 0.0
    %1325 = vmatpush1.msra.mxu0 0.0
    %1326 = vmatprep.subr.mxu0 0.0
    %1327 = vmatpush1.msra.mxu0 0.0
    %1328 = vmatprep.subr.mxu0 0.0
    %1329 = vmatpush1.msra.mxu0 0.0
    %1330 = vmatprep.subr.mxu0 0.0
    %1331 = vmatpush1.msra.mxu0 0.0
    %1332 = vmatprep.subr.mxu0 0.0
    %1333 = vmatpush1.msra.mxu0 0.0
    %1334 = vmatprep.subr.mxu0 0.0
    %1335 = vmatpush1.msra.mxu0 0.0
    %1336 = vmatprep.subr.mxu0 0.0
    %1337 = vmatpush1.msra.mxu0 0.0
    %1338 = vmatprep.subr.mxu0 0.0
    %1339 = vmatpush1.msra.mxu0 0.0
    %1340 = vmatprep.subr.mxu0 0.0
    %1341 = vmatpush1.msra.mxu0 0.0
    %1342 = vmatprep.subr.mxu0 0.0
    %1343 = vmatpush1.msra.mxu0 0.0
    %1344 = vmatprep.subr.mxu0 0.0
    %1345 = vmatpush1.msra.mxu0 0.0
    %1346 = vmatprep.subr.mxu0 0.0
    %1347 = vmatpush1.msra.mxu0 0.0
    %1348 = vmatprep.subr.mxu0 0.0
    %1349 = vmatpush1.msra.mxu0 0.0
    %1350 = vmatprep.subr.mxu0 0.0
    %1351 = vmatpush1.msra.mxu0 0.0
    %1352 = vmatprep.subr.mxu0 0.0
    %1353 = vmatpush1.msra.mxu0 0.0
    %1354 = vmatprep.subr.mxu0 0.0
    %1355 = vmatpush1.msra.mxu0 0.0
    %1356 = vmatprep.subr.mxu0 0.0
    %1357 = vmatpush1.msra.mxu0 0.0
    %1358 = vmatprep.subr.mxu0 0.0
    %1359 = vmatpush1.msra.mxu0 0.0
    %1360 = vmatprep.subr.mxu0 0.0
    %1361 = vmatpush1.msra.mxu0 0.0
    %1362 = vmatprep.subr.mxu0 0.0
    %1363 = vmatpush1.msra.mxu0 0.0
    %1364 = vmatprep.subr.mxu0 0.0
    %1365 = vmatpush1.msra.mxu0 0.0
    %1366 = vmatprep.mubr.f32.mxu0 0.0
    %1367 = vmatmul.mubr.f32.gmra.mrb[0].mxu0 %v254
    %v1368 = vpop.f32.mrb[0].mxu0
    %v1369 = vadd.f32 %v1299, %v1368
    %v1370 = vpop.f32.mrb[0].mxu0
    %1371 = vdwg.mxu0
    %v1372 = vld [vmem:[#allocation11] sm:$0x1]
    %v1374 = vlaneseq
    %v1375 = vshrl.u32 %v1374, 7
    %v1376 = vsub.s32 0, %v1375
    %v1377 = vrot.slane %v1372, %v1376
    %v1379 = vadd.f32 %v1369, %v1377
    %v1380 = vsub.f32 0.0, %v1379
    %v1381 = vmul.f32 %v1380, 1.442695
    %v1382 = vpow.pop %v1381
    %v1383 = vadd.f32 %v1382, 1.0
    %v1384 = vrcp.pop %v1383
    %v1385 = vmul.f32 1.0, %v1384
    %v1386 = vmul.f32 %v1379, %v1385
    %v1387 = vld [vmem:[#allocation13] sm:$0xff]
    %v1388 = vld [vmem:[#allocation13 + $0x8] sm:$0xff]
    %v1389 = vld [vmem:[#allocation13 + $0x10] sm:$0xff]
    %v1390 = vld [vmem:[#allocation13 + $0x18] sm:$0xff]
    %v1391 = vld [vmem:[#allocation14] sm:$0x1]
    %v1393 = vlaneseq
    %v1394 = vshrl.u32 %v1393, 7
    %v1395 = vsub.s32 0, %v1394
    %v1396 = vrot.slane %v1391, %v1395
    %v1399 = vsel %vm252, %v1386, 0
    %1401 = vmatprep.subr.mxu0 0.0
    %1402 = vmatpush1.msra.mxu0 %v1387
    %1403 = vmatprep.subr.mxu0 0.0
    %1404 = vmatpush1.msra.mxu0 %v1388
    %1405 = vmatprep.subr.mxu0 0.0
    %1406 = vmatpush1.msra.mxu0 %v1389
    %1407 = vmatprep.subr.mxu0 0.0
    %1408 = vmatpush1.msra.mxu0 %v1390
    %1409 = vmatprep.subr.mxu0 0.0
    %1410 = vmatpush1.msra.mxu0 0.0
    %1411 = vmatprep.subr.mxu0 0.0
    %1412 = vmatpush1.msra.mxu0 0.0
    %1413 = vmatprep.subr.mxu0 0.0
    %1414 = vmatpush1.msra.mxu0 0.0
    %1415 = vmatprep.subr.mxu0 0.0
    %1416 = vmatpush1.msra.mxu0 0.0
    %1417 = vmatprep.subr.mxu0 0.0
    %1418 = vmatpush1.msra.mxu0 0.0
    %1419 = vmatprep.subr.mxu0 0.0
    %1420 = vmatpush1.msra.mxu0 0.0
    %1421 = vmatprep.subr.mxu0 0.0
    %1422 = vmatpush1.msra.mxu0 0.0
    %1423 = vmatprep.subr.mxu0 0.0
    %1424 = vmatpush1.msra.mxu0 0.0
    %1425 = vmatprep.subr.mxu0 0.0
    %1426 = vmatpush1.msra.mxu0 0.0
    %1427 = vmatprep.subr.mxu0 0.0
    %1428 = vmatpush1.msra.mxu0 0.0
    %1429 = vmatprep.subr.mxu0 0.0
    %1430 = vmatpush1.msra.mxu0 0.0
    %1431 = vmatprep.subr.mxu0 0.0
    %1432 = vmatpush1.msra.mxu0 0.0
    %1433 = vmatprep.subr.mxu0 0.0
    %1434 = vmatpush1.msra.mxu0 0.0
    %1435 = vmatprep.subr.mxu0 0.0
    %1436 = vmatpush1.msra.mxu0 0.0
    %1437 = vmatprep.subr.mxu0 0.0
    %1438 = vmatpush1.msra.mxu0 0.0
    %1439 = vmatprep.subr.mxu0 0.0
    %1440 = vmatpush1.msra.mxu0 0.0
    %1441 = vmatprep.subr.mxu0 0.0
    %1442 = vmatpush1.msra.mxu0 0.0
    %1443 = vmatprep.subr.mxu0 0.0
    %1444 = vmatpush1.msra.mxu0 0.0
    %1445 = vmatprep.subr.mxu0 0.0
    %1446 = vmatpush1.msra.mxu0 0.0
    %1447 = vmatprep.subr.mxu0 0.0
    %1448 = vmatpush1.msra.mxu0 0.0
    %1449 = vmatprep.subr.mxu0 0.0
    %1450 = vmatpush1.msra.mxu0 0.0
    %1451 = vmatprep.subr.mxu0 0.0
    %1452 = vmatpush1.msra.mxu0 0.0
    %1453 = vmatprep.subr.mxu0 0.0
    %1454 = vmatpush1.msra.mxu0 0.0
    %1455 = vmatprep.subr.mxu0 0.0
    %1456 = vmatpush1.msra.mxu0 0.0
    %1457 = vmatprep.subr.mxu0 0.0
    %1458 = vmatpush1.msra.mxu0 0.0
    %1459 = vmatprep.subr.mxu0 0.0
    %1460 = vmatpush1.msra.mxu0 0.0
    %1461 = vmatprep.subr.mxu0 0.0
    %1462 = vmatpush1.msra.mxu0 0.0
    %1463 = vmatprep.subr.mxu0 0.0
    %1464 = vmatpush1.msra.mxu0 0.0
    %1465 = vmatprep.mubr.f32.mxu0 0.0
    %1466 = vmatmul.mubr.f32.gmra.mrb[0].mxu0 %v1399
    %v1467 = vpop.f32.mrb[0].mxu0
    %v1468 = vadd.f32 %v1396, %v1467
    %v1469 = vpop.f32.mrb[0].mxu0
    %1470 = vdwg.mxu0
    %v1471 = vadd.f32 %v211, %v1468
    %s1472 = scalar_lea.vmem %s5, 32
    %v1473 = vld [vmem:[%s1472] sm:$0xff]
    %v1474 = vld [vmem:[%s1472 + $0x8] sm:$0xff]
    %v1475 = vld [vmem:[%s1472 + $0x10] sm:$0xff]
    %v1476 = vld [vmem:[%s1472 + $0x18] sm:$0xff]
    %v1478 = vsel %vm252, %v1471, 0
    %1480 = vmatprep.subr.mxu0 0.0
    %1481 = vmatpush1.msra.mxu0 %v1473
    %1482 = vmatprep.subr.mxu0 0.0
    %1483 = vmatpush1.msra.mxu0 %v1474
    %1484 = vmatprep.subr.mxu0 0.0
    %1485 = vmatpush1.msra.mxu0 %v1475
    %1486 = vmatprep.subr.mxu0 0.0
    %1487 = vmatpush1.msra.mxu0 %v1476
    %1488 = vmatprep.subr.mxu0 0.0
    %1489 = vmatpush1.msra.mxu0 0.0
    %1490 = vmatprep.subr.mxu0 0.0
    %1491 = vmatpush1.msra.mxu0 0.0
    %1492 = vmatprep.subr.mxu0 0.0
    %1493 = vmatpush1.msra.mxu0 0.0
    %1494 = vmatprep.subr.mxu0 0.0
    %1495 = vmatpush1.msra.mxu0 0.0
    %1496 = vmatprep.subr.mxu0 0.0
    %1497 = vmatpush1.msra.mxu0 0.0
    %1498 = vmatprep.subr.mxu0 0.0
    %1499 = vmatpush1.msra.mxu0 0.0
    %1500 = vmatprep.subr.mxu0 0.0
    %1501 = vmatpush1.msra.mxu0 0.0
    %1502 = vmatprep.subr.mxu0 0.0
    %1503 = vmatpush1.msra.mxu0 0.0
    %1504 = vmatprep.subr.mxu0 0.0
    %1505 = vmatpush1.msra.mxu0 0.0
    %1506 = vmatprep.subr.mxu0 0.0
    %1507 = vmatpush1.msra.mxu0 0.0
    %1508 = vmatprep.subr.mxu0 0.0
    %1509 = vmatpush1.msra.mxu0 0.0
    %1510 = vmatprep.subr.mxu0 0.0
    %1511 = vmatpush1.msra.mxu0 0.0
    %1512 = vmatprep.subr.mxu0 0.0
    %1513 = vmatpush1.msra.mxu0 0.0
    %1514 = vmatprep.subr.mxu0 0.0
    %1515 = vmatpush1.msra.mxu0 0.0
    %1516 = vmatprep.subr.mxu0 0.0
    %1517 = vmatpush1.msra.mxu0 0.0
    %1518 = vmatprep.subr.mxu0 0.0
    %1519 = vmatpush1.msra.mxu0 0.0
    %1520 = vmatprep.subr.mxu0 0.0
    %1521 = vmatpush1.msra.mxu0 0.0
    %1522 = vmatprep.subr.mxu0 0.0
    %1523 = vmatpush1.msra.mxu0 0.0
    %1524 = vmatprep.subr.mxu0 0.0
    %1525 = vmatpush1.msra.mxu0 0.0
    %1526 = vmatprep.subr.mxu0 0.0
    %1527 = vmatpush1.msra.mxu0 0.0
    %1528 = vmatprep.subr.mxu0 0.0
    %1529 = vmatpush1.msra.mxu0 0.0
    %1530 = vmatprep.subr.mxu0 0.0
    %1531 = vmatpush1.msra.mxu0 0.0
    %1532 = vmatprep.subr.mxu0 0.0
    %1533 = vmatpush1.msra.mxu0 0.0
    %1534 = vmatprep.subr.mxu0 0.0
    %1535 = vmatpush1.msra.mxu0 0.0
    %1536 = vmatprep.subr.mxu0 0.0
    %1537 = vmatpush1.msra.mxu0 0.0
    %1538 = vmatprep.subr.mxu0 0.0
    %1539 = vmatpush1.msra.mxu0 0.0
    %1540 = vmatprep.subr.mxu0 0.0
    %1541 = vmatpush1.msra.mxu0 0.0
    %1542 = vmatprep.subr.mxu0 0.0
    %1543 = vmatpush1.msra.mxu0 0.0
    %1544 = vmatprep.mubr.f32.mxu0 0.0
    %1545 = vmatmul.mubr.f32.gmra.mrb[0].mxu0 %v1478
    %v1546 = vpop.f32.mrb[0].mxu0
    %v1547 = vadd.f32 0.0, %v1546
    %v1548 = vpop.f32.mrb[0].mxu0
    %1549 = vdwg.mxu0
    %s1550 = scalar_lea.vmem %s6, 32
    %v1551 = vld [vmem:[%s1550] sm:$0xff]
    %v1552 = vld [vmem:[%s1550 + $0x8] sm:$0xff]
    %v1553 = vld [vmem:[%s1550 + $0x10] sm:$0xff]
    %v1554 = vld [vmem:[%s1550 + $0x18] sm:$0xff]
    %1555 = vmatprep.subr.mxu0 0.0
    %1556 = vmatpush1.msra.mxu0 %v1551
    %1557 = vmatprep.subr.mxu0 0.0
    %1558 = vmatpush1.msra.mxu0 %v1552
    %1559 = vmatprep.subr.mxu0 0.0
    %1560 = vmatpush1.msra.mxu0 %v1553
    %1561 = vmatprep.subr.mxu0 0.0
    %1562 = vmatpush1.msra.mxu0 %v1554
    %1563 = vmatprep.subr.mxu0 0.0
    %1564 = vmatpush1.msra.mxu0 0.0
    %1565 = vmatprep.subr.mxu0 0.0
    %1566 = vmatpush1.msra.mxu0 0.0
    %1567 = vmatprep.subr.mxu0 0.0
    %1568 = vmatpush1.msra.mxu0 0.0
    %1569 = vmatprep.subr.mxu0 0.0
    %1570 = vmatpush1.msra.mxu0 0.0
    %1571 = vmatprep.subr.mxu0 0.0
    %1572 = vmatpush1.msra.mxu0 0.0
    %1573 = vmatprep.subr.mxu0 0.0
    %1574 = vmatpush1.msra.mxu0 0.0
    %1575 = vmatprep.subr.mxu0 0.0
    %1576 = vmatpush1.msra.mxu0 0.0
    %1577 = vmatprep.subr.mxu0 0.0
    %1578 = vmatpush1.msra.mxu0 0.0
    %1579 = vmatprep.subr.mxu0 0.0
    %1580 = vmatpush1.msra.mxu0 0.0
    %1581 = vmatprep.subr.mxu0 0.0
    %1582 = vmatpush1.msra.mxu0 0.0
    %1583 = vmatprep.subr.mxu0 0.0
    %1584 = vmatpush1.msra.mxu0 0.0
    %1585 = vmatprep.subr.mxu0 0.0
    %1586 = vmatpush1.msra.mxu0 0.0
    %1587 = vmatprep.subr.mxu0 0.0
    %1588 = vmatpush1.msra.mxu0 0.0
    %1589 = vmatprep.subr.mxu0 0.0
    %1590 = vmatpush1.msra.mxu0 0.0
    %1591 = vmatprep.subr.mxu0 0.0
    %1592 = vmatpush1.msra.mxu0 0.0
    %1593 = vmatprep.subr.mxu0 0.0
    %1594 = vmatpush1.msra.mxu0 0.0
    %1595 = vmatprep.subr.mxu0 0.0
    %1596 = vmatpush1.msra.mxu0 0.0
    %1597 = vmatprep.subr.mxu0 0.0
    %1598 = vmatpush1.msra.mxu0 0.0
    %1599 = vmatprep.subr.mxu0 0.0
    %1600 = vmatpush1.msra.mxu0 0.0
    %1601 = vmatprep.subr.mxu0 0.0
    %1602 = vmatpush1.msra.mxu0 0.0
    %1603 = vmatprep.subr.mxu0 0.0
    %1604 = vmatpush1.msra.mxu0 0.0
    %1605 = vmatprep.subr.mxu0 0.0
    %1606 = vmatpush1.msra.mxu0 0.0
    %1607 = vmatprep.subr.mxu0 0.0
    %1608 = vmatpush1.msra.mxu0 0.0
    %1609 = vmatprep.subr.mxu0 0.0
    %1610 = vmatpush1.msra.mxu0 0.0
    %1611 = vmatprep.subr.mxu0 0.0
    %1612 = vmatpush1.msra.mxu0 0.0
    %1613 = vmatprep.subr.mxu0 0.0
    %1614 = vmatpush1.msra.mxu0 0.0
    %1615 = vmatprep.subr.mxu0 0.0
    %1616 = vmatpush1.msra.mxu0 0.0
    %1617 = vmatprep.subr.mxu0 0.0
    %1618 = vmatpush1.msra.mxu0 0.0
    %1619 = vmatprep.mubr.f32.mxu0 0.0
    %1620 = vmatmul.mubr.f32.gmra.mrb[0].mxu0 %v1478
    %v1621 = vpop.f32.mrb[0].mxu0
    %v1622 = vadd.f32 0.0, %v1621
    %v1623 = vpop.f32.mrb[0].mxu0
    %1624 = vdwg.mxu0
    %1625 = vmatprep.subr.mxu0 0.0
    %1626 = vmatpush1.msra.mxu0 %v1622
    %1627 = vmatprep.subr.mxu0 0.0
    %1628 = vmatpush1.msra.mxu0 0.0
    %1629 = vmatprep.subr.mxu0 0.0
    %1630 = vmatpush1.msra.mxu0 0.0
    %1631 = vmatprep.subr.mxu0 0.0
    %1632 = vmatpush1.msra.mxu0 0.0
    %1633 = vmatprep.subr.mxu0 0.0
    %1634 = vmatpush1.msra.mxu0 0.0
    %1635 = vmatprep.subr.mxu0 0.0
    %1636 = vmatpush1.msra.mxu0 0.0
    %1637 = vmatprep.subr.mxu0 0.0
    %1638 = vmatpush1.msra.mxu0 0.0
    %1639 = vmatprep.subr.mxu0 0.0
    %1640 = vmatpush1.msra.mxu0 0.0
    %1641 = vmatprep.subr.mxu0 0.0
    %1642 = vmatpush1.msra.mxu0 0.0
    %1643 = vmatprep.subr.mxu0 0.0
    %1644 = vmatpush1.msra.mxu0 0.0
    %1645 = vmatprep.subr.mxu0 0.0
    %1646 = vmatpush1.msra.mxu0 0.0
    %1647 = vmatprep.subr.mxu0 0.0
    %1648 = vmatpush1.msra.mxu0 0.0
    %1649 = vmatprep.subr.mxu0 0.0
    %1650 = vmatpush1.msra.mxu0 0.0
    %1651 = vmatprep.subr.mxu0 0.0
    %1652 = vmatpush1.msra.mxu0 0.0
    %1653 = vmatprep.subr.mxu0 0.0
    %1654 = vmatpush1.msra.mxu0 0.0
    %1655 = vmatprep.subr.mxu0 0.0
    %1656 = vmatpush1.msra.mxu0 0.0
    %1657 = vmatprep.subr.mxu0 0.0
    %1658 = vmatpush1.msra.mxu0 0.0
    %1659 = vmatprep.subr.mxu0 0.0
    %1660 = vmatpush1.msra.mxu0 0.0
    %1661 = vmatprep.subr.mxu0 0.0
    %1662 = vmatpush1.msra.mxu0 0.0
    %1663 = vmatprep.subr.mxu0 0.0
    %1664 = vmatpush1.msra.mxu0 0.0
    %1665 = vmatprep.subr.mxu0 0.0
    %1666 = vmatpush1.msra.mxu0 0.0
    %1667 = vmatprep.subr.mxu0 0.0
    %1668 = vmatpush1.msra.mxu0 0.0
    %1669 = vmatprep.subr.mxu0 0.0
    %1670 = vmatpush1.msra.mxu0 0.0
    %1671 = vmatprep.subr.mxu0 0.0
    %1672 = vmatpush1.msra.mxu0 0.0
    %1673 = vmatprep.subr.mxu0 0.0
    %1674 = vmatpush1.msra.mxu0 0.0
    %1675 = vmatprep.subr.mxu0 0.0
    %1676 = vmatpush1.msra.mxu0 0.0
    %1677 = vmatprep.subr.mxu0 0.0
    %1678 = vmatpush1.msra.mxu0 0.0
    %1679 = vmatprep.subr.mxu0 0.0
    %1680 = vmatpush1.msra.mxu0 0.0
    %1681 = vmatprep.subr.mxu0 0.0
    %1682 = vmatpush1.msra.mxu0 0.0
    %1683 = vmatprep.subr.mxu0 0.0
    %1684 = vmatpush1.msra.mxu0 0.0
    %1685 = vmatprep.subr.mxu0 0.0
    %1686 = vmatpush1.msra.mxu0 0.0
    %1687 = vmatprep.subr.mxu0 0.0
    %1688 = vmatpush1.msra.mxu0 0.0
    %1689 = vmatprep.mubr.f32.mxu0 0.0
    %1690 = vmatmul.mubr.f32.gmra.mrb[0].mxu0 %v529
    %v1691 = vpop.f32.mrb[0].mxu0
    %v1692 = vadd.f32 0.0, %v1691
    %v1693 = vpop.f32.mrb[0].mxu0
    %1694 = vmatprep.mubr.f32.mxu0 0.0
    %1695 = vmatmul.mubr.f32.gmra.mrb[0].mxu0 %v532
    %v1696 = vpop.f32.mrb[0].mxu0
    %v1697 = vadd.f32 0.0, %v1696
    %v1698 = vpop.f32.mrb[0].mxu0
    %1699 = vmatprep.mubr.f32.mxu0 0.0
    %1700 = vmatmul.mubr.f32.gmra.mrb[0].mxu0 %v535
    %v1701 = vpop.f32.mrb[0].mxu0
    %v1702 = vadd.f32 0.0, %v1701
    %v1703 = vpop.f32.mrb[0].mxu0
    %1704 = vmatprep.mubr.f32.mxu0 0.0
    %1705 = vmatmul.mubr.f32.gmra.mrb[0].mxu0 %v538
    %v1706 = vpop.f32.mrb[0].mxu0
    %v1707 = vadd.f32 0.0, %v1706
    %v1708 = vpop.f32.mrb[0].mxu0
    %1709 = vmatprep.mubr.f32.mxu0 0.0
    %1710 = vmatmul.mubr.f32.gmra.mrb[0].mxu0 %v541
    %v1711 = vpop.f32.mrb[0].mxu0
    %v1712 = vadd.f32 0.0, %v1711
    %v1713 = vpop.f32.mrb[0].mxu0
    %1714 = vmatprep.mubr.f32.mxu0 0.0
    %1715 = vmatmul.mubr.f32.gmra.mrb[0].mxu0 %v544
    %v1716 = vpop.f32.mrb[0].mxu0
    %v1717 = vadd.f32 0.0, %v1716
    %v1718 = vpop.f32.mrb[0].mxu0
    %1719 = vmatprep.mubr.f32.mxu0 0.0
    %1720 = vmatmul.mubr.f32.gmra.mrb[0].mxu0 %v547
    %v1721 = vpop.f32.mrb[0].mxu0
    %v1722 = vadd.f32 0.0, %v1721
    %v1723 = vpop.f32.mrb[0].mxu0
    %1724 = vdwg.mxu0
    %s1725 = scalar_lea.vmem [#allocation5], 2
    %v1726 = vld [vmem:[%s1725] sm:$0x3]
    %1727 = vmatprep.subr.mxu0 0.0
    %1728 = vmatpush1.msra.mxu0 %v1547
    %1729 = vmatprep.subr.mxu0 0.0
    %1730 = vmatpush1.msra.mxu0 0.0
    %1731 = vmatprep.subr.mxu0 0.0
    %1732 = vmatpush1.msra.mxu0 0.0
    %1733 = vmatprep.subr.mxu0 0.0
    %1734 = vmatpush1.msra.mxu0 0.0
    %1735 = vmatprep.subr.mxu0 0.0
    %1736 = vmatpush1.msra.mxu0 0.0
    %1737 = vmatprep.subr.mxu0 0.0
    %1738 = vmatpush1.msra.mxu0 0.0
    %1739 = vmatprep.subr.mxu0 0.0
    %1740 = vmatpush1.msra.mxu0 0.0
    %1741 = vmatprep.subr.mxu0 0.0
    %1742 = vmatpush1.msra.mxu0 0.0
    %1743 = vmatprep.subr.mxu0 0.0
    %1744 = vmatpush1.msra.mxu0 0.0
    %1745 = vmatprep.subr.mxu0 0.0
    %1746 = vmatpush1.msra.mxu0 0.0
    %1747 = vmatprep.subr.mxu0 0.0
    %1748 = vmatpush1.msra.mxu0 0.0
    %1749 = vmatprep.subr.mxu0 0.0
    %1750 = vmatpush1.msra.mxu0 0.0
    %1751 = vmatprep.subr.mxu0 0.0
    %1752 = vmatpush1.msra.mxu0 0.0
    %1753 = vmatprep.subr.mxu0 0.0
    %1754 = vmatpush1.msra.mxu0 0.0
    %1755 = vmatprep.subr.mxu0 0.0
    %1756 = vmatpush1.msra.mxu0 0.0
    %1757 = vmatprep.subr.mxu0 0.0
    %1758 = vmatpush1.msra.mxu0 0.0
    %1759 = vmatprep.subr.mxu0 0.0
    %1760 = vmatpush1.msra.mxu0 0.0
    %1761 = vmatprep.subr.mxu0 0.0
    %1762 = vmatpush1.msra.mxu0 0.0
    %1763 = vmatprep.subr.mxu0 0.0
    %1764 = vmatpush1.msra.mxu0 0.0
    %1765 = vmatprep.subr.mxu0 0.0
    %1766 = vmatpush1.msra.mxu0 0.0
    %1767 = vmatprep.subr.mxu0 0.0
    %1768 = vmatpush1.msra.mxu0 0.0
    %1769 = vmatprep.subr.mxu0 0.0
    %1770 = vmatpush1.msra.mxu0 0.0
    %1771 = vmatprep.subr.mxu0 0.0
    %1772 = vmatpush1.msra.mxu0 0.0
    %1773 = vmatprep.subr.mxu0 0.0
    %1774 = vmatpush1.msra.mxu0 0.0
    %1775 = vmatprep.subr.mxu0 0.0
    %1776 = vmatpush1.msra.mxu0 0.0
    %1777 = vmatprep.subr.mxu0 0.0
    %1778 = vmatpush1.msra.mxu0 0.0
    %1779 = vmatprep.subr.mxu0 0.0
    %1780 = vmatpush1.msra.mxu0 0.0
    %1781 = vmatprep.subr.mxu0 0.0
    %1782 = vmatpush1.msra.mxu0 0.0
    %1783 = vmatprep.subr.mxu0 0.0
    %1784 = vmatpush1.msra.mxu0 0.0
    %1785 = vmatprep.subr.mxu0 0.0
    %1786 = vmatpush1.msra.mxu0 0.0
    %1787 = vmatprep.subr.mxu0 0.0
    %1788 = vmatpush1.msra.mxu0 0.0
    %1789 = vmatprep.subr.mxu0 0.0
    %1790 = vmatpush1.msra.mxu0 0.0
    %1791 = vmatprep.mubr.f32.mxu0 0.0
    %1792 = vmatmul.mubr.f32.gmra.mrb[0].mxu0 %v408
    %v1793 = vpop.f32.mrb[0].mxu0
    %v1794 = vadd.f32 %v1692, %v1793
    %v1795 = vpop.f32.mrb[0].mxu0
    %1796 = vmatprep.mubr.f32.mxu0 0.0
    %1797 = vmatmul.mubr.f32.gmra.mrb[0].mxu0 %v411
    %v1798 = vpop.f32.mrb[0].mxu0
    %v1799 = vadd.f32 %v1697, %v1798
    %v1800 = vpop.f32.mrb[0].mxu0
    %1801 = vmatprep.mubr.f32.mxu0 0.0
    %1802 = vmatmul.mubr.f32.gmra.mrb[0].mxu0 %v414
    %v1803 = vpop.f32.mrb[0].mxu0
    %v1804 = vadd.f32 %v1702, %v1803
    %v1805 = vpop.f32.mrb[0].mxu0
    %1806 = vmatprep.mubr.f32.mxu0 0.0
    %1807 = vmatmul.mubr.f32.gmra.mrb[0].mxu0 %v417
    %v1808 = vpop.f32.mrb[0].mxu0
    %v1809 = vadd.f32 %v1707, %v1808
    %v1810 = vpop.f32.mrb[0].mxu0
    %1811 = vmatprep.mubr.f32.mxu0 0.0
    %1812 = vmatmul.mubr.f32.gmra.mrb[0].mxu0 %v420
    %v1813 = vpop.f32.mrb[0].mxu0
    %v1814 = vadd.f32 %v1712, %v1813
    %v1815 = vpop.f32.mrb[0].mxu0
    %1816 = vmatprep.mubr.f32.mxu0 0.0
    %1817 = vmatmul.mubr.f32.gmra.mrb[0].mxu0 %v423
    %v1818 = vpop.f32.mrb[0].mxu0
    %v1819 = vadd.f32 %v1717, %v1818
    %v1820 = vpop.f32.mrb[0].mxu0
    %1821 = vmatprep.mubr.f32.mxu0 0.0
    %1822 = vmatmul.mubr.f32.gmra.mrb[0].mxu0 %v426
    %v1823 = vpop.f32.mrb[0].mxu0
    %v1824 = vadd.f32 %v1722, %v1823
    %v1825 = vpop.f32.mrb[0].mxu0
    %1826 = vdwg.mxu0
    %v1827 = vlaneseq
    %v1828 = vshrl.u32 %v1827, 7
    %v1829 = vsub.s32 0, %v1828
    %v1830 = vrot.slane %v1726, %v1829
    %v1831 = vmul.f32 %v694, %v1830
    %v1832 = vmul.f32 %v697, %v1830
    %v1833 = vmul.f32 %v700, %v1830
    %v1834 = vmul.f32 %v703, %v1830
    %v1835 = vmul.f32 %v706, %v1830
    %v1836 = vmul.f32 %v709, %v1830
    %v1837 = vmul.f32 %v712, %v1830
    %v1838 = vadd.f32 %v1794, %v1831
    %v1839 = vadd.f32 %v1799, %v1832
    %v1840 = vadd.f32 %v1804, %v1833
    %v1841 = vadd.f32 %v1809, %v1834
    %v1842 = vadd.f32 %v1814, %v1835
    %v1843 = vadd.f32 %v1819, %v1836
    %v1844 = vadd.f32 %v1824, %v1837
    %v1845 = vlaneseq
    %v1846 = vshrl.u32 %v1845, 7
    %v1847 = vsub.s32 1, %v1846
    %v1848 = vrot.slane %v1726, %v1847
    %v1849 = vmul.f32 %v819, %v1848
    %v1850 = vmul.f32 %v824, %v1848
    %v1851 = vmul.f32 %v829, %v1848
    %v1852 = vmul.f32 %v834, %v1848
    %v1853 = vmul.f32 %v839, %v1848
    %v1854 = vmul.f32 %v844, %v1848
    %v1855 = vmul.f32 %v849, %v1848
    %v1856 = vadd.f32 %v1838, %v1849
    %v1857 = vadd.f32 %v1839, %v1850
    %v1858 = vadd.f32 %v1840, %v1851
    %v1859 = vadd.f32 %v1841, %v1852
    %v1860 = vadd.f32 %v1842, %v1853
    %v1861 = vadd.f32 %v1843, %v1854
    %v1862 = vadd.f32 %v1844, %v1855
    %s1863 = scalar_lea.vmem %s8, 1
    %v1864 = vld [vmem:[%s1863] sm:$0x1]
    %v1866 = vlaneseq
    %v1867 = vshrl.u32 %v1866, 7
    %v1868 = vsub.s32 0, %v1867
    %v1869 = vrot.slane %v1864, %v1868
    %v1871 = vadd.f32 %v1856, %v1869
    %v1872 = vadd.f32 %v1857, %v1869
    %v1873 = vadd.f32 %v1858, %v1869
    %v1874 = vadd.f32 %v1859, %v1869
    %v1875 = vadd.f32 %v1860, %v1869
    %v1876 = vadd.f32 %v1861, %v1869
    %v1877 = vadd.f32 %v1862, %v1869
    %v1878 = vsub.f32 0.0, %v1871
    %v1879 = vsub.f32 0.0, %v1872
    %v1880 = vsub.f32 0.0, %v1873
    %v1881 = vsub.f32 0.0, %v1874
    %v1882 = vsub.f32 0.0, %v1875
    %v1883 = vsub.f32 0.0, %v1876
    %v1884 = vsub.f32 0.0, %v1877
    %v1885 = vmul.f32 %v1878, 1.442695
    %v1886 = vpow.pop %v1885
    %v1887 = vmul.f32 %v1879, 1.442695
    %v1888 = vpow.pop %v1887
    %v1889 = vmul.f32 %v1880, 1.442695
    %v1890 = vpow.pop %v1889
    %v1891 = vmul.f32 %v1881, 1.442695
    %v1892 = vpow.pop %v1891
    %v1893 = vmul.f32 %v1882, 1.442695
    %v1894 = vpow.pop %v1893
    %v1895 = vmul.f32 %v1883, 1.442695
    %v1896 = vpow.pop %v1895
    %v1897 = vmul.f32 %v1884, 1.442695
    %v1898 = vpow.pop %v1897
    %v1899 = vadd.f32 %v1886, 1.0
    %v1900 = vadd.f32 %v1888, 1.0
    %v1901 = vadd.f32 %v1890, 1.0
    %v1902 = vadd.f32 %v1892, 1.0
    %v1903 = vadd.f32 %v1894, 1.0
    %v1904 = vadd.f32 %v1896, 1.0
    %v1905 = vadd.f32 %v1898, 1.0
    %v1906 = vrcp.pop %v1899
    %v1907 = vmul.f32 1.0, %v1906
    %v1908 = vrcp.pop %v1900
    %v1909 = vmul.f32 1.0, %v1908
    %v1910 = vrcp.pop %v1901
    %v1911 = vmul.f32 1.0, %v1910
    %v1912 = vrcp.pop %v1902
    %v1913 = vmul.f32 1.0, %v1912
    %v1914 = vrcp.pop %v1903
    %v1915 = vmul.f32 1.0, %v1914
    %v1916 = vrcp.pop %v1904
    %v1917 = vmul.f32 1.0, %v1916
    %v1918 = vrcp.pop %v1905
    %v1919 = vmul.f32 1.0, %v1918
    %v1920 = vmul.f32 %v1871, %v1907
    %v1921 = vmul.f32 %v1872, %v1909
    %v1922 = vmul.f32 %v1873, %v1911
    %v1923 = vmul.f32 %v1874, %v1913
    %v1924 = vmul.f32 %v1875, %v1915
    %v1925 = vmul.f32 %v1876, %v1917
    %v1926 = vmul.f32 %v1877, %v1919
    %s1927 = scalar_lea.vmem %s9, 32
    %v1928 = vld [vmem:[%s1927] sm:$0xff]
    %v1929 = vld [vmem:[%s1927 + $0x8] sm:$0xff]
    %v1930 = vld [vmem:[%s1927 + $0x10] sm:$0xff]
    %v1931 = vld [vmem:[%s1927 + $0x18] sm:$0xff]
    %s1932 = scalar_lea.vmem [#allocation7], 1
    %v1933 = vld [vmem:[%s1932] sm:$0x1]
    %v1935 = vlaneseq
    %v1936 = vshrl.u32 %v1935, 7
    %v1937 = vsub.s32 0, %v1936
    %v1938 = vrot.slane %v1933, %v1937
    %v1941 = vsel %vm252, %v1920, 0
    %v1944 = vsel %vm252, %v1921, 0
    %v1947 = vsel %vm252, %v1922, 0
    %v1950 = vsel %vm252, %v1923, 0
    %v1953 = vsel %vm252, %v1924, 0
    %v1956 = vsel %vm252, %v1925, 0
    %v1959 = vsel %vm252, %v1926, 0
    %1961 = vmatprep.subr.mxu0 0.0
    %1962 = vmatpush1.msra.mxu0 %v1928
    %1963 = vmatprep.subr.mxu0 0.0
    %1964 = vmatpush1.msra.mxu0 %v1929
    %1965 = vmatprep.subr.mxu0 0.0
    %1966 = vmatpush1.msra.mxu0 %v1930
    %1967 = vmatprep.subr.mxu0 0.0
    %1968 = vmatpush1.msra.mxu0 %v1931
    %1969 = vmatprep.subr.mxu0 0.0
    %1970 = vmatpush1.msra.mxu0 0.0
    %1971 = vmatprep.subr.mxu0 0.0
    %1972 = vmatpush1.msra.mxu0 0.0
    %1973 = vmatprep.subr.mxu0 0.0
    %1974 = vmatpush1.msra.mxu0 0.0
    %1975 = vmatprep.subr.mxu0 0.0
    %1976 = vmatpush1.msra.mxu0 0.0
    %1977 = vmatprep.subr.mxu0 0.0
    %1978 = vmatpush1.msra.mxu0 0.0
    %1979 = vmatprep.subr.mxu0 0.0
    %1980 = vmatpush1.msra.mxu0 0.0
    %1981 = vmatprep.subr.mxu0 0.0
    %1982 = vmatpush1.msra.mxu0 0.0
    %1983 = vmatprep.subr.mxu0 0.0
    %1984 = vmatpush1.msra.mxu0 0.0
    %1985 = vmatprep.subr.mxu0 0.0
    %1986 = vmatpush1.msra.mxu0 0.0
    %1987 = vmatprep.subr.mxu0 0.0
    %1988 = vmatpush1.msra.mxu0 0.0
    %1989 = vmatprep.subr.mxu0 0.0
    %1990 = vmatpush1.msra.mxu0 0.0
    %1991 = vmatprep.subr.mxu0 0.0
    %1992 = vmatpush1.msra.mxu0 0.0
    %1993 = vmatprep.subr.mxu0 0.0
    %1994 = vmatpush1.msra.mxu0 0.0
    %1995 = vmatprep.subr.mxu0 0.0
    %1996 = vmatpush1.msra.mxu0 0.0
    %1997 = vmatprep.subr.mxu0 0.0
    %1998 = vmatpush1.msra.mxu0 0.0
    %1999 = vmatprep.subr.mxu0 0.0
    %2000 = vmatpush1.msra.mxu0 0.0
    %2001 = vmatprep.subr.mxu0 0.0
    %2002 = vmatpush1.msra.mxu0 0.0
    %2003 = vmatprep.subr.mxu0 0.0
    %2004 = vmatpush1.msra.mxu0 0.0
    %2005 = vmatprep.subr.mxu0 0.0
    %2006 = vmatpush1.msra.mxu0 0.0
    %2007 = vmatprep.subr.mxu0 0.0
    %2008 = vmatpush1.msra.mxu0 0.0
    %2009 = vmatprep.subr.mxu0 0.0
    %2010 = vmatpush1.msra.mxu0 0.0
    %2011 = vmatprep.subr.mxu0 0.0
    %2012 = vmatpush1.msra.mxu0 0.0
    %2013 = vmatprep.subr.mxu0 0.0
    %2014 = vmatpush1.msra.mxu0 0.0
    %2015 = vmatprep.subr.mxu0 0.0
    %2016 = vmatpush1.msra.mxu0 0.0
    %2017 = vmatprep.subr.mxu0 0.0
    %2018 = vmatpush1.msra.mxu0 0.0
    %2019 = vmatprep.subr.mxu0 0.0
    %2020 = vmatpush1.msra.mxu0 0.0
    %2021 = vmatprep.subr.mxu0 0.0
    %2022 = vmatpush1.msra.mxu0 0.0
    %2023 = vmatprep.subr.mxu0 0.0
    %2024 = vmatpush1.msra.mxu0 0.0
    %2025 = vmatprep.mubr.f32.mxu0 0.0
    %2026 = vmatmul.mubr.f32.gmra.mrb[0].mxu0 %v1941
    %v2027 = vpop.f32.mrb[0].mxu0
    %v2028 = vadd.f32 %v1938, %v2027
    %v2029 = vpop.f32.mrb[0].mxu0
    %2030 = vmatprep.mubr.f32.mxu0 0.0
    %2031 = vmatmul.mubr.f32.gmra.mrb[0].mxu0 %v1944
    %v2032 = vpop.f32.mrb[0].mxu0
    %v2033 = vadd.f32 %v1938, %v2032
    %v2034 = vpop.f32.mrb[0].mxu0
    %2035 = vmatprep.mubr.f32.mxu0 0.0
    %2036 = vmatmul.mubr.f32.gmra.mrb[0].mxu0 %v1947
    %v2037 = vpop.f32.mrb[0].mxu0
    %v2038 = vadd.f32 %v1938, %v2037
    %v2039 = vpop.f32.mrb[0].mxu0
    %2040 = vmatprep.mubr.f32.mxu0 0.0
    %2041 = vmatmul.mubr.f32.gmra.mrb[0].mxu0 %v1950
    %v2042 = vpop.f32.mrb[0].mxu0
    %v2043 = vadd.f32 %v1938, %v2042
    %v2044 = vpop.f32.mrb[0].mxu0
    %2045 = vmatprep.mubr.f32.mxu0 0.0
    %2046 = vmatmul.mubr.f32.gmra.mrb[0].mxu0 %v1953
    %v2047 = vpop.f32.mrb[0].mxu0
    %v2048 = vadd.f32 %v1938, %v2047
    %v2049 = vpop.f32.mrb[0].mxu0
    %2050 = vmatprep.mubr.f32.mxu0 0.0
    %2051 = vmatmul.mubr.f32.gmra.mrb[0].mxu0 %v1956
    %v2052 = vpop.f32.mrb[0].mxu0
    %v2053 = vadd.f32 %v1938, %v2052
    %v2054 = vpop.f32.mrb[0].mxu0
    %2055 = vmatprep.mubr.f32.mxu0 0.0
    %2056 = vmatmul.mubr.f32.gmra.mrb[0].mxu0 %v1959
    %v2057 = vpop.f32.mrb[0].mxu0
    %v2058 = vadd.f32 %v1938, %v2057
    %v2059 = vpop.f32.mrb[0].mxu0
    %2060 = vdwg.mxu0
    %v2061 = vsub.f32 0.0, %v2028
    %v2062 = vsub.f32 0.0, %v2033
    %v2063 = vsub.f32 0.0, %v2038
    %v2064 = vsub.f32 0.0, %v2043
    %v2065 = vsub.f32 0.0, %v2048
    %v2066 = vsub.f32 0.0, %v2053
    %v2067 = vsub.f32 0.0, %v2058
    %v2068 = vmul.f32 %v2061, 1.442695
    %v2069 = vpow.pop %v2068
    %v2070 = vmul.f32 %v2062, 1.442695
    %v2071 = vpow.pop %v2070
    %v2072 = vmul.f32 %v2063, 1.442695
    %v2073 = vpow.pop %v2072
    %v2074 = vmul.f32 %v2064, 1.442695
    %v2075 = vpow.pop %v2074
    %v2076 = vmul.f32 %v2065, 1.442695
    %v2077 = vpow.pop %v2076
    %v2078 = vmul.f32 %v2066, 1.442695
    %v2079 = vpow.pop %v2078
    %v2080 = vmul.f32 %v2067, 1.442695
    %v2081 = vpow.pop %v2080
    %v2082 = vadd.f32 %v2069, 1.0
    %v2083 = vadd.f32 %v2071, 1.0
    %v2084 = vadd.f32 %v2073, 1.0
    %v2085 = vadd.f32 %v2075, 1.0
    %v2086 = vadd.f32 %v2077, 1.0
    %v2087 = vadd.f32 %v2079, 1.0
    %v2088 = vadd.f32 %v2081, 1.0
    %v2089 = vrcp.pop %v2082
    %v2090 = vmul.f32 1.0, %v2089
    %v2091 = vrcp.pop %v2083
    %v2092 = vmul.f32 1.0, %v2091
    %v2093 = vrcp.pop %v2084
    %v2094 = vmul.f32 1.0, %v2093
    %v2095 = vrcp.pop %v2085
    %v2096 = vmul.f32 1.0, %v2095
    %v2097 = vrcp.pop %v2086
    %v2098 = vmul.f32 1.0, %v2097
    %v2099 = vrcp.pop %v2087
    %v2100 = vmul.f32 1.0, %v2099
    %v2101 = vrcp.pop %v2088
    %v2102 = vmul.f32 1.0, %v2101
    %v2103 = vmul.f32 %v2028, %v2090
    %v2104 = vmul.f32 %v2033, %v2092
    %v2105 = vmul.f32 %v2038, %v2094
    %v2106 = vmul.f32 %v2043, %v2096
    %v2107 = vmul.f32 %v2048, %v2098
    %v2108 = vmul.f32 %v2053, %v2100
    %v2109 = vmul.f32 %v2058, %v2102
    %2110 = vmatprep.subr.mxu0 0.0
    %2111 = vmatpush1.msra.mxu0 %v2103
    %2112 = vmatprep.subr.mxu0 0.0
    %2113 = vmatpush1.msra.mxu0 %v2104
    %2114 = vmatprep.subr.mxu0 0.0
    %2115 = vmatpush1.msra.mxu0 %v2105
    %2116 = vmatprep.subr.mxu0 0.0
    %2117 = vmatpush1.msra.mxu0 %v2106
    %2118 = vmatprep.subr.mxu0 0.0
    %2119 = vmatpush1.msra.mxu0 %v2107
    %2120 = vmatprep.subr.mxu0 0.0
    %2121 = vmatpush1.msra.mxu0 %v2108
    %2122 = vmatprep.subr.mxu0 0.0
    %2123 = vmatpush1.msra.mxu0 %v2109
    %2124 = vmatprep.subr.mxu0 0.0
    %2125 = vmatpush1.msra.mxu0 0.0
    %2126 = vmatprep.subr.mxu0 0.0
    %2127 = vmatpush1.msra.mxu0 0.0
    %2128 = vmatprep.subr.mxu0 0.0
    %2129 = vmatpush1.msra.mxu0 0.0
    %2130 = vmatprep.subr.mxu0 0.0
    %2131 = vmatpush1.msra.mxu0 0.0
    %2132 = vmatprep.subr.mxu0 0.0
    %2133 = vmatpush1.msra.mxu0 0.0
    %2134 = vmatprep.subr.mxu0 0.0
    %2135 = vmatpush1.msra.mxu0 0.0
    %2136 = vmatprep.subr.mxu0 0.0
    %2137 = vmatpush1.msra.mxu0 0.0
    %2138 = vmatprep.subr.mxu0 0.0
    %2139 = vmatpush1.msra.mxu0 0.0
    %2140 = vmatprep.subr.mxu0 0.0
    %2141 = vmatpush1.msra.mxu0 0.0
    %2142 = vmatprep.subr.mxu0 0.0
    %2143 = vmatpush1.msra.mxu0 0.0
    %2144 = vmatprep.subr.mxu0 0.0
    %2145 = vmatpush1.msra.mxu0 0.0
    %2146 = vmatprep.subr.mxu0 0.0
    %2147 = vmatpush1.msra.mxu0 0.0
    %2148 = vmatprep.subr.mxu0 0.0
    %2149 = vmatpush1.msra.mxu0 0.0
    %2150 = vmatprep.subr.mxu0 0.0
    %2151 = vmatpush1.msra.mxu0 0.0
    %2152 = vmatprep.subr.mxu0 0.0
    %2153 = vmatpush1.msra.mxu0 0.0
    %2154 = vmatprep.subr.mxu0 0.0
    %2155 = vmatpush1.msra.mxu0 0.0
    %2156 = vmatprep.subr.mxu0 0.0
    %2157 = vmatpush1.msra.mxu0 0.0
    %2158 = vmatprep.subr.mxu0 0.0
    %2159 = vmatpush1.msra.mxu0 0.0
    %2160 = vmatprep.subr.mxu0 0.0
    %2161 = vmatpush1.msra.mxu0 0.0
    %2162 = vmatprep.subr.mxu0 0.0
    %2163 = vmatpush1.msra.mxu0 0.0
    %2164 = vmatprep.subr.mxu0 0.0
    %2165 = vmatpush1.msra.mxu0 0.0
    %2166 = vmatprep.subr.mxu0 0.0
    %2167 = vmatpush1.msra.mxu0 0.0
    %2168 = vmatprep.subr.mxu0 0.0
    %2169 = vmatpush1.msra.mxu0 0.0
    %2170 = vmatprep.subr.mxu0 0.0
    %2171 = vmatpush1.msra.mxu0 0.0
    %2172 = vmatprep.subr.mxu0 0.0
    %2173 = vmatpush1.msra.mxu0 0.0
    %2174 = vmatprep.mubr.f32.mxu0 0.0
    %2175 = vmatmul.mubr.f32.gmra.mrb[0].mxu0 %v1147
    %v2176 = vpop.f32.mrb[0].mxu0
    %v2177 = vadd.f32 0.0, %v2176
    %v2178 = vpop.f32.mrb[0].mxu0
    %2179 = vdwg.mxu0
    %v2180 = vmul.f32 %v2177, %v1219
    %s2181 = scalar_lea.vmem [#allocation8], 32
    %v2182 = vld [vmem:[%s2181] sm:$0xff]
    %v2183 = vld [vmem:[%s2181 + $0x8] sm:$0xff]
    %v2184 = vld [vmem:[%s2181 + $0x10] sm:$0xff]
    %v2185 = vld [vmem:[%s2181 + $0x18] sm:$0xff]
    %s2186 = scalar_lea.vmem [#allocation10], 32
    %v2187 = vld [vmem:[%s2186] sm:$0xff]
    %v2188 = vld [vmem:[%s2186 + $0x8] sm:$0xff]
    %v2189 = vld [vmem:[%s2186 + $0x10] sm:$0xff]
    %v2190 = vld [vmem:[%s2186 + $0x18] sm:$0xff]
    %v2192 = vsel %vm252, %v2180, 0
    %2194 = vmatprep.subr.mxu0 0.0
    %2195 = vmatpush1.msra.mxu0 %v2187
    %2196 = vmatprep.subr.mxu0 0.0
    %2197 = vmatpush1.msra.mxu0 %v2188
    %2198 = vmatprep.subr.mxu0 0.0
    %2199 = vmatpush1.msra.mxu0 %v2189
    %2200 = vmatprep.subr.mxu0 0.0
    %2201 = vmatpush1.msra.mxu0 %v2190
    %2202 = vmatprep.subr.mxu0 0.0
    %2203 = vmatpush1.msra.mxu0 0.0
    %2204 = vmatprep.subr.mxu0 0.0
    %2205 = vmatpush1.msra.mxu0 0.0
    %2206 = vmatprep.subr.mxu0 0.0
    %2207 = vmatpush1.msra.mxu0 0.0
    %2208 = vmatprep.subr.mxu0 0.0
    %2209 = vmatpush1.msra.mxu0 0.0
    %2210 = vmatprep.subr.mxu0 0.0
    %2211 = vmatpush1.msra.mxu0 0.0
    %2212 = vmatprep.subr.mxu0 0.0
    %2213 = vmatpush1.msra.mxu0 0.0
    %2214 = vmatprep.subr.mxu0 0.0
    %2215 = vmatpush1.msra.mxu0 0.0
    %2216 = vmatprep.subr.mxu0 0.0
    %2217 = vmatpush1.msra.mxu0 0.0
    %2218 = vmatprep.subr.mxu0 0.0
    %2219 = vmatpush1.msra.mxu0 0.0
    %2220 = vmatprep.subr.mxu0 0.0
    %2221 = vmatpush1.msra.mxu0 0.0
    %2222 = vmatprep.subr.mxu0 0.0
    %2223 = vmatpush1.msra.mxu0 0.0
    %2224 = vmatprep.subr.mxu0 0.0
    %2225 = vmatpush1.msra.mxu0 0.0
    %2226 = vmatprep.subr.mxu0 0.0
    %2227 = vmatpush1.msra.mxu0 0.0
    %2228 = vmatprep.subr.mxu0 0.0
    %2229 = vmatpush1.msra.mxu0 0.0
    %2230 = vmatprep.subr.mxu0 0.0
    %2231 = vmatpush1.msra.mxu0 0.0
    %2232 = vmatprep.subr.mxu0 0.0
    %2233 = vmatpush1.msra.mxu0 0.0
    %2234 = vmatprep.subr.mxu0 0.0
    %2235 = vmatpush1.msra.mxu0 0.0
    %2236 = vmatprep.subr.mxu0 0.0
    %2237 = vmatpush1.msra.mxu0 0.0
    %2238 = vmatprep.subr.mxu0 0.0
    %2239 = vmatpush1.msra.mxu0 0.0
    %2240 = vmatprep.subr.mxu0 0.0
    %2241 = vmatpush1.msra.mxu0 0.0
    %2242 = vmatprep.subr.mxu0 0.0
    %2243 = vmatpush1.msra.mxu0 0.0
    %2244 = vmatprep.subr.mxu0 0.0
    %2245 = vmatpush1.msra.mxu0 0.0
    %2246 = vmatprep.subr.mxu0 0.0
    %2247 = vmatpush1.msra.mxu0 0.0
    %2248 = vmatprep.subr.mxu0 0.0
    %2249 = vmatpush1.msra.mxu0 0.0
    %2250 = vmatprep.subr.mxu0 0.0
    %2251 = vmatpush1.msra.mxu0 0.0
    %2252 = vmatprep.subr.mxu0 0.0
    %2253 = vmatpush1.msra.mxu0 0.0
    %2254 = vmatprep.subr.mxu0 0.0
    %2255 = vmatpush1.msra.mxu0 0.0
    %2256 = vmatprep.subr.mxu0 0.0
    %2257 = vmatpush1.msra.mxu0 0.0
    %2258 = vmatprep.mubr.f32.mxu0 0.0
    %2259 = vmatmul.mubr.f32.gmra.mrb[0].mxu0 %v2192
    %v2260 = vpop.f32.mrb[0].mxu0
    %v2261 = vadd.f32 0.0, %v2260
    %v2262 = vpop.f32.mrb[0].mxu0
    %2263 = vdwg.mxu0
    %2264 = vmatprep.subr.mxu0 0.0
    %2265 = vmatpush1.msra.mxu0 %v2182
    %2266 = vmatprep.subr.mxu0 0.0
    %2267 = vmatpush1.msra.mxu0 %v2183
    %2268 = vmatprep.subr.mxu0 0.0
    %2269 = vmatpush1.msra.mxu0 %v2184
    %2270 = vmatprep.subr.mxu0 0.0
    %2271 = vmatpush1.msra.mxu0 %v2185
    %2272 = vmatprep.subr.mxu0 0.0
    %2273 = vmatpush1.msra.mxu0 0.0
    %2274 = vmatprep.subr.mxu0 0.0
    %2275 = vmatpush1.msra.mxu0 0.0
    %2276 = vmatprep.subr.mxu0 0.0
    %2277 = vmatpush1.msra.mxu0 0.0
    %2278 = vmatprep.subr.mxu0 0.0
    %2279 = vmatpush1.msra.mxu0 0.0
    %2280 = vmatprep.subr.mxu0 0.0
    %2281 = vmatpush1.msra.mxu0 0.0
    %2282 = vmatprep.subr.mxu0 0.0
    %2283 = vmatpush1.msra.mxu0 0.0
    %2284 = vmatprep.subr.mxu0 0.0
    %2285 = vmatpush1.msra.mxu0 0.0
    %2286 = vmatprep.subr.mxu0 0.0
    %2287 = vmatpush1.msra.mxu0 0.0
    %2288 = vmatprep.subr.mxu0 0.0
    %2289 = vmatpush1.msra.mxu0 0.0
    %2290 = vmatprep.subr.mxu0 0.0
    %2291 = vmatpush1.msra.mxu0 0.0
    %2292 = vmatprep.subr.mxu0 0.0
    %2293 = vmatpush1.msra.mxu0 0.0
    %2294 = vmatprep.subr.mxu0 0.0
    %2295 = vmatpush1.msra.mxu0 0.0
    %2296 = vmatprep.subr.mxu0 0.0
    %2297 = vmatpush1.msra.mxu0 0.0
    %2298 = vmatprep.subr.mxu0 0.0
    %2299 = vmatpush1.msra.mxu0 0.0
    %2300 = vmatprep.subr.mxu0 0.0
    %2301 = vmatpush1.msra.mxu0 0.0
    %2302 = vmatprep.subr.mxu0 0.0
    %2303 = vmatpush1.msra.mxu0 0.0
    %2304 = vmatprep.subr.mxu0 0.0
    %2305 = vmatpush1.msra.mxu0 0.0
    %2306 = vmatprep.subr.mxu0 0.0
    %2307 = vmatpush1.msra.mxu0 0.0
    %2308 = vmatprep.subr.mxu0 0.0
    %2309 = vmatpush1.msra.mxu0 0.0
    %2310 = vmatprep.subr.mxu0 0.0
    %2311 = vmatpush1.msra.mxu0 0.0
    %2312 = vmatprep.subr.mxu0 0.0
    %2313 = vmatpush1.msra.mxu0 0.0
    %2314 = vmatprep.subr.mxu0 0.0
    %2315 = vmatpush1.msra.mxu0 0.0
    %2316 = vmatprep.subr.mxu0 0.0
    %2317 = vmatpush1.msra.mxu0 0.0
    %2318 = vmatprep.subr.mxu0 0.0
    %2319 = vmatpush1.msra.mxu0 0.0
    %2320 = vmatprep.subr.mxu0 0.0
    %2321 = vmatpush1.msra.mxu0 0.0
    %2322 = vmatprep.subr.mxu0 0.0
    %2323 = vmatpush1.msra.mxu0 0.0
    %2324 = vmatprep.subr.mxu0 0.0
    %2325 = vmatpush1.msra.mxu0 0.0
    %2326 = vmatprep.subr.mxu0 0.0
    %2327 = vmatpush1.msra.mxu0 0.0
    %2328 = vmatprep.mubr.f32.mxu0 0.0
    %2329 = vmatmul.mubr.f32.gmra.mrb[0].mxu0 %v1478
    %v2330 = vpop.f32.mrb[0].mxu0
    %v2331 = vadd.f32 %v2261, %v2330
    %v2332 = vpop.f32.mrb[0].mxu0
    %2333 = vdwg.mxu0
    %s2334 = scalar_lea.vmem [#allocation11], 1
    %v2335 = vld [vmem:[%s2334] sm:$0x1]
    %v2337 = vlaneseq
    %v2338 = vshrl.u32 %v2337, 7
    %v2339 = vsub.s32 0, %v2338
    %v2340 = vrot.slane %v2335, %v2339
    %v2342 = vadd.f32 %v2331, %v2340
    %v2343 = vsub.f32 0.0, %v2342
    %v2344 = vmul.f32 %v2343, 1.442695
    %v2345 = vpow.pop %v2344
    %v2346 = vadd.f32 %v2345, 1.0
    %v2347 = vrcp.pop %v2346
    %v2348 = vmul.f32 1.0, %v2347
    %v2349 = vmul.f32 %v2342, %v2348
    %s2350 = scalar_lea.vmem [#allocation13], 32
    %v2351 = vld [vmem:[%s2350] sm:$0xff]
    %v2352 = vld [vmem:[%s2350 + $0x8] sm:$0xff]
    %v2353 = vld [vmem:[%s2350 + $0x10] sm:$0xff]
    %v2354 = vld [vmem:[%s2350 + $0x18] sm:$0xff]
    %s2355 = scalar_lea.vmem [#allocation14], 1
    %v2356 = vld [vmem:[%s2355] sm:$0x1]
    %v2358 = vlaneseq
    %v2359 = vshrl.u32 %v2358, 7
    %v2360 = vsub.s32 0, %v2359
    %v2361 = vrot.slane %v2356, %v2360
    %v2364 = vsel %vm252, %v2349, 0
    %2366 = vmatprep.subr.mxu0 0.0
    %2367 = vmatpush1.msra.mxu0 %v2351
    %2368 = vmatprep.subr.mxu0 0.0
    %2369 = vmatpush1.msra.mxu0 %v2352
    %2370 = vmatprep.subr.mxu0 0.0
    %2371 = vmatpush1.msra.mxu0 %v2353
    %2372 = vmatprep.subr.mxu0 0.0
    %2373 = vmatpush1.msra.mxu0 %v2354
    %2374 = vmatprep.subr.mxu0 0.0
    %2375 = vmatpush1.msra.mxu0 0.0
    %2376 = vmatprep.subr.mxu0 0.0
    %2377 = vmatpush1.msra.mxu0 0.0
    %2378 = vmatprep.subr.mxu0 0.0
    %2379 = vmatpush1.msra.mxu0 0.0
    %2380 = vmatprep.subr.mxu0 0.0
    %2381 = vmatpush1.msra.mxu0 0.0
    %2382 = vmatprep.subr.mxu0 0.0
    %2383 = vmatpush1.msra.mxu0 0.0
    %2384 = vmatprep.subr.mxu0 0.0
    %2385 = vmatpush1.msra.mxu0 0.0
    %2386 = vmatprep.subr.mxu0 0.0
    %2387 = vmatpush1.msra.mxu0 0.0
    %2388 = vmatprep.subr.mxu0 0.0
    %2389 = vmatpush1.msra.mxu0 0.0
    %2390 = vmatprep.subr.mxu0 0.0
    %2391 = vmatpush1.msra.mxu0 0.0
    %2392 = vmatprep.subr.mxu0 0.0
    %2393 = vmatpush1.msra.mxu0 0.0
    %2394 = vmatprep.subr.mxu0 0.0
    %2395 = vmatpush1.msra.mxu0 0.0
    %2396 = vmatprep.subr.mxu0 0.0
    %2397 = vmatpush1.msra.mxu0 0.0
    %2398 = vmatprep.subr.mxu0 0.0
    %2399 = vmatpush1.msra.mxu0 0.0
    %2400 = vmatprep.subr.mxu0 0.0
    %2401 = vmatpush1.msra.mxu0 0.0
    %2402 = vmatprep.subr.mxu0 0.0
    %2403 = vmatpush1.msra.mxu0 0.0
    %2404 = vmatprep.subr.mxu0 0.0
    %2405 = vmatpush1.msra.mxu0 0.0
    %2406 = vmatprep.subr.mxu0 0.0
    %2407 = vmatpush1.msra.mxu0 0.0
    %2408 = vmatprep.subr.mxu0 0.0
    %2409 = vmatpush1.msra.mxu0 0.0
    %2410 = vmatprep.subr.mxu0 0.0
    %2411 = vmatpush1.msra.mxu0 0.0
    %2412 = vmatprep.subr.mxu0 0.0
    %2413 = vmatpush1.msra.mxu0 0.0
    %2414 = vmatprep.subr.mxu0 0.0
    %2415 = vmatpush1.msra.mxu0 0.0
    %2416 = vmatprep.subr.mxu0 0.0
    %2417 = vmatpush1.msra.mxu0 0.0
    %2418 = vmatprep.subr.mxu0 0.0
    %2419 = vmatpush1.msra.mxu0 0.0
    %2420 = vmatprep.subr.mxu0 0.0
    %2421 = vmatpush1.msra.mxu0 0.0
    %2422 = vmatprep.subr.mxu0 0.0
    %2423 = vmatpush1.msra.mxu0 0.0
    %2424 = vmatprep.subr.mxu0 0.0
    %2425 = vmatpush1.msra.mxu0 0.0
    %2426 = vmatprep.subr.mxu0 0.0
    %2427 = vmatpush1.msra.mxu0 0.0
    %2428 = vmatprep.subr.mxu0 0.0
    %2429 = vmatpush1.msra.mxu0 0.0
    %2430 = vmatprep.mubr.f32.mxu0 0.0
    %2431 = vmatmul.mubr.f32.gmra.mrb[0].mxu0 %v2364
    %v2432 = vpop.f32.mrb[0].mxu0
    %v2433 = vadd.f32 %v2361, %v2432
    %v2434 = vpop.f32.mrb[0].mxu0
    %2435 = vdwg.mxu0
    %v2436 = vadd.f32 %v1471, %v2433
    %2437 = vst.msk [vmem:[#allocation19] sm:$0xff] %vm252, %v2436
    %v2438 = vld [vmem:[%s16] sm:$0xff]
    %v2439 = vld [vmem:[%s16 + $0x8] sm:$0xff]
    %v2440 = vld [vmem:[%s16 + $0x10] sm:$0xff]
    %v2441 = vld [vmem:[%s16 + $0x18] sm:$0xff]
    %v2443 = vsel %vm252, %v2436, 0
    %2445 = vmatprep.subr.mxu0 0.0
    %2446 = vmatpush1.msra.mxu0 %v2438
    %2447 = vmatprep.subr.mxu0 0.0
    %2448 = vmatpush1.msra.mxu0 %v2439
    %2449 = vmatprep.subr.mxu0 0.0
    %2450 = vmatpush1.msra.mxu0 %v2440
    %2451 = vmatprep.subr.mxu0 0.0
    %2452 = vmatpush1.msra.mxu0 %v2441
    %2453 = vmatprep.subr.mxu0 0.0
    %2454 = vmatpush1.msra.mxu0 0.0
    %2455 = vmatprep.subr.mxu0 0.0
    %2456 = vmatpush1.msra.mxu0 0.0
    %2457 = vmatprep.subr.mxu0 0.0
    %2458 = vmatpush1.msra.mxu0 0.0
    %2459 = vmatprep.subr.mxu0 0.0
    %2460 = vmatpush1.msra.mxu0 0.0
    %2461 = vmatprep.subr.mxu0 0.0
    %2462 = vmatpush1.msra.mxu0 0.0
    %2463 = vmatprep.subr.mxu0 0.0
    %2464 = vmatpush1.msra.mxu0 0.0
    %2465 = vmatprep.subr.mxu0 0.0
    %2466 = vmatpush1.msra.mxu0 0.0
    %2467 = vmatprep.subr.mxu0 0.0
    %2468 = vmatpush1.msra.mxu0 0.0
    %2469 = vmatprep.subr.mxu0 0.0
    %2470 = vmatpush1.msra.mxu0 0.0
    %2471 = vmatprep.subr.mxu0 0.0
    %2472 = vmatpush1.msra.mxu0 0.0
    %2473 = vmatprep.subr.mxu0 0.0
    %2474 = vmatpush1.msra.mxu0 0.0
    %2475 = vmatprep.subr.mxu0 0.0
    %2476 = vmatpush1.msra.mxu0 0.0
    %2477 = vmatprep.subr.mxu0 0.0
    %2478 = vmatpush1.msra.mxu0 0.0
    %2479 = vmatprep.subr.mxu0 0.0
    %2480 = vmatpush1.msra.mxu0 0.0
    %2481 = vmatprep.subr.mxu0 0.0
    %2482 = vmatpush1.msra.mxu0 0.0
    %2483 = vmatprep.subr.mxu0 0.0
    %2484 = vmatpush1.msra.mxu0 0.0
    %2485 = vmatprep.subr.mxu0 0.0
    %2486 = vmatpush1.msra.mxu0 0.0
    %2487 = vmatprep.subr.mxu0 0.0
    %2488 = vmatpush1.msra.mxu0 0.0
    %2489 = vmatprep.subr.mxu0 0.0
    %2490 = vmatpush1.msra.mxu0 0.0
    %2491 = vmatprep.subr.mxu0 0.0
    %2492 = vmatpush1.msra.mxu0 0.0
    %2493 = vmatprep.subr.mxu0 0.0
    %2494 = vmatpush1.msra.mxu0 0.0
    %2495 = vmatprep.subr.mxu0 0.0
    %2496 = vmatpush1.msra.mxu0 0.0
    %2497 = vmatprep.subr.mxu0 0.0
    %2498 = vmatpush1.msra.mxu0 0.0
    %2499 = vmatprep.subr.mxu0 0.0
    %2500 = vmatpush1.msra.mxu0 0.0
    %2501 = vmatprep.subr.mxu0 0.0
    %2502 = vmatpush1.msra.mxu0 0.0
    %2503 = vmatprep.subr.mxu0 0.0
    %2504 = vmatpush1.msra.mxu0 0.0
    %2505 = vmatprep.subr.mxu0 0.0
    %2506 = vmatpush1.msra.mxu0 0.0
    %2507 = vmatprep.subr.mxu0 0.0
    %2508 = vmatpush1.msra.mxu0 0.0
    %2509 = vmatprep.mubr.f32.mxu0 0.0
    %2510 = vmatmul.mubr.f32.gmra.mrb[0].mxu0 %v2443
    %v2511 = vpop.f32.mrb[0].mxu0
    %v2512 = vadd.f32 0.0, %v2511
    %v2513 = vpop.f32.mrb[0].mxu0
    %2514 = vdwg.mxu0
    %v2515 = vld [vmem:[#allocation16] sm:$0xff]
    %v2516 = vld [vmem:[#allocation16 + $0x8] sm:$0xff]
    %v2517 = vld [vmem:[#allocation16 + $0x10] sm:$0xff]
    %v2518 = vld [vmem:[#allocation16 + $0x18] sm:$0xff]
    %2519 = vmatprep.subr.mxu0 0.0
    %2520 = vmatpush1.msra.mxu0 %v2515
    %2521 = vmatprep.subr.mxu0 0.0
    %2522 = vmatpush1.msra.mxu0 %v2516
    %2523 = vmatprep.subr.mxu0 0.0
    %2524 = vmatpush1.msra.mxu0 %v2517
    %2525 = vmatprep.subr.mxu0 0.0
    %2526 = vmatpush1.msra.mxu0 %v2518
    %2527 = vmatprep.subr.mxu0 0.0
    %2528 = vmatpush1.msra.mxu0 0.0
    %2529 = vmatprep.subr.mxu0 0.0
    %2530 = vmatpush1.msra.mxu0 0.0
    %2531 = vmatprep.subr.mxu0 0.0
    %2532 = vmatpush1.msra.mxu0 0.0
    %2533 = vmatprep.subr.mxu0 0.0
    %2534 = vmatpush1.msra.mxu0 0.0
    %2535 = vmatprep.subr.mxu0 0.0
    %2536 = vmatpush1.msra.mxu0 0.0
    %2537 = vmatprep.subr.mxu0 0.0
    %2538 = vmatpush1.msra.mxu0 0.0
    %2539 = vmatprep.subr.mxu0 0.0
    %2540 = vmatpush1.msra.mxu0 0.0
    %2541 = vmatprep.subr.mxu0 0.0
    %2542 = vmatpush1.msra.mxu0 0.0
    %2543 = vmatprep.subr.mxu0 0.0
    %2544 = vmatpush1.msra.mxu0 0.0
    %2545 = vmatprep.subr.mxu0 0.0
    %2546 = vmatpush1.msra.mxu0 0.0
    %2547 = vmatprep.subr.mxu0 0.0
    %2548 = vmatpush1.msra.mxu0 0.0
    %2549 = vmatprep.subr.mxu0 0.0
    %2550 = vmatpush1.msra.mxu0 0.0
    %2551 = vmatprep.subr.mxu0 0.0
    %2552 = vmatpush1.msra.mxu0 0.0
    %2553 = vmatprep.subr.mxu0 0.0
    %2554 = vmatpush1.msra.mxu0 0.0
    %2555 = vmatprep.subr.mxu0 0.0
    %2556 = vmatpush1.msra.mxu0 0.0
    %2557 = vmatprep.subr.mxu0 0.0
    %2558 = vmatpush1.msra.mxu0 0.0
    %2559 = vmatprep.subr.mxu0 0.0
    %2560 = vmatpush1.msra.mxu0 0.0
    %2561 = vmatprep.subr.mxu0 0.0
    %2562 = vmatpush1.msra.mxu0 0.0
    %2563 = vmatprep.subr.mxu0 0.0
    %2564 = vmatpush1.msra.mxu0 0.0
    %2565 = vmatprep.subr.mxu0 0.0
    %2566 = vmatpush1.msra.mxu0 0.0
    %2567 = vmatprep.subr.mxu0 0.0
    %2568 = vmatpush1.msra.mxu0 0.0
    %2569 = vmatprep.subr.mxu0 0.0
    %2570 = vmatpush1.msra.mxu0 0.0
    %2571 = vmatprep.subr.mxu0 0.0
    %2572 = vmatpush1.msra.mxu0 0.0
    %2573 = vmatprep.subr.mxu0 0.0
    %2574 = vmatpush1.msra.mxu0 0.0
    %2575 = vmatprep.subr.mxu0 0.0
    %2576 = vmatpush1.msra.mxu0 0.0
    %2577 = vmatprep.subr.mxu0 0.0
    %2578 = vmatpush1.msra.mxu0 0.0
    %2579 = vmatprep.subr.mxu0 0.0
    %2580 = vmatpush1.msra.mxu0 0.0
    %2581 = vmatprep.subr.mxu0 0.0
    %2582 = vmatpush1.msra.mxu0 0.0
    %2583 = vmatprep.mubr.f32.mxu0 0.0
    %2584 = vmatmul.mubr.f32.gmra.mrb[0].mxu0 %v2443
    %v2585 = vpop.f32.mrb[0].mxu0
    %v2586 = vadd.f32 0.0, %v2585
    %v2587 = vpop.f32.mrb[0].mxu0
    %2588 = vdwg.mxu0
    %2589 = vmatprep.subr.mxu0 0.0
    %2590 = vmatpush1.msra.mxu0 %v2586
    %2591 = vmatprep.subr.mxu0 0.0
    %2592 = vmatpush1.msra.mxu0 0.0
    %2593 = vmatprep.subr.mxu0 0.0
    %2594 = vmatpush1.msra.mxu0 0.0
    %2595 = vmatprep.subr.mxu0 0.0
    %2596 = vmatpush1.msra.mxu0 0.0
    %2597 = vmatprep.subr.mxu0 0.0
    %2598 = vmatpush1.msra.mxu0 0.0
    %2599 = vmatprep.subr.mxu0 0.0
    %2600 = vmatpush1.msra.mxu0 0.0
    %2601 = vmatprep.subr.mxu0 0.0
    %2602 = vmatpush1.msra.mxu0 0.0
    %2603 = vmatprep.subr.mxu0 0.0
    %2604 = vmatpush1.msra.mxu0 0.0
    %2605 = vmatprep.subr.mxu0 0.0
    %2606 = vmatpush1.msra.mxu0 0.0
    %2607 = vmatprep.subr.mxu0 0.0
    %2608 = vmatpush1.msra.mxu0 0.0
    %2609 = vmatprep.subr.mxu0 0.0
    %2610 = vmatpush1.msra.mxu0 0.0
    %2611 = vmatprep.subr.mxu0 0.0
    %2612 = vmatpush1.msra.mxu0 0.0
    %2613 = vmatprep.subr.mxu0 0.0
    %2614 = vmatpush1.msra.mxu0 0.0
    %2615 = vmatprep.subr.mxu0 0.0
    %2616 = vmatpush1.msra.mxu0 0.0
    %2617 = vmatprep.subr.mxu0 0.0
    %2618 = vmatpush1.msra.mxu0 0.0
    %2619 = vmatprep.subr.mxu0 0.0
    %2620 = vmatpush1.msra.mxu0 0.0
    %2621 = vmatprep.subr.mxu0 0.0
    %2622 = vmatpush1.msra.mxu0 0.0
    %2623 = vmatprep.subr.mxu0 0.0
    %2624 = vmatpush1.msra.mxu0 0.0
    %2625 = vmatprep.subr.mxu0 0.0
    %2626 = vmatpush1.msra.mxu0 0.0
    %2627 = vmatprep.subr.mxu0 0.0
    %2628 = vmatpush1.msra.mxu0 0.0
    %2629 = vmatprep.subr.mxu0 0.0
    %2630 = vmatpush1.msra.mxu0 0.0
    %2631 = vmatprep.subr.mxu0 0.0
    %2632 = vmatpush1.msra.mxu0 0.0
    %2633 = vmatprep.subr.mxu0 0.0
    %2634 = vmatpush1.msra.mxu0 0.0
    %2635 = vmatprep.subr.mxu0 0.0
    %2636 = vmatpush1.msra.mxu0 0.0
    %2637 = vmatprep.subr.mxu0 0.0
    %2638 = vmatpush1.msra.mxu0 0.0
    %2639 = vmatprep.subr.mxu0 0.0
    %2640 = vmatpush1.msra.mxu0 0.0
    %2641 = vmatprep.subr.mxu0 0.0
    %2642 = vmatpush1.msra.mxu0 0.0
    %2643 = vmatprep.subr.mxu0 0.0
    %2644 = vmatpush1.msra.mxu0 0.0
    %2645 = vmatprep.subr.mxu0 0.0
    %2646 = vmatpush1.msra.mxu0 0.0
    %2647 = vmatprep.subr.mxu0 0.0
    %2648 = vmatpush1.msra.mxu0 0.0
    %2649 = vmatprep.subr.mxu0 0.0
    %2650 = vmatpush1.msra.mxu0 0.0
    %2651 = vmatprep.subr.mxu0 0.0
    %2652 = vmatpush1.msra.mxu0 0.0
    %2653 = vmatprep.mubr.f32.mxu0 0.0
    %2654 = vmatmul.mubr.f32.gmra.mrb[0].mxu0 %v529
    %v2655 = vpop.f32.mrb[0].mxu0
    %v2656 = vadd.f32 0.0, %v2655
    %v2657 = vpop.f32.mrb[0].mxu0
    %2658 = vmatprep.mubr.f32.mxu0 0.0
    %2659 = vmatmul.mubr.f32.gmra.mrb[0].mxu0 %v532
    %v2660 = vpop.f32.mrb[0].mxu0
    %v2661 = vadd.f32 0.0, %v2660
    %v2662 = vpop.f32.mrb[0].mxu0
    %2663 = vmatprep.mubr.f32.mxu0 0.0
    %2664 = vmatmul.mubr.f32.gmra.mrb[0].mxu0 %v535
    %v2665 = vpop.f32.mrb[0].mxu0
    %v2666 = vadd.f32 0.0, %v2665
    %v2667 = vpop.f32.mrb[0].mxu0
    %2668 = vmatprep.mubr.f32.mxu0 0.0
    %2669 = vmatmul.mubr.f32.gmra.mrb[0].mxu0 %v538
    %v2670 = vpop.f32.mrb[0].mxu0
    %v2671 = vadd.f32 0.0, %v2670
    %v2672 = vpop.f32.mrb[0].mxu0
    %2673 = vmatprep.mubr.f32.mxu0 0.0
    %2674 = vmatmul.mubr.f32.gmra.mrb[0].mxu0 %v541
    %v2675 = vpop.f32.mrb[0].mxu0
    %v2676 = vadd.f32 0.0, %v2675
    %v2677 = vpop.f32.mrb[0].mxu0
    %2678 = vmatprep.mubr.f32.mxu0 0.0
    %2679 = vmatmul.mubr.f32.gmra.mrb[0].mxu0 %v544
    %v2680 = vpop.f32.mrb[0].mxu0
    %v2681 = vadd.f32 0.0, %v2680
    %v2682 = vpop.f32.mrb[0].mxu0
    %2683 = vmatprep.mubr.f32.mxu0 0.0
    %2684 = vmatmul.mubr.f32.gmra.mrb[0].mxu0 %v547
    %v2685 = vpop.f32.mrb[0].mxu0
    %v2686 = vadd.f32 0.0, %v2685
    %v2687 = vpop.f32.mrb[0].mxu0
    %2688 = vdwg.mxu0
    %v2689 = vld [vmem:[%s18] sm:$0x3]
    %2690 = vmatprep.subr.mxu0 0.0
    %2691 = vmatpush1.msra.mxu0 %v2512
    %2692 = vmatprep.subr.mxu0 0.0
    %2693 = vmatpush1.msra.mxu0 0.0
    %2694 = vmatprep.subr.mxu0 0.0
    %2695 = vmatpush1.msra.mxu0 0.0
    %2696 = vmatprep.subr.mxu0 0.0
    %2697 = vmatpush1.msra.mxu0 0.0
    %2698 = vmatprep.subr.mxu0 0.0
    %2699 = vmatpush1.msra.mxu0 0.0
    %2700 = vmatprep.subr.mxu0 0.0
    %2701 = vmatpush1.msra.mxu0 0.0
    %2702 = vmatprep.subr.mxu0 0.0
    %2703 = vmatpush1.msra.mxu0 0.0
    %2704 = vmatprep.subr.mxu0 0.0
    %2705 = vmatpush1.msra.mxu0 0.0
    %2706 = vmatprep.subr.mxu0 0.0
    %2707 = vmatpush1.msra.mxu0 0.0
    %2708 = vmatprep.subr.mxu0 0.0
    %2709 = vmatpush1.msra.mxu0 0.0
    %2710 = vmatprep.subr.mxu0 0.0
    %2711 = vmatpush1.msra.mxu0 0.0
    %2712 = vmatprep.subr.mxu0 0.0
    %2713 = vmatpush1.msra.mxu0 0.0
    %2714 = vmatprep.subr.mxu0 0.0
    %2715 = vmatpush1.msra.mxu0 0.0
    %2716 = vmatprep.subr.mxu0 0.0
    %2717 = vmatpush1.msra.mxu0 0.0
    %2718 = vmatprep.subr.mxu0 0.0
    %2719 = vmatpush1.msra.mxu0 0.0
    %2720 = vmatprep.subr.mxu0 0.0
    %2721 = vmatpush1.msra.mxu0 0.0
    %2722 = vmatprep.subr.mxu0 0.0
    %2723 = vmatpush1.msra.mxu0 0.0
    %2724 = vmatprep.subr.mxu0 0.0
    %2725 = vmatpush1.msra.mxu0 0.0
    %2726 = vmatprep.subr.mxu0 0.0
    %2727 = vmatpush1.msra.mxu0 0.0
    %2728 = vmatprep.subr.mxu0 0.0
    %2729 = vmatpush1.msra.mxu0 0.0
    %2730 = vmatprep.subr.mxu0 0.0
    %2731 = vmatpush1.msra.mxu0 0.0
    %2732 = vmatprep.subr.mxu0 0.0
    %2733 = vmatpush1.msra.mxu0 0.0
    %2734 = vmatprep.subr.mxu0 0.0
    %2735 = vmatpush1.msra.mxu0 0.0
    %2736 = vmatprep.subr.mxu0 0.0
    %2737 = vmatpush1.msra.mxu0 0.0
    %2738 = vmatprep.subr.mxu0 0.0
    %2739 = vmatpush1.msra.mxu0 0.0
    %2740 = vmatprep.subr.mxu0 0.0
    %2741 = vmatpush1.msra.mxu0 0.0
    %2742 = vmatprep.subr.mxu0 0.0
    %2743 = vmatpush1.msra.mxu0 0.0
    %2744 = vmatprep.subr.mxu0 0.0
    %2745 = vmatpush1.msra.mxu0 0.0
    %2746 = vmatprep.subr.mxu0 0.0
    %2747 = vmatpush1.msra.mxu0 0.0
    %2748 = vmatprep.subr.mxu0 0.0
    %2749 = vmatpush1.msra.mxu0 0.0
    %2750 = vmatprep.subr.mxu0 0.0
    %2751 = vmatpush1.msra.mxu0 0.0
    %2752 = vmatprep.subr.mxu0 0.0
    %2753 = vmatpush1.msra.mxu0 0.0
    %2754 = vmatprep.mubr.f32.mxu0 0.0
    %2755 = vmatmul.mubr.f32.gmra.mrb[0].mxu0 %v408
    %v2756 = vpop.f32.mrb[0].mxu0
    %v2757 = vadd.f32 %v2656, %v2756
    %v2758 = vpop.f32.mrb[0].mxu0
    %2759 = vmatprep.mubr.f32.mxu0 0.0
    %2760 = vmatmul.mubr.f32.gmra.mrb[0].mxu0 %v411
    %v2761 = vpop.f32.mrb[0].mxu0
    %v2762 = vadd.f32 %v2661, %v2761
    %v2763 = vpop.f32.mrb[0].mxu0
    %2764 = vmatprep.mubr.f32.mxu0 0.0
    %2765 = vmatmul.mubr.f32.gmra.mrb[0].mxu0 %v414
    %v2766 = vpop.f32.mrb[0].mxu0
    %v2767 = vadd.f32 %v2666, %v2766
    %v2768 = vpop.f32.mrb[0].mxu0
    %2769 = vmatprep.mubr.f32.mxu0 0.0
    %2770 = vmatmul.mubr.f32.gmra.mrb[0].mxu0 %v417
    %v2771 = vpop.f32.mrb[0].mxu0
    %v2772 = vadd.f32 %v2671, %v2771
    %v2773 = vpop.f32.mrb[0].mxu0
    %2774 = vmatprep.mubr.f32.mxu0 0.0
    %2775 = vmatmul.mubr.f32.gmra.mrb[0].mxu0 %v420
    %v2776 = vpop.f32.mrb[0].mxu0
    %v2777 = vadd.f32 %v2676, %v2776
    %v2778 = vpop.f32.mrb[0].mxu0
    %2779 = vmatprep.mubr.f32.mxu0 0.0
    %2780 = vmatmul.mubr.f32.gmra.mrb[0].mxu0 %v423
    %v2781 = vpop.f32.mrb[0].mxu0
    %v2782 = vadd.f32 %v2681, %v2781
    %v2783 = vpop.f32.mrb[0].mxu0
    %2784 = vmatprep.mubr.f32.mxu0 0.0
    %2785 = vmatmul.mubr.f32.gmra.mrb[0].mxu0 %v426
    %v2786 = vpop.f32.mrb[0].mxu0
    %v2787 = vadd.f32 %v2686, %v2786
    %v2788 = vpop.f32.mrb[0].mxu0
    %2789 = vdwg.mxu0
    %v2790 = vlaneseq
    %v2791 = vshrl.u32 %v2790, 7
    %v2792 = vsub.s32 0, %v2791
    %v2793 = vrot.slane %v2689, %v2792
    %v2794 = vmul.f32 %v694, %v2793
    %v2795 = vmul.f32 %v697, %v2793
    %v2796 = vmul.f32 %v700, %v2793
    %v2797 = vmul.f32 %v703, %v2793
    %v2798 = vmul.f32 %v706, %v2793
    %v2799 = vmul.f32 %v709, %v2793
    %v2800 = vmul.f32 %v712, %v2793
    %v2801 = vadd.f32 %v2757, %v2794
    %v2802 = vadd.f32 %v2762, %v2795
    %v2803 = vadd.f32 %v2767, %v2796
    %v2804 = vadd.f32 %v2772, %v2797
    %v2805 = vadd.f32 %v2777, %v2798
    %v2806 = vadd.f32 %v2782, %v2799
    %v2807 = vadd.f32 %v2787, %v2800
    %v2808 = vlaneseq
    %v2809 = vshrl.u32 %v2808, 7
    %v2810 = vsub.s32 1, %v2809
    %v2811 = vrot.slane %v2689, %v2810
    %v2812 = vmul.f32 %v819, %v2811
    %v2813 = vmul.f32 %v824, %v2811
    %v2814 = vmul.f32 %v829, %v2811
    %v2815 = vmul.f32 %v834, %v2811
    %v2816 = vmul.f32 %v839, %v2811
    %v2817 = vmul.f32 %v844, %v2811
    %v2818 = vmul.f32 %v849, %v2811
    %v2819 = vadd.f32 %v2801, %v2812
    %v2820 = vadd.f32 %v2802, %v2813
    %v2821 = vadd.f32 %v2803, %v2814
    %v2822 = vadd.f32 %v2804, %v2815
    %v2823 = vadd.f32 %v2805, %v2816
    %v2824 = vadd.f32 %v2806, %v2817
    %v2825 = vadd.f32 %v2807, %v2818
    %v2826 = vld [vmem:[%s19] sm:$0x1]
    %v2828 = vlaneseq
    %v2829 = vshrl.u32 %v2828, 7
    %v2830 = vsub.s32 0, %v2829
    %v2831 = vrot.slane %v2826, %v2830
    %v2833 = vadd.f32 %v2819, %v2831
    %v2834 = vadd.f32 %v2820, %v2831
    %v2835 = vadd.f32 %v2821, %v2831
    %v2836 = vadd.f32 %v2822, %v2831
    %v2837 = vadd.f32 %v2823, %v2831
    %v2838 = vadd.f32 %v2824, %v2831
    %v2839 = vadd.f32 %v2825, %v2831
    %v2840 = vsub.f32 0.0, %v2833
    %v2841 = vsub.f32 0.0, %v2834
    %v2842 = vsub.f32 0.0, %v2835
    %v2843 = vsub.f32 0.0, %v2836
    %v2844 = vsub.f32 0.0, %v2837
    %v2845 = vsub.f32 0.0, %v2838
    %v2846 = vsub.f32 0.0, %v2839
    %v2847 = vmul.f32 %v2840, 1.442695
    %v2848 = vpow.pop %v2847
    %v2849 = vmul.f32 %v2841, 1.442695
    %v2850 = vpow.pop %v2849
    %v2851 = vmul.f32 %v2842, 1.442695
    %v2852 = vpow.pop %v2851
    %v2853 = vmul.f32 %v2843, 1.442695
    %v2854 = vpow.pop %v2853
    %v2855 = vmul.f32 %v2844, 1.442695
    %v2856 = vpow.pop %v2855
    %v2857 = vmul.f32 %v2845, 1.442695
    %v2858 = vpow.pop %v2857
    %v2859 = vmul.f32 %v2846, 1.442695
    %v2860 = vpow.pop %v2859
    %v2861 = vadd.f32 %v2848, 1.0
    %v2862 = vadd.f32 %v2850, 1.0
    %v2863 = vadd.f32 %v2852, 1.0
    %v2864 = vadd.f32 %v2854, 1.0
    %v2865 = vadd.f32 %v2856, 1.0
    %v2866 = vadd.f32 %v2858, 1.0
    %v2867 = vadd.f32 %v2860, 1.0
    %v2868 = vrcp.pop %v2861
    %v2869 = vmul.f32 1.0, %v2868
    %v2870 = vrcp.pop %v2862
    %v2871 = vmul.f32 1.0, %v2870
    %v2872 = vrcp.pop %v2863
    %v2873 = vmul.f32 1.0, %v2872
    %v2874 = vrcp.pop %v2864
    %v2875 = vmul.f32 1.0, %v2874
    %v2876 = vrcp.pop %v2865
    %v2877 = vmul.f32 1.0, %v2876
    %v2878 = vrcp.pop %v2866
    %v2879 = vmul.f32 1.0, %v2878
    %v2880 = vrcp.pop %v2867
    %v2881 = vmul.f32 1.0, %v2880
    %v2882 = vmul.f32 %v2833, %v2869
    %v2883 = vmul.f32 %v2834, %v2871
    %v2884 = vmul.f32 %v2835, %v2873
    %v2885 = vmul.f32 %v2836, %v2875
    %v2886 = vmul.f32 %v2837, %v2877
    %v2887 = vmul.f32 %v2838, %v2879
    %v2888 = vmul.f32 %v2839, %v2881
    %v2889 = vld [vmem:[#allocation17] sm:$0xff]
    %v2890 = vld [vmem:[#allocation17 + $0x8] sm:$0xff]
    %v2891 = vld [vmem:[#allocation17 + $0x10] sm:$0xff]
    %v2892 = vld [vmem:[#allocation17 + $0x18] sm:$0xff]
    %v2893 = vld [vmem:[%s21] sm:$0x1]
    %v2895 = vlaneseq
    %v2896 = vshrl.u32 %v2895, 7
    %v2897 = vsub.s32 0, %v2896
    %v2898 = vrot.slane %v2893, %v2897
    %v2901 = vsel %vm252, %v2882, 0
    %v2904 = vsel %vm252, %v2883, 0
    %v2907 = vsel %vm252, %v2884, 0
    %v2910 = vsel %vm252, %v2885, 0
    %v2913 = vsel %vm252, %v2886, 0
    %v2916 = vsel %vm252, %v2887, 0
    %v2919 = vsel %vm252, %v2888, 0
    %2921 = vmatprep.subr.mxu0 0.0
    %2922 = vmatpush1.msra.mxu0 %v2889
    %2923 = vmatprep.subr.mxu0 0.0
    %2924 = vmatpush1.msra.mxu0 %v2890
    %2925 = vmatprep.subr.mxu0 0.0
    %2926 = vmatpush1.msra.mxu0 %v2891
    %2927 = vmatprep.subr.mxu0 0.0
    %2928 = vmatpush1.msra.mxu0 %v2892
    %2929 = vmatprep.subr.mxu0 0.0
    %2930 = vmatpush1.msra.mxu0 0.0
    %2931 = vmatprep.subr.mxu0 0.0
    %2932 = vmatpush1.msra.mxu0 0.0
    %2933 = vmatprep.subr.mxu0 0.0
    %2934 = vmatpush1.msra.mxu0 0.0
    %2935 = vmatprep.subr.mxu0 0.0
    %2936 = vmatpush1.msra.mxu0 0.0
    %2937 = vmatprep.subr.mxu0 0.0
    %2938 = vmatpush1.msra.mxu0 0.0
    %2939 = vmatprep.subr.mxu0 0.0
    %2940 = vmatpush1.msra.mxu0 0.0
    %2941 = vmatprep.subr.mxu0 0.0
    %2942 = vmatpush1.msra.mxu0 0.0
    %2943 = vmatprep.subr.mxu0 0.0
    %2944 = vmatpush1.msra.mxu0 0.0
    %2945 = vmatprep.subr.mxu0 0.0
    %2946 = vmatpush1.msra.mxu0 0.0
    %2947 = vmatprep.subr.mxu0 0.0
    %2948 = vmatpush1.msra.mxu0 0.0
    %2949 = vmatprep.subr.mxu0 0.0
    %2950 = vmatpush1.msra.mxu0 0.0
    %2951 = vmatprep.subr.mxu0 0.0
    %2952 = vmatpush1.msra.mxu0 0.0
    %2953 = vmatprep.subr.mxu0 0.0
    %2954 = vmatpush1.msra.mxu0 0.0
    %2955 = vmatprep.subr.mxu0 0.0
    %2956 = vmatpush1.msra.mxu0 0.0
    %2957 = vmatprep.subr.mxu0 0.0
    %2958 = vmatpush1.msra.mxu0 0.0
    %2959 = vmatprep.subr.mxu0 0.0
    %2960 = vmatpush1.msra.mxu0 0.0
    %2961 = vmatprep.subr.mxu0 0.0
    %2962 = vmatpush1.msra.mxu0 0.0
    %2963 = vmatprep.subr.mxu0 0.0
    %2964 = vmatpush1.msra.mxu0 0.0
    %2965 = vmatprep.subr.mxu0 0.0
    %2966 = vmatpush1.msra.mxu0 0.0
    %2967 = vmatprep.subr.mxu0 0.0
    %2968 = vmatpush1.msra.mxu0 0.0
    %2969 = vmatprep.subr.mxu0 0.0
    %2970 = vmatpush1.msra.mxu0 0.0
    %2971 = vmatprep.subr.mxu0 0.0
    %2972 = vmatpush1.msra.mxu0 0.0
    %2973 = vmatprep.subr.mxu0 0.0
    %2974 = vmatpush1.msra.mxu0 0.0
    %2975 = vmatprep.subr.mxu0 0.0
    %2976 = vmatpush1.msra.mxu0 0.0
    %2977 = vmatprep.subr.mxu0 0.0
    %2978 = vmatpush1.msra.mxu0 0.0
    %2979 = vmatprep.subr.mxu0 0.0
    %2980 = vmatpush1.msra.mxu0 0.0
    %2981 = vmatprep.subr.mxu0 0.0
    %2982 = vmatpush1.msra.mxu0 0.0
    %2983 = vmatprep.subr.mxu0 0.0
    %2984 = vmatpush1.msra.mxu0 0.0
    %2985 = vmatprep.mubr.f32.mxu0 0.0
    %2986 = vmatmul.mubr.f32.gmra.mrb[0].mxu0 %v2901
    %v2987 = vpop.f32.mrb[0].mxu0
    %v2988 = vadd.f32 %v2898, %v2987
    %v2989 = vpop.f32.mrb[0].mxu0
    %2990 = vmatprep.mubr.f32.mxu0 0.0
    %2991 = vmatmul.mubr.f32.gmra.mrb[0].mxu0 %v2904
    %v2992 = vpop.f32.mrb[0].mxu0
    %v2993 = vadd.f32 %v2898, %v2992
    %v2994 = vpop.f32.mrb[0].mxu0
    %2995 = vmatprep.mubr.f32.mxu0 0.0
    %2996 = vmatmul.mubr.f32.gmra.mrb[0].mxu0 %v2907
    %v2997 = vpop.f32.mrb[0].mxu0
    %v2998 = vadd.f32 %v2898, %v2997
    %v2999 = vpop.f32.mrb[0].mxu0
    %3000 = vmatprep.mubr.f32.mxu0 0.0
    %3001 = vmatmul.mubr.f32.gmra.mrb[0].mxu0 %v2910
    %v3002 = vpop.f32.mrb[0].mxu0
    %v3003 = vadd.f32 %v2898, %v3002
    %v3004 = vpop.f32.mrb[0].mxu0
    %3005 = vmatprep.mubr.f32.mxu0 0.0
    %3006 = vmatmul.mubr.f32.gmra.mrb[0].mxu0 %v2913
    %v3007 = vpop.f32.mrb[0].mxu0
    %v3008 = vadd.f32 %v2898, %v3007
    %v3009 = vpop.f32.mrb[0].mxu0
    %3010 = vmatprep.mubr.f32.mxu0 0.0
    %3011 = vmatmul.mubr.f32.gmra.mrb[0].mxu0 %v2916
    %v3012 = vpop.f32.mrb[0].mxu0
    %v3013 = vadd.f32 %v2898, %v3012
    %v3014 = vpop.f32.mrb[0].mxu0
    %3015 = vmatprep.mubr.f32.mxu0 0.0
    %3016 = vmatmul.mubr.f32.gmra.mrb[0].mxu0 %v2919
    %v3017 = vpop.f32.mrb[0].mxu0
    %v3018 = vadd.f32 %v2898, %v3017
    %v3019 = vpop.f32.mrb[0].mxu0
    %3020 = vdwg.mxu0
    %v3021 = vsub.f32 0.0, %v2988
    %v3022 = vsub.f32 0.0, %v2993
    %v3023 = vsub.f32 0.0, %v2998
    %v3024 = vsub.f32 0.0, %v3003
    %v3025 = vsub.f32 0.0, %v3008
    %v3026 = vsub.f32 0.0, %v3013
    %v3027 = vsub.f32 0.0, %v3018
    %v3028 = vmul.f32 %v3021, 1.442695
    %v3029 = vpow.pop %v3028
    %v3030 = vmul.f32 %v3022, 1.442695
    %v3031 = vpow.pop %v3030
    %v3032 = vmul.f32 %v3023, 1.442695
    %v3033 = vpow.pop %v3032
    %v3034 = vmul.f32 %v3024, 1.442695
    %v3035 = vpow.pop %v3034
    %v3036 = vmul.f32 %v3025, 1.442695
    %v3037 = vpow.pop %v3036
    %v3038 = vmul.f32 %v3026, 1.442695
    %v3039 = vpow.pop %v3038
    %v3040 = vmul.f32 %v3027, 1.442695
    %v3041 = vpow.pop %v3040
    %v3042 = vadd.f32 %v3029, 1.0
    %v3043 = vadd.f32 %v3031, 1.0
    %v3044 = vadd.f32 %v3033, 1.0
    %v3045 = vadd.f32 %v3035, 1.0
    %v3046 = vadd.f32 %v3037, 1.0
    %v3047 = vadd.f32 %v3039, 1.0
    %v3048 = vadd.f32 %v3041, 1.0
    %v3049 = vrcp.pop %v3042
    %v3050 = vmul.f32 1.0, %v3049
    %v3051 = vrcp.pop %v3043
    %v3052 = vmul.f32 1.0, %v3051
    %v3053 = vrcp.pop %v3044
    %v3054 = vmul.f32 1.0, %v3053
    %v3055 = vrcp.pop %v3045
    %v3056 = vmul.f32 1.0, %v3055
    %v3057 = vrcp.pop %v3046
    %v3058 = vmul.f32 1.0, %v3057
    %v3059 = vrcp.pop %v3047
    %v3060 = vmul.f32 1.0, %v3059
    %v3061 = vrcp.pop %v3048
    %v3062 = vmul.f32 1.0, %v3061
    %v3063 = vmul.f32 %v2988, %v3050
    %v3064 = vmul.f32 %v2993, %v3052
    %v3065 = vmul.f32 %v2998, %v3054
    %v3066 = vmul.f32 %v3003, %v3056
    %v3067 = vmul.f32 %v3008, %v3058
    %v3068 = vmul.f32 %v3013, %v3060
    %v3069 = vmul.f32 %v3018, %v3062
    %v3070 = vld [vmem:[%s22] sm:$0xff]
    %v3071 = vld [vmem:[%s22 + $0x8] sm:$0xff]
    %v3072 = vld [vmem:[%s22 + $0x10] sm:$0xff]
    %v3073 = vld [vmem:[%s22 + $0x18] sm:$0xff]
    %v3075 = vsel %vm252, %v3063, 0
    %v3078 = vsel %vm252, %v3064, 0
    %v3081 = vsel %vm252, %v3065, 0
    %v3084 = vsel %vm252, %v3066, 0
    %v3087 = vsel %vm252, %v3067, 0
    %v3090 = vsel %vm252, %v3068, 0
    %v3093 = vsel %vm252, %v3069, 0
    %3095 = vmatprep.subr.mxu0 0.0
    %3096 = vmatpush1.msra.mxu0 %v3070
    %3097 = vmatprep.subr.mxu0 0.0
    %3098 = vmatpush1.msra.mxu0 %v3071
    %3099 = vmatprep.subr.mxu0 0.0
    %3100 = vmatpush1.msra.mxu0 %v3072
    %3101 = vmatprep.subr.mxu0 0.0
    %3102 = vmatpush1.msra.mxu0 %v3073
    %3103 = vmatprep.subr.mxu0 0.0
    %3104 = vmatpush1.msra.mxu0 0.0
    %3105 = vmatprep.subr.mxu0 0.0
    %3106 = vmatpush1.msra.mxu0 0.0
    %3107 = vmatprep.subr.mxu0 0.0
    %3108 = vmatpush1.msra.mxu0 0.0
    %3109 = vmatprep.subr.mxu0 0.0
    %3110 = vmatpush1.msra.mxu0 0.0
    %3111 = vmatprep.subr.mxu0 0.0
    %3112 = vmatpush1.msra.mxu0 0.0
    %3113 = vmatprep.subr.mxu0 0.0
    %3114 = vmatpush1.msra.mxu0 0.0
    %3115 = vmatprep.subr.mxu0 0.0
    %3116 = vmatpush1.msra.mxu0 0.0
    %3117 = vmatprep.subr.mxu0 0.0
    %3118 = vmatpush1.msra.mxu0 0.0
    %3119 = vmatprep.subr.mxu0 0.0
    %3120 = vmatpush1.msra.mxu0 0.0
    %3121 = vmatprep.subr.mxu0 0.0
    %3122 = vmatpush1.msra.mxu0 0.0
    %3123 = vmatprep.subr.mxu0 0.0
    %3124 = vmatpush1.msra.mxu0 0.0
    %3125 = vmatprep.subr.mxu0 0.0
    %3126 = vmatpush1.msra.mxu0 0.0
    %3127 = vmatprep.subr.mxu0 0.0
    %3128 = vmatpush1.msra.mxu0 0.0
    %3129 = vmatprep.subr.mxu0 0.0
    %3130 = vmatpush1.msra.mxu0 0.0
    %3131 = vmatprep.subr.mxu0 0.0
    %3132 = vmatpush1.msra.mxu0 0.0
    %3133 = vmatprep.subr.mxu0 0.0
    %3134 = vmatpush1.msra.mxu0 0.0
    %3135 = vmatprep.subr.mxu0 0.0
    %3136 = vmatpush1.msra.mxu0 0.0
    %3137 = vmatprep.subr.mxu0 0.0
    %3138 = vmatpush1.msra.mxu0 0.0
    %3139 = vmatprep.subr.mxu0 0.0
    %3140 = vmatpush1.msra.mxu0 0.0
    %3141 = vmatprep.subr.mxu0 0.0
    %3142 = vmatpush1.msra.mxu0 0.0
    %3143 = vmatprep.subr.mxu0 0.0
    %3144 = vmatpush1.msra.mxu0 0.0
    %3145 = vmatprep.subr.mxu0 0.0
    %3146 = vmatpush1.msra.mxu0 0.0
    %3147 = vmatprep.subr.mxu0 0.0
    %3148 = vmatpush1.msra.mxu0 0.0
    %3149 = vmatprep.subr.mxu0 0.0
    %3150 = vmatpush1.msra.mxu0 0.0
    %3151 = vmatprep.subr.mxu0 0.0
    %3152 = vmatpush1.msra.mxu0 0.0
    %3153 = vmatprep.subr.mxu0 0.0
    %3154 = vmatpush1.msra.mxu0 0.0
    %3155 = vmatprep.subr.mxu0 0.0
    %3156 = vmatpush1.msra.mxu0 0.0
    %3157 = vmatprep.subr.mxu0 0.0
    %3158 = vmatpush1.msra.mxu0 0.0
    %3159 = vmatprep.mubr.f32.mxu0 0.0
    %3160 = vmatmul.mubr.f32.gmra.mrb[0].mxu0 %v3075
    %v3161 = vpop.f32.mrb[0].mxu0
    %v3162 = vadd.f32 0.0, %v3161
    %v3163 = vpop.f32.mrb[0].mxu0
    %3164 = vmatprep.mubr.f32.mxu0 0.0
    %3165 = vmatmul.mubr.f32.gmra.mrb[0].mxu0 %v3078
    %v3166 = vpop.f32.mrb[0].mxu0
    %v3167 = vadd.f32 0.0, %v3166
    %v3168 = vpop.f32.mrb[0].mxu0
    %3169 = vmatprep.mubr.f32.mxu0 0.0
    %3170 = vmatmul.mubr.f32.gmra.mrb[0].mxu0 %v3081
    %v3171 = vpop.f32.mrb[0].mxu0
    %v3172 = vadd.f32 0.0, %v3171
    %v3173 = vpop.f32.mrb[0].mxu0
    %3174 = vmatprep.mubr.f32.mxu0 0.0
    %3175 = vmatmul.mubr.f32.gmra.mrb[0].mxu0 %v3084
    %v3176 = vpop.f32.mrb[0].mxu0
    %v3177 = vadd.f32 0.0, %v3176
    %v3178 = vpop.f32.mrb[0].mxu0
    %3179 = vmatprep.mubr.f32.mxu0 0.0
    %3180 = vmatmul.mubr.f32.gmra.mrb[0].mxu0 %v3087
    %v3181 = vpop.f32.mrb[0].mxu0
    %v3182 = vadd.f32 0.0, %v3181
    %v3183 = vpop.f32.mrb[0].mxu0
    %3184 = vmatprep.mubr.f32.mxu0 0.0
    %3185 = vmatmul.mubr.f32.gmra.mrb[0].mxu0 %v3090
    %v3186 = vpop.f32.mrb[0].mxu0
    %v3187 = vadd.f32 0.0, %v3186
    %v3188 = vpop.f32.mrb[0].mxu0
    %3189 = vmatprep.mubr.f32.mxu0 0.0
    %3190 = vmatmul.mubr.f32.gmra.mrb[0].mxu0 %v3093
    %v3191 = vpop.f32.mrb[0].mxu0
    %v3192 = vadd.f32 0.0, %v3191
    %v3193 = vpop.f32.mrb[0].mxu0
    %3194 = vdwg.mxu0
    %3196 = vset.pattern.permute.xlu0 0
    %3197 = vperm.xlu0 %3196, %v3162
    %v3198 = vpop.permute.xlu0 %3197
    %3201 = vset.pattern.permute.xlu0 0
    %3202 = vperm.xlu0 %3201, %v3167
    %v3203 = vpop.permute.xlu0 %3202
    %3206 = vset.pattern.permute.xlu0 0
    %3207 = vperm.xlu0 %3206, %v3172
    %v3208 = vpop.permute.xlu0 %3207
    %3211 = vset.pattern.permute.xlu0 0
    %3212 = vperm.xlu0 %3211, %v3177
    %v3213 = vpop.permute.xlu0 %3212
    %3216 = vset.pattern.permute.xlu0 0
    %3217 = vperm.xlu0 %3216, %v3182
    %v3218 = vpop.permute.xlu0 %3217
    %3221 = vset.pattern.permute.xlu0 0
    %3222 = vperm.xlu0 %3221, %v3187
    %v3223 = vpop.permute.xlu0 %3222
    %3226 = vset.pattern.permute.xlu0 0
    %3227 = vperm.xlu0 %3226, %v3192
    %v3228 = vpop.permute.xlu0 %3227
    %v3230 = vmul.f32 %v777, %v3198
    %v3231 = vmul.f32 %v779, %v3203
    %v3232 = vmul.f32 %v781, %v3208
    %v3233 = vmul.f32 %v783, %v3213
    %v3234 = vmul.f32 %v785, %v3218
    %v3235 = vmul.f32 %v787, %v3223
    %v3236 = vmul.f32 %v789, %v3228
    %3244 = vrot.lane.b32.xlu0 %v3230, 96
    %v3245 = vpop.permute.xlu0 %3244
    %3246 = vrot.lane.b32.xlu0 %v3231, 96
    %v3247 = vpop.permute.xlu0 %3246
    %3248 = vrot.lane.b32.xlu0 %v3232, 96
    %v3249 = vpop.permute.xlu0 %3248
    %3250 = vrot.lane.b32.xlu0 %v3233, 96
    %v3251 = vpop.permute.xlu0 %3250
    %3252 = vrot.lane.b32.xlu0 %v3234, 96
    %v3253 = vpop.permute.xlu0 %3252
    %3254 = vrot.lane.b32.xlu0 %v3235, 96
    %v3255 = vpop.permute.xlu0 %3254
    %3256 = vrot.lane.b32.xlu0 %v3236, 96
    %v3257 = vpop.permute.xlu0 %3256
    %3265 = vmatprep.subr.mxu0 0.0
    %3266 = vmatpush1.msra.mxu0 %v3245
    %3267 = vmatprep.subr.mxu0 0.0
    %3268 = vmatpush1.msra.mxu0 %v3247
    %3269 = vmatprep.subr.mxu0 0.0
    %3270 = vmatpush1.msra.mxu0 %v3249
    %3271 = vmatprep.subr.mxu0 0.0
    %3272 = vmatpush1.msra.mxu0 %v3251
    %3273 = vmatprep.subr.mxu0 0.0
    %3274 = vmatpush1.msra.mxu0 %v3253
    %3275 = vmatprep.subr.mxu0 0.0
    %3276 = vmatpush1.msra.mxu0 %v3255
    %3277 = vmatprep.subr.mxu0 0.0
    %3278 = vmatpush1.msra.mxu0 %v3257
    %3279 = vmatprep.subr.mxu0 0.0
    %3280 = vmatpush1.msra.mxu0 0.0
    %3281 = vmatprep.subr.mxu0 0.0
    %3282 = vmatpush1.msra.mxu0 0.0
    %3283 = vmatprep.subr.mxu0 0.0
    %3284 = vmatpush1.msra.mxu0 0.0
    %3285 = vmatprep.subr.mxu0 0.0
    %3286 = vmatpush1.msra.mxu0 0.0
    %3287 = vmatprep.subr.mxu0 0.0
    %3288 = vmatpush1.msra.mxu0 0.0
    %3289 = vmatprep.subr.mxu0 0.0
    %3290 = vmatpush1.msra.mxu0 0.0
    %3291 = vmatprep.subr.mxu0 0.0
    %3292 = vmatpush1.msra.mxu0 0.0
    %3293 = vmatprep.subr.mxu0 0.0
    %3294 = vmatpush1.msra.mxu0 0.0
    %3295 = vmatprep.subr.mxu0 0.0
    %3296 = vmatpush1.msra.mxu0 0.0
    %3297 = vmatprep.subr.mxu0 0.0
    %3298 = vmatpush1.msra.mxu0 0.0
    %3299 = vmatprep.subr.mxu0 0.0
    %3300 = vmatpush1.msra.mxu0 0.0
    %3301 = vmatprep.subr.mxu0 0.0
    %3302 = vmatpush1.msra.mxu0 0.0
    %3303 = vmatprep.subr.mxu0 0.0
    %3304 = vmatpush1.msra.mxu0 0.0
    %3305 = vmatprep.subr.mxu0 0.0
    %3306 = vmatpush1.msra.mxu0 0.0
    %3307 = vmatprep.subr.mxu0 0.0
    %3308 = vmatpush1.msra.mxu0 0.0
    %3309 = vmatprep.subr.mxu0 0.0
    %3310 = vmatpush1.msra.mxu0 0.0
    %3311 = vmatprep.subr.mxu0 0.0
    %3312 = vmatpush1.msra.mxu0 0.0
    %3313 = vmatprep.subr.mxu0 0.0
    %3314 = vmatpush1.msra.mxu0 0.0
    %3315 = vmatprep.subr.mxu0 0.0
    %3316 = vmatpush1.msra.mxu0 0.0
    %3317 = vmatprep.subr.mxu0 0.0
    %3318 = vmatpush1.msra.mxu0 0.0
    %3319 = vmatprep.subr.mxu0 0.0
    %3320 = vmatpush1.msra.mxu0 0.0
    %3321 = vmatprep.subr.mxu0 0.0
    %3322 = vmatpush1.msra.mxu0 0.0
    %3323 = vmatprep.subr.mxu0 0.0
    %3324 = vmatpush1.msra.mxu0 0.0
    %3325 = vmatprep.subr.mxu0 0.0
    %3326 = vmatpush1.msra.mxu0 0.0
    %3327 = vmatprep.subr.mxu0 0.0
    %3328 = vmatpush1.msra.mxu0 0.0
    %3329 = vmatprep.mubr.f32.mxu0 0.0
    %3330 = vmatmul.mubr.f32.gmra.mrb[0].mxu0 %v1147
    %v3331 = vpop.f32.mrb[0].mxu0
    %v3332 = vadd.f32 0.0, %v3331
    %v3333 = vpop.f32.mrb[0].mxu0
    %3334 = vdwg.mxu0
    %v3335 = vmul.f32 %v3332, %v1219
    %v3336 = vadd.f32 %v212, %v3335
    %3337 = vst.msk [vmem:[%s24] sm:$0xff] %vm691, %v3336
    // Predicated region
    $region134: #{tpu_custom_call.1} parent=1 // pred_check
      _
    $region135: #{tpu_custom_call.1} parent=1 // pred_check_branch
      %3339 = sbr.rel (0) target = $region137
    $region136: #{tpu_custom_call.1} parent=1 // pred_region
      %s3341 = ssub.s32 128, 128
      %3342 = vsyncadd [#allocation4], %s3341
      %s3344 = sshll.u32 [#allocation19], 4
      %s3345 = int_to_ptr.vmem [resolvable:$true] %s3344
      %3347 = dma.vmem_to_hbm [thread:$0]  %s3345, 128, %s23, [#allocation4]
    $region137: #{tpu_custom_call.1} parent=1 // pred_fallthru
      _
    // Predicated region
    $region138: #{tpu_custom_call.1} parent=1 // pred_check
      _
    $region139: #{tpu_custom_call.1} parent=1 // pred_check_branch
      %3349 = sbr.rel (0) target = $region141
    $region140: #{tpu_custom_call.1} parent=1 // pred_region
      _
    $region141: #{tpu_custom_call.1} parent=1 // pred_fallthru
      _
    // Predicated region
    $region142: #{tpu_custom_call.1} parent=1 // pred_check
      _
    $region143: #{tpu_custom_call.1} parent=1 // pred_check_branch
      %3351 = sbr.rel (0) target = $region145
    $region144: #{tpu_custom_call.1} parent=1 // pred_region
      %3352 = dma.done [#allocation4], 128
    $region145: #{tpu_custom_call.1} parent=1 // pred_fallthru
      _
    // Predicated region
    $region146: #{tpu_custom_call.1} parent=1 // pred_check
      _
    $region147: #{tpu_custom_call.1} parent=1 // pred_check_branch
      %3354 = sbr.rel (0) target = $region149
    $region148: #{tpu_custom_call.1} parent=1 // pred_region
      _
    $region149: #{tpu_custom_call.1} parent=1 // pred_fallthru
      _
    %3355 = vsyncpa [#allocation3], 1
    %3356 = vsyncpa [#allocation6], 1
    %3357 = vsyncpa [#allocation9], 1
    %3358 = vsyncpa [#allocation12], 1
    %3359 = vsyncpa [#allocation15], 1
    %3360 = vsyncpa [#allocation18], 1
    %3361 = vsyncpa [#allocation4], 1

</llo_original>
